<compile_context>
chip_gen: v5e
topology: v5e:2x2
jax: 0.10.0
libtpu: 0.0.40
codegen_flags: <defaults>
</compile_context>

<pallas_src>
import functools

import jax
import jax.numpy as jnp
from jax import lax
from jax.experimental import pallas as pl
from jax.experimental.pallas import tpu as pltpu


# ---------------------------------------------------------------------------
# Helpers
# ---------------------------------------------------------------------------
def _vmem_limit_bytes():
    """~75% of physical VMEM, capped at 100 MiB (48 MiB on v7x, 96 MiB on v5e/v6e)."""
    try:
        kind = jax.devices()[0].device_kind.lower()
    except Exception:
        kind = ""
    is_v7 = ("v7" in kind) or ("7x" in kind)
    cap = 64 * 1024 * 1024 if is_v7 else 128 * 1024 * 1024
    return int(min(cap * 3 // 4, 100 * 1024 * 1024))


def _pick_tile(n, target):
    """Largest multiple-of-8 divisor of n that is <= target (else the full dim)."""
    if n <= target:
        return n
    for t in range(min(target, n), 7, -1):
        if n % t == 0 and t % 8 == 0:
            return t
    return n


def _layer_norm_f32(v_f32, g_ref, b_ref, eps=1e-5):
    g = g_ref[...].astype(jnp.float32)   # (1, C)
    b = b_ref[...].astype(jnp.float32)   # (1, C)
    mu = jnp.mean(v_f32, axis=-1, keepdims=True)
    var = jnp.mean(jnp.square(v_f32 - mu), axis=-1, keepdims=True)
    return (v_f32 - mu) * lax.rsqrt(var + eps) * g + b


def _gelu_exact(x_f32):
    # nn.GELU() default = exact erf formulation
    return 0.5 * x_f32 * (1.0 + lax.erf(x_f32 * 0.7071067811865476))


# ---------------------------------------------------------------------------
# Kernel 1: LN1 + fused QKV projection (token-tiled), output (B, N, 3C)
# ---------------------------------------------------------------------------
def ln_qkv_kernel(x_ref, g_ref, b_ref, w_ref, bias_ref, qkv_ref):
    x = x_ref[0].astype(jnp.float32)                      # (TN, C)
    h = _layer_norm_f32(x, g_ref, b_ref)                  # f32 stats
    h = h.astype(w_ref.dtype)                             # matmul in compute dtype
    out = jnp.dot(h, w_ref[...], preferred_element_type=jnp.float32)
    out = out + bias_ref[...].astype(jnp.float32)         # (TN, 3C); q-cols pre-scaled
    qkv_ref[0] = out.astype(qkv_ref.dtype)


# ---------------------------------------------------------------------------
# Kernel 2: flash-style attention + head merge + output projection
#   grid = (B, nq, nkv); kv axis is the (arbitrary) reduction axis.
#   q/k/v windows are lane-dense (tile, C) slices of the same (B,N,3C) array;
#   head split/merge happens on VMEM-resident data.
# ---------------------------------------------------------------------------
def attn_proj_kernel(q_ref, k_ref, v_ref, pw_ref, pb_ref, o_ref,
                     m_s, l_s, acc_s, *, num_heads):
    ki = pl.program_id(2)

    @pl.when(ki == 0)
    def _init():
        m_s[...] = jnp.full(m_s.shape, -jnp.inf, dtype=m_s.dtype)
        l_s[...] = jnp.zeros(l_s.shape, dtype=l_s.dtype)
        acc_s[...] = jnp.zeros(acc_s.shape, dtype=acc_s.dtype)

    tq, C = q_ref.shape[1], q_ref.shape[2]
    tkv = k_ref.shape[1]
    hd = C // num_heads

    # head split in VMEM (no HBM round-trip); scale already folded into q weights
    qh = jnp.transpose(q_ref[0].reshape(tq, num_heads, hd), (1, 0, 2))   # (H,TQ,hd)
    kh = jnp.transpose(k_ref[0].reshape(tkv, num_heads, hd), (1, 0, 2))  # (H,TKV,hd)
    vh = jnp.transpose(v_ref[0].reshape(tkv, num_heads, hd), (1, 0, 2))  # (H,TKV,hd)

    s = jnp.einsum("hqd,hkd->hqk", qh, kh,
                   preferred_element_type=jnp.float32)    # (H, TQ, TKV)

    m_prev = m_s[...]
    m_new = jnp.maximum(m_prev, jnp.max(s, axis=-1, keepdims=True))
    alpha = jnp.exp(m_prev - m_new)
    p = jnp.exp(s - m_new)                                # unnormalized probs
    l_s[...] = alpha * l_s[...] + jnp.sum(p, axis=-1, keepdims=True)
    acc_s[...] = alpha * acc_s[...] + jnp.einsum(
        "hqk,hkd->hqd", p.astype(vh.dtype), vh,
        preferred_element_type=jnp.float32)
    m_s[...] = m_new

    @pl.when(ki == pl.num_programs(2) - 1)
    def _finalize():
        # normalize AFTER the PV matmul (small (H,TQ,hd) tensor, not (H,TQ,N))
        ctx = acc_s[...] * pl.reciprocal(l_s[...], approx=True)
        ctx = jnp.transpose(ctx, (1, 0, 2)).reshape(tq, C)  # merge heads, lane-dense
        out = jnp.dot(ctx.astype(pw_ref.dtype), pw_ref[...],
                      preferred_element_type=jnp.float32)
        out = out + pb_ref[...].astype(jnp.float32)
        o_ref[0] = out.astype(o_ref.dtype)


# ---------------------------------------------------------------------------
# Kernel 3: gamma_1 residual + LN2 + MLP + gamma_2 residual (token-tiled)
# ---------------------------------------------------------------------------
def residual_mlp_kernel(x_ref, attn_ref, g1_ref, ln2g_ref, ln2b_ref,
                        fc1w_ref, fc1b_ref, fc2w_ref, fc2b_ref, g2_ref, o_ref):
    x = x_ref[0].astype(jnp.float32)                       # (TN, C)
    x1 = x + g1_ref[...].astype(jnp.float32) * attn_ref[0].astype(jnp.float32)

    h = _layer_norm_f32(x1, ln2g_ref, ln2b_ref)
    h = jnp.dot(h.astype(fc1w_ref.dtype), fc1w_ref[...],
                preferred_element_type=jnp.float32)
    h = h + fc1b_ref[...].astype(jnp.float32)
    h = _gelu_exact(h)
    h = jnp.dot(h.astype(fc2w_ref.dtype), fc2w_ref[...],
                preferred_element_type=jnp.float32)
    h = h + fc2b_ref[...].astype(jnp.float32)

    o_ref[0] = (x1 + g2_ref[...].astype(jnp.float32) * h).astype(o_ref.dtype)


# ---------------------------------------------------------------------------
# Wrapper
# ---------------------------------------------------------------------------
def block_forward(x, params, *, num_heads, token_tile=None, q_tile=None, kv_tile=None):
    B, N, C = x.shape
    hd = C // num_heads
    Hm = params["fc1_w"].shape[1]
    scale = hd ** (-0.5)
    cdtype = x.dtype
    itemsize = jnp.dtype(cdtype).itemsize

    vmem_limit = _vmem_limit_bytes()

    if token_tile is None:
        token_tile = _pick_tile(N, 512)
    if q_tile is None:
        q_tile = _pick_tile(N, 256)
    if kv_tile is None:
        # Hold full-length K/V per batch when the attention working set fits the
        # VMEM budget comfortably; otherwise KV-tile flash-style (v7x headroom).
        full_ws = (3 * N * C * itemsize               # q/k/v windows (worst case)
                   + num_heads * q_tile * N * 4       # f32 score block
                   + num_heads * q_tile * hd * 4)     # f32 accumulator
        kv_tile = N if full_ws <= vmem_limit // 2 else _pick_tile(N, 512)
    assert N % token_tile == 0 and N % q_tile == 0 and N % kv_tile == 0
    nt, nq, nkv = N // token_tile, N // q_tile, N // kv_tile

    # Fold the attention scale into the q columns of the QKV weight/bias
    # (one tiny XLA elementwise op, zero per-step kernel cost).
    qscale = jnp.concatenate([jnp.full((C,), scale, jnp.float32),
                              jnp.ones((2 * C,), jnp.float32)])
    qkv_w = (params["qkv_w"].astype(jnp.float32) * qscale).astype(params["qkv_w"].dtype)
    qkv_b = (params["qkv_b"].astype(jnp.float32) * qscale).astype(params["qkv_b"].dtype)

    cp2 = pltpu.CompilerParams(
        dimension_semantics=("parallel", "parallel"),
        vmem_limit_bytes=vmem_limit)
    cp3 = pltpu.CompilerParams(
        dimension_semantics=("parallel", "parallel", "arbitrary"),
        vmem_limit_bytes=vmem_limit)

    # constant-index weights: single-buffered (one VMEM copy, fetched once)
    def const2(shape):
        z = (0,) * len(shape)
        return pl.BlockSpec(shape, lambda b, t: z, pipeline_mode=pl.Buffered(1))

    def const3(shape):
        z = (0,) * len(shape)
        return pl.BlockSpec(shape, lambda b, q, k: z, pipeline_mode=pl.Buffered(1))

    # ---- K1: LN1 + QKV projection (lane-dense (B,N,3C) output) ------------
    qkv = pl.pallas_call(
        ln_qkv_kernel,
        out_shape=jax.ShapeDtypeStruct((B, N, 3 * C), cdtype),
        grid_spec=pltpu.PrefetchScalarGridSpec(
            num_scalar_prefetch=0,
            grid=(B, nt),
            in_specs=[
                pl.BlockSpec((1, token_tile, C), lambda b, t: (b, t, 0)),
                const2((1, C)),            # ln1 gamma
                const2((1, C)),            # ln1 beta
                const2((C, 3 * C)),        # qkv weight (in, out), q-cols pre-scaled
                const2((1, 3 * C)),        # qkv bias [q*s | 0 | v]
            ],
            out_specs=pl.BlockSpec((1, token_tile, 3 * C), lambda b, t: (b, t, 0)),
        ),
        compiler_params=cp2,
    )(x, params["ln1_g"], params["ln1_b"], qkv_w, qkv_b)

    # ---- K2: flash-style attention + head merge + output projection --------
    # q / k / v windows are three views of the same (B, N, 3C) array selected by
    # the channel block index (0 = q, 1 = k, 2 = v) -> no XLA reshape/transpose.
    kv_mode = pl.Buffered(1) if nkv == 1 else pl.Buffered(2)
    attn = pl.pallas_call(
        functools.partial(attn_proj_kernel, num_heads=num_heads),
        out_shape=jax.ShapeDtypeStruct((B, N, C), cdtype),
        grid_spec=pltpu.PrefetchScalarGridSpec(
            num_scalar_prefetch=0,
            grid=(B, nq, nkv),
            in_specs=[
                pl.BlockSpec((1, q_tile, C), lambda b, q, k: (b, q, 0)),   # Q window
                pl.BlockSpec((1, kv_tile, C), lambda b, q, k: (b, k, 1),
                             pipeline_mode=kv_mode),                        # K window
                pl.BlockSpec((1, kv_tile, C), lambda b, q, k: (b, k, 2),
                             pipeline_mode=kv_mode),                        # V window
                const3((C, C)),            # proj weight (in, out)
                const3((1, C)),            # proj bias
            ],
            out_specs=pl.BlockSpec((1, q_tile, C), lambda b, q, k: (b, q, 0)),
            scratch_shapes=[
                pltpu.VMEM((num_heads, q_tile, 1), jnp.float32),   # running max
                pltpu.VMEM((num_heads, q_tile, 1), jnp.float32),   # running sum
                pltpu.VMEM((num_heads, q_tile, hd), jnp.float32),  # running ctx
            ],
        ),
        compiler_params=cp3,
    )(qkv, qkv, qkv, params["proj_w"], params["proj_b"])

    # ---- K3: gamma_1 residual + LN2 + MLP + gamma_2 residual ---------------
    out = pl.pallas_call(
        residual_mlp_kernel,
        out_shape=jax.ShapeDtypeStruct((B, N, C), cdtype),
        grid_spec=pltpu.PrefetchScalarGridSpec(
            num_scalar_prefetch=0,
            grid=(B, nt),
            in_specs=[
                pl.BlockSpec((1, token_tile, C), lambda b, t: (b, t, 0)),  # x
                pl.BlockSpec((1, token_tile, C), lambda b, t: (b, t, 0)),  # attn out
                const2((1, C)),            # gamma_1
                const2((1, C)),            # ln2 gamma
                const2((1, C)),            # ln2 beta
                const2((C, Hm)),           # fc1 weight (in, out)
                const2((1, Hm)),           # fc1 bias
                const2((Hm, C)),           # fc2 weight (in, out)
                const2((1, C)),            # fc2 bias
                const2((1, C)),            # gamma_2
            ],
            out_specs=pl.BlockSpec((1, token_tile, C), lambda b, t: (b, t, 0)),
        ),
        compiler_params=cp2,
    )(
        x, attn,
        params["gamma_1"], params["ln2_g"], params["ln2_b"],
        params["fc1_w"], params["fc1_b"], params["fc2_w"], params["fc2_b"],
        params["gamma_2"],
    )
    return out


block_forward_jit = jax.jit(
    block_forward, static_argnames=("num_heads", "token_tile", "q_tile", "kv_tile"))


# ---------------------------------------------------------------------------
# Pure-JAX reference (mirrors the PyTorch forward) for the correctness check
# ---------------------------------------------------------------------------
def block_reference(x, params, *, num_heads):
    B, N, C = x.shape
    head_dim = C // num_heads
    scale = head_dim ** (-0.5)

    def ln(v, g, b):
        mu = jnp.mean(v, axis=-1, keepdims=True)
        var = jnp.mean((v - mu) ** 2, axis=-1, keepdims=True)
        return (v - mu) / jnp.sqrt(var + 1e-5) * g[0] + b[0]

    h = ln(x, params["ln1_g"], params["ln1_b"])
    qkv = h @ params["qkv_w"] + params["qkv_b"][0]
    qkv = qkv.reshape(B, N, 3, num_heads, head_dim).transpose(2, 0, 3, 1, 4)
    q, k, v = qkv[0] * scale, qkv[1], qkv[2]
    attn = jax.nn.softmax(jnp.einsum("bhqd,bhkd->bhqk", q, k), axis=-1)
    o = jnp.einsum("bhqk,bhkd->bhqd", attn, v).transpose(0, 2, 1, 3).reshape(B, N, C)
    o = o @ params["proj_w"] + params["proj_b"][0]
    x = x + params["gamma_1"][0] * o

    h2 = ln(x, params["ln2_g"], params["ln2_b"])
    h2 = h2 @ params["fc1_w"] + params["fc1_b"][0]
    h2 = 0.5 * h2 * (1.0 + lax.erf(h2 / jnp.sqrt(2.0)))
    h2 = h2 @ params["fc2_w"] + params["fc2_b"][0]
    return x + params["gamma_2"][0] * h2


def make_params(key, dim, num_heads, mlp_ratio=4.0, init_values=0.1):
    Hm = int(dim * mlp_ratio)
    ks = jax.random.split(key, 8)
    s = 0.02
    q_bias = s * jax.random.normal(ks[4], (dim,), jnp.float32)
    v_bias = s * jax.random.normal(ks[5], (dim,), jnp.float32)
    qkv_bias_full = jnp.concatenate([q_bias, jnp.zeros((dim,), jnp.float32), v_bias])
    return {
        "ln1_g": jnp.ones((1, dim), jnp.float32),
        "ln1_b": jnp.zeros((1, dim), jnp.float32),
        "qkv_w": s * jax.random.normal(ks[0], (dim, 3 * dim), jnp.float32),
        "qkv_b": qkv_bias_full[None, :],
        "proj_w": s * jax.random.normal(ks[1], (dim, dim), jnp.float32),
        "proj_b": s * jax.random.normal(ks[6], (1, dim), jnp.float32),
        "gamma_1": init_values * jnp.ones((1, dim), jnp.float32),
        "ln2_g": jnp.ones((1, dim), jnp.float32),
        "ln2_b": jnp.zeros((1, dim), jnp.float32),
        "fc1_w": s * jax.random.normal(ks[2], (dim, Hm), jnp.float32),
        "fc1_b": s * jax.random.normal(ks[7], (1, Hm), jnp.float32),
        "fc2_w": s * jax.random.normal(ks[3], (Hm, dim), jnp.float32),
        "fc2_b": jnp.zeros((1, dim), jnp.float32),
        "gamma_2": init_values * jnp.ones((1, dim), jnp.float32),
    }


if __name__ == "__main__":
    B, N, dim, num_heads = 2, 32, 128, 4   # head_dim = 32, mlp_hidden = 512
    key = jax.random.PRNGKey(0)
    kx, kp = jax.random.split(key)
    x = jax.random.normal(kx, (B, N, dim), jnp.float32)
    params = make_params(kp, dim, num_heads)

    # f32 correctness check
    out = jax.block_until_ready(block_forward_jit(x, params, num_heads=num_heads))
    ref = block_reference(x, params, num_heads=num_heads)
    assert out.shape == (B, N, dim)
    err = float(jnp.max(jnp.abs(out - ref)))
    assert jnp.allclose(out, ref, atol=2e-3, rtol=2e-3), err

    # bf16 path (MXU-friendly compute dtype; f32 accumulation inside kernels)
    x_bf16 = x.astype(jnp.bfloat16)
    params_bf16 = jax.tree_util.tree_map(lambda p: p.astype(jnp.bfloat16), params)
    out_bf16 = jax.block_until_ready(
        block_forward_jit(x_bf16, params_bf16, num_heads=num_heads))
    assert out_bf16.dtype == jnp.bfloat16
    err_bf16 = float(jnp.max(jnp.abs(out_bf16.astype(jnp.float32) - ref)))
    assert err_bf16 < 1e-1, err_bf16

    print("KERNEL_OK")
</pallas_src>

<mosaic_0001>
module attributes {stable_mosaic.version = 11 : i64} {
  func.func @ln_qkv_kernel(%arg0: i32, %arg1: i32, %arg2: memref<1x32x128xf32, #tpu.memory_space<vmem>>, %arg3: memref<1x128xf32, #tpu.memory_space<vmem>>, %arg4: memref<1x128xf32, #tpu.memory_space<vmem>>, %arg5: memref<128x384xf32, #tpu.memory_space<vmem>>, %arg6: memref<1x384xf32, #tpu.memory_space<vmem>>, %arg7: memref<1x32x384xf32, #tpu.memory_space<vmem>>) attributes {dimension_semantics = [#tpu.dimension_semantics<parallel>, #tpu.dimension_semantics<parallel>], iteration_bounds = array<i64: 2, 1>, scalar_prefetch = 0 : i64, scratch_operands = 0 : i64, tpu.core_type = #tpu.core_type<tc>, window_params = [{transform_indices = @transform_0, window_bounds = array<i64: 1, 32, 128>}, {pipeline_mode = #tpu.pipeline_mode<synchronous>, transform_indices = @transform_1, window_bounds = array<i64: 1, 128>}, {pipeline_mode = #tpu.pipeline_mode<synchronous>, transform_indices = @transform_2, window_bounds = array<i64: 1, 128>}, {pipeline_mode = #tpu.pipeline_mode<synchronous>, transform_indices = @transform_3, window_bounds = array<i64: 128, 384>}, {pipeline_mode = #tpu.pipeline_mode<synchronous>, transform_indices = @transform_4, window_bounds = array<i64: 1, 384>}, {transform_indices = @transform_5, window_bounds = array<i64: 1, 32, 384>}]} {
    %c0 = arith.constant 0 : index
    %c0_0 = arith.constant 0 : index
    %c0_1 = arith.constant 0 : index
    %0 = vector.load %arg2[%c0, %c0_0, %c0_1] : memref<1x32x128xf32, #tpu.memory_space<vmem>>, vector<1x32x128xf32>
    %1 = vector.shape_cast %0 : vector<1x32x128xf32> to vector<32x128xf32>
    %c0_2 = arith.constant 0 : index
    %c0_3 = arith.constant 0 : index
    %2 = vector.load %arg3[%c0_2, %c0_3] : memref<1x128xf32, #tpu.memory_space<vmem>>, vector<1x128xf32>
    %c0_4 = arith.constant 0 : index
    %c0_5 = arith.constant 0 : index
    %3 = vector.load %arg4[%c0_4, %c0_5] : memref<1x128xf32, #tpu.memory_space<vmem>>, vector<1x128xf32>
    %cst = arith.constant dense<0.000000e+00> : vector<32xf32>
    %4 = vector.multi_reduction <add>, %1, %cst [1] : vector<32x128xf32> to vector<32xf32>
    %5 = vector.shape_cast %4 : vector<32xf32> to vector<32x1xf32>
    %cst_6 = arith.constant 1.280000e+02 : f32
    %6 = vector.broadcast %cst_6 : f32 to vector<32x1xf32>
    %7 = arith.divf %5, %6 : vector<32x1xf32>
    %8 = vector.broadcast %7 : vector<32x1xf32> to vector<32x128xf32>
    %9 = arith.subf %1, %8 : vector<32x128xf32>
    %10 = arith.mulf %9, %9 : vector<32x128xf32>
    %cst_7 = arith.constant dense<0.000000e+00> : vector<32xf32>
    %11 = vector.multi_reduction <add>, %10, %cst_7 [1] : vector<32x128xf32> to vector<32xf32>
    %12 = vector.shape_cast %11 : vector<32xf32> to vector<32x1xf32>
    %cst_8 = arith.constant 1.280000e+02 : f32
    %13 = vector.broadcast %cst_8 : f32 to vector<32x1xf32>
    %14 = arith.divf %12, %13 : vector<32x1xf32>
    %15 = vector.broadcast %7 : vector<32x1xf32> to vector<32x128xf32>
    %16 = arith.subf %1, %15 : vector<32x128xf32>
    %cst_9 = arith.constant 9.99999974E-6 : f32
    %17 = vector.broadcast %cst_9 : f32 to vector<32x1xf32>
    %18 = arith.addf %14, %17 : vector<32x1xf32>
    %19 = math.rsqrt %18 : vector<32x1xf32>
    %20 = vector.broadcast %19 : vector<32x1xf32> to vector<32x128xf32>
    %21 = arith.mulf %16, %20 : vector<32x128xf32>
    %22 = vector.broadcast %2 : vector<1x128xf32> to vector<32x128xf32>
    %23 = arith.mulf %21, %22 : vector<32x128xf32>
    %24 = vector.broadcast %3 : vector<1x128xf32> to vector<32x128xf32>
    %25 = arith.addf %23, %24 : vector<32x128xf32>
    %c0_10 = arith.constant 0 : index
    %c0_11 = arith.constant 0 : index
    %26 = vector.load %arg5[%c0_10, %c0_11] : memref<128x384xf32, #tpu.memory_space<vmem>>, vector<128x384xf32>
    %cst_12 = arith.constant dense<0.000000e+00> : vector<32x384xf32>
    %27 = tpu.matmul %25, %26, %cst_12 {dimension_numbers = #tpu.dot_dimension_numbers<[1], [0], [0], [1], [0, 0, 1, 1], [], []>} : vector<32x128xf32>, vector<128x384xf32>, vector<32x384xf32> -> vector<32x384xf32>
    %c0_13 = arith.constant 0 : index
    %c0_14 = arith.constant 0 : index
    %28 = vector.load %arg6[%c0_13, %c0_14] : memref<1x384xf32, #tpu.memory_space<vmem>>, vector<1x384xf32>
    %29 = vector.broadcast %28 : vector<1x384xf32> to vector<32x384xf32>
    %30 = arith.addf %27, %29 : vector<32x384xf32>
    %c0_15 = arith.constant 0 : index
    %c0_16 = arith.constant 0 : index
    %c0_17 = arith.constant 0 : index
    %31 = vector.load %arg7[%c0_15, %c0_16, %c0_17] : memref<1x32x384xf32, #tpu.memory_space<vmem>>, vector<1x32x384xf32>
    %32 = vector.shape_cast %31 : vector<1x32x384xf32> to vector<32x384xf32>
    %33 = vector.shape_cast %30 : vector<32x384xf32> to vector<1x32x384xf32>
    tpu.vector_store %arg7[%c0_15, %c0_16, %c0_17], %33 {strides = array<i32>} : memref<1x32x384xf32, #tpu.memory_space<vmem>>, vector<1x32x384xf32>,
    return
  }
  func.func @transform_0(%arg0: i32, %arg1: i32) -> (i32, i32, i32) {
    %c0_i32 = arith.constant 0 : i32
    %c0_i32_0 = arith.constant 0 : i32
    return %arg0, %arg1, %c0_i32 : i32, i32, i32
  }
  func.func @transform_1(%arg0: i32, %arg1: i32) -> (i32, i32) {
    %c0_i32 = arith.constant 0 : i32
    %c0_i32_0 = arith.constant 0 : i32
    %c0_i32_1 = arith.constant 0 : i32
    return %c0_i32, %c0_i32_0 : i32, i32
  }
  func.func @transform_2(%arg0: i32, %arg1: i32) -> (i32, i32) {
    %c0_i32 = arith.constant 0 : i32
    %c0_i32_0 = arith.constant 0 : i32
    %c0_i32_1 = arith.constant 0 : i32
    return %c0_i32, %c0_i32_0 : i32, i32
  }
  func.func @transform_3(%arg0: i32, %arg1: i32) -> (i32, i32) {
    %c0_i32 = arith.constant 0 : i32
    %c0_i32_0 = arith.constant 0 : i32
    %c0_i32_1 = arith.constant 0 : i32
    return %c0_i32, %c0_i32_0 : i32, i32
  }
  func.func @transform_4(%arg0: i32, %arg1: i32) -> (i32, i32) {
    %c0_i32 = arith.constant 0 : i32
    %c0_i32_0 = arith.constant 0 : i32
    %c0_i32_1 = arith.constant 0 : i32
    return %c0_i32, %c0_i32_0 : i32, i32
  }
  func.func @transform_5(%arg0: i32, %arg1: i32) -> (i32, i32, i32) {
    %c0_i32 = arith.constant 0 : i32
    %c0_i32_0 = arith.constant 0 : i32
    return %arg0, %arg1, %c0_i32 : i32, i32, i32
  }
}

module attributes {stable_mosaic.version = 11 : i64} {
  func.func @attn_proj_kernel(%arg0: i32, %arg1: i32, %arg2: i32, %arg3: memref<1x32x128xf32, #tpu.memory_space<vmem>>, %arg4: memref<1x32x128xf32, #tpu.memory_space<vmem>>, %arg5: memref<1x32x128xf32, #tpu.memory_space<vmem>>, %arg6: memref<128x128xf32, #tpu.memory_space<vmem>>, %arg7: memref<1x128xf32, #tpu.memory_space<vmem>>, %arg8: memref<1x32x128xf32, #tpu.memory_space<vmem>>, %arg9: memref<4x32x1xf32, #tpu.memory_space<vmem>>, %arg10: memref<4x32x1xf32, #tpu.memory_space<vmem>>, %arg11: memref<4x32x32xf32, #tpu.memory_space<vmem>>) attributes {dimension_semantics = [#tpu.dimension_semantics<parallel>, #tpu.dimension_semantics<parallel>, #tpu.dimension_semantics<arbitrary>], iteration_bounds = array<i64: 2, 1, 1>, scalar_prefetch = 0 : i64, scratch_operands = 3 : i64, tpu.core_type = #tpu.core_type<tc>, window_params = [{transform_indices = @transform_0, window_bounds = array<i64: 1, 32, 128>}, {pipeline_mode = #tpu.pipeline_mode<synchronous>, transform_indices = @transform_1, window_bounds = array<i64: 1, 32, 128>}, {pipeline_mode = #tpu.pipeline_mode<synchronous>, transform_indices = @transform_2, window_bounds = array<i64: 1, 32, 128>}, {pipeline_mode = #tpu.pipeline_mode<synchronous>, transform_indices = @transform_3, window_bounds = array<i64: 128, 128>}, {pipeline_mode = #tpu.pipeline_mode<synchronous>, transform_indices = @transform_4, window_bounds = array<i64: 1, 128>}, {transform_indices = @transform_5, window_bounds = array<i64: 1, 32, 128>}]} {
    %c0_i32 = arith.constant 0 : i32
    %0 = arith.cmpi eq, %arg2, %c0_i32 : i32
    %1 = arith.extui %0 : i1 to i32
    %c0_i32_0 = arith.constant 0 : i32
    %2 = arith.cmpi ne, %1, %c0_i32_0 : i32
    scf.if %2 {
      %cst_32 = arith.constant 0xFF800000 : f32
      %41 = vector.broadcast %cst_32 : f32 to vector<4x32x1xf32>
      %c0_33 = arith.constant 0 : index
      %c0_34 = arith.constant 0 : index
      %c0_35 = arith.constant 0 : index
      %42 = vector.load %arg9[%c0_33, %c0_34, %c0_35] : memref<4x32x1xf32, #tpu.memory_space<vmem>>, vector<4x32x1xf32>
      tpu.vector_store %arg9[%c0_33, %c0_34, %c0_35], %41 {strides = array<i32>} : memref<4x32x1xf32, #tpu.memory_space<vmem>>, vector<4x32x1xf32>,
      %cst_36 = arith.constant 0.000000e+00 : f32
      %43 = vector.broadcast %cst_36 : f32 to vector<4x32x1xf32>
      %c0_37 = arith.constant 0 : index
      %c0_38 = arith.constant 0 : index
      %c0_39 = arith.constant 0 : index
      %44 = vector.load %arg10[%c0_37, %c0_38, %c0_39] : memref<4x32x1xf32, #tpu.memory_space<vmem>>, vector<4x32x1xf32>
      tpu.vector_store %arg10[%c0_37, %c0_38, %c0_39], %43 {strides = array<i32>} : memref<4x32x1xf32, #tpu.memory_space<vmem>>, vector<4x32x1xf32>,
      %cst_40 = arith.constant 0.000000e+00 : f32
      %45 = vector.broadcast %cst_40 : f32 to vector<4x32x32xf32>
      %c0_41 = arith.constant 0 : index
      %c0_42 = arith.constant 0 : index
      %c0_43 = arith.constant 0 : index
      %46 = vector.load %arg11[%c0_41, %c0_42, %c0_43] : memref<4x32x32xf32, #tpu.memory_space<vmem>>, vector<4x32x32xf32>
      tpu.vector_store %arg11[%c0_41, %c0_42, %c0_43], %45 {strides = array<i32>} : memref<4x32x32xf32, #tpu.memory_space<vmem>>, vector<4x32x32xf32>,
    } else {
    }
    %c0 = arith.constant 0 : index
    %c0_1 = arith.constant 0 : index
    %c0_2 = arith.constant 0 : index
    %3 = vector.load %arg3[%c0, %c0_1, %c0_2] : memref<1x32x128xf32, #tpu.memory_space<vmem>>, vector<1x32x128xf32>
    %4 = vector.shape_cast %3 : vector<1x32x128xf32> to vector<32x128xf32>
    %5 = vector.shape_cast %4 : vector<32x128xf32> to vector<32x4x32xf32>
    %6 = tpu.transpose %5, [1, 0, 2] : vector<32x4x32xf32> -> vector<4x32x32xf32>
    %c0_3 = arith.constant 0 : index
    %c0_4 = arith.constant 0 : index
    %c0_5 = arith.constant 0 : index
    %7 = vector.load %arg4[%c0_3, %c0_4, %c0_5] : memref<1x32x128xf32, #tpu.memory_space<vmem>>, vector<1x32x128xf32>
    %8 = vector.shape_cast %7 : vector<1x32x128xf32> to vector<32x128xf32>
    %9 = vector.shape_cast %8 : vector<32x128xf32> to vector<32x4x32xf32>
    %10 = tpu.transpose %9, [1, 0, 2] : vector<32x4x32xf32> -> vector<4x32x32xf32>
    %c0_6 = arith.constant 0 : index
    %c0_7 = arith.constant 0 : index
    %c0_8 = arith.constant 0 : index
    %11 = vector.load %arg5[%c0_6, %c0_7, %c0_8] : memref<1x32x128xf32, #tpu.memory_space<vmem>>, vector<1x32x128xf32>
    %12 = vector.shape_cast %11 : vector<1x32x128xf32> to vector<32x128xf32>
    %13 = vector.shape_cast %12 : vector<32x128xf32> to vector<32x4x32xf32>
    %14 = tpu.transpose %13, [1, 0, 2] : vector<32x4x32xf32> -> vector<4x32x32xf32>
    "tpu.trace_start"() <{level = 10 : i32, message = "hqd,hkd->hqk"}> : () -> ()
    %cst = arith.constant dense<0.000000e+00> : vector<4x32x32xf32>
    %15 = tpu.matmul %6, %10, %cst {dimension_numbers = #tpu.dot_dimension_numbers<[2], [2], [1], [1], [0, 0, 0, 1, 1, 1], [0], [0]>} : vector<4x32x32xf32>, vector<4x32x32xf32>, vector<4x32x32xf32> -> vector<4x32x32xf32>
    "tpu.trace_stop"() : () -> ()
    %c0_9 = arith.constant 0 : index
    %c0_10 = arith.constant 0 : index
    %c0_11 = arith.constant 0 : index
    %16 = vector.load %arg9[%c0_9, %c0_10, %c0_11] : memref<4x32x1xf32, #tpu.memory_space<vmem>>, vector<4x32x1xf32>
    %cst_12 = arith.constant dense<0xFF800000> : vector<4x32xf32>
    %17 = vector.multi_reduction <maximumf>, %15, %cst_12 [2] : vector<4x32x32xf32> to vector<4x32xf32>
    %18 = vector.shape_cast %17 : vector<4x32xf32> to vector<4x32x1xf32>
    %19 = arith.maximumf %16, %18 : vector<4x32x1xf32>
    %20 = arith.subf %16, %19 : vector<4x32x1xf32>
    %21 = math.exp %20 : vector<4x32x1xf32>
    %22 = vector.broadcast %19 : vector<4x32x1xf32> to vector<4x32x32xf32>
    %23 = arith.subf %15, %22 : vector<4x32x32xf32>
    %24 = math.exp %23 : vector<4x32x32xf32>
    %c0_13 = arith.constant 0 : index
    %c0_14 = arith.constant 0 : index
    %c0_15 = arith.constant 0 : index
    %25 = vector.load %arg10[%c0_13, %c0_14, %c0_15] : memref<4x32x1xf32, #tpu.memory_space<vmem>>, vector<4x32x1xf32>
    %26 = arith.mulf %21, %25 : vector<4x32x1xf32>
    %cst_16 = arith.constant dense<0.000000e+00> : vector<4x32xf32>
    %27 = vector.multi_reduction <add>, %24, %cst_16 [2] : vector<4x32x32xf32> to vector<4x32xf32>
    %28 = vector.shape_cast %27 : vector<4x32xf32> to vector<4x32x1xf32>
    %29 = arith.addf %26, %28 : vector<4x32x1xf32>
    %c0_17 = arith.constant 0 : index
    %c0_18 = arith.constant 0 : index
    %c0_19 = arith.constant 0 : index
    %30 = vector.load %arg10[%c0_17, %c0_18, %c0_19] : memref<4x32x1xf32, #tpu.memory_space<vmem>>, vector<4x32x1xf32>
    tpu.vector_store %arg10[%c0_17, %c0_18, %c0_19], %29 {strides = array<i32>} : memref<4x32x1xf32, #tpu.memory_space<vmem>>, vector<4x32x1xf32>,
    %c0_20 = arith.constant 0 : index
    %c0_21 = arith.constant 0 : index
    %c0_22 = arith.constant 0 : index
    %31 = vector.load %arg11[%c0_20, %c0_21, %c0_22] : memref<4x32x32xf32, #tpu.memory_space<vmem>>, vector<4x32x32xf32>
    %32 = vector.broadcast %21 : vector<4x32x1xf32> to vector<4x32x32xf32>
    %33 = arith.mulf %32, %31 : vector<4x32x32xf32>
    "tpu.trace_start"() <{level = 10 : i32, message = "hqk,hkd->hqd"}> : () -> ()
    %cst_23 = arith.constant dense<0.000000e+00> : vector<4x32x32xf32>
    %34 = tpu.matmul %24, %14, %cst_23 {dimension_numbers = #tpu.dot_dimension_numbers<[2], [1], [1], [2], [0, 0, 0, 1, 1, 2], [0], [0]>} : vector<4x32x32xf32>, vector<4x32x32xf32>, vector<4x32x32xf32> -> vector<4x32x32xf32>
    "tpu.trace_stop"() : () -> ()
    %35 = arith.addf %33, %34 : vector<4x32x32xf32>
    %c0_24 = arith.constant 0 : index
    %c0_25 = arith.constant 0 : index
    %c0_26 = arith.constant 0 : index
    %36 = vector.load %arg11[%c0_24, %c0_25, %c0_26] : memref<4x32x32xf32, #tpu.memory_space<vmem>>, vector<4x32x32xf32>
    tpu.vector_store %arg11[%c0_24, %c0_25, %c0_26], %35 {strides = array<i32>} : memref<4x32x32xf32, #tpu.memory_space<vmem>>, vector<4x32x32xf32>,
    %c0_27 = arith.constant 0 : index
    %c0_28 = arith.constant 0 : index
    %c0_29 = arith.constant 0 : index
    %37 = vector.load %arg9[%c0_27, %c0_28, %c0_29] : memref<4x32x1xf32, #tpu.memory_space<vmem>>, vector<4x32x1xf32>
    tpu.vector_store %arg9[%c0_27, %c0_28, %c0_29], %19 {strides = array<i32>} : memref<4x32x1xf32, #tpu.memory_space<vmem>>, vector<4x32x1xf32>,
    %c0_i32_30 = arith.constant 0 : i32
    %38 = arith.cmpi eq, %arg2, %c0_i32_30 : i32
    %39 = arith.extui %38 : i1 to i32
    %c0_i32_31 = arith.constant 0 : i32
    %40 = arith.cmpi ne, %39, %c0_i32_31 : i32
    scf.if %40 {
      %c0_32 = arith.constant 0 : index
      %c0_33 = arith.constant 0 : index
      %c0_34 = arith.constant 0 : index
      %41 = vector.load %arg11[%c0_32, %c0_33, %c0_34] : memref<4x32x32xf32, #tpu.memory_space<vmem>>, vector<4x32x32xf32>
      %c0_35 = arith.constant 0 : index
      %c0_36 = arith.constant 0 : index
      %c0_37 = arith.constant 0 : index
      %42 = vector.load %arg10[%c0_35, %c0_36, %c0_37] : memref<4x32x1xf32, #tpu.memory_space<vmem>>, vector<4x32x1xf32>
      %43 = tpu.reciprocal %42 {approx = true} : vector<4x32x1xf32> -> vector<4x32x1xf32>
      %44 = vector.broadcast %43 : vector<4x32x1xf32> to vector<4x32x32xf32>
      %45 = arith.mulf %41, %44 : vector<4x32x32xf32>
      %46 = tpu.transpose %45, [1, 0, 2] : vector<4x32x32xf32> -> vector<32x4x32xf32>
      %47 = vector.shape_cast %46 : vector<32x4x32xf32> to vector<32x128xf32>
      %c0_38 = arith.constant 0 : index
      %c0_39 = arith.constant 0 : index
      %48 = vector.load %arg6[%c0_38, %c0_39] : memref<128x128xf32, #tpu.memory_space<vmem>>, vector<128x128xf32>
      %cst_40 = arith.constant dense<0.000000e+00> : vector<32x128xf32>
      %49 = tpu.matmul %47, %48, %cst_40 {dimension_numbers = #tpu.dot_dimension_numbers<[1], [0], [0], [1], [0, 0, 1, 1], [], []>} : vector<32x128xf32>, vector<128x128xf32>, vector<32x128xf32> -> vector<32x128xf32>
      %c0_41 = arith.constant 0 : index
      %c0_42 = arith.constant 0 : index
      %50 = vector.load %arg7[%c0_41, %c0_42] : memref<1x128xf32, #tpu.memory_space<vmem>>, vector<1x128xf32>
      %51 = vector.broadcast %50 : vector<1x128xf32> to vector<32x128xf32>
      %52 = arith.addf %49, %51 : vector<32x128xf32>
      %c0_43 = arith.constant 0 : index
      %c0_44 = arith.constant 0 : index
      %c0_45 = arith.constant 0 : index
      %53 = vector.load %arg8[%c0_43, %c0_44, %c0_45] : memref<1x32x128xf32, #tpu.memory_space<vmem>>, vector<1x32x128xf32>
      %54 = vector.shape_cast %53 : vector<1x32x128xf32> to vector<32x128xf32>
      %55 = vector.shape_cast %52 : vector<32x128xf32> to vector<1x32x128xf32>
      tpu.vector_store %arg8[%c0_43, %c0_44, %c0_45], %55 {strides = array<i32>} : memref<1x32x128xf32, #tpu.memory_space<vmem>>, vector<1x32x128xf32>,
    } else {
    }
    return
  }
  func.func @transform_0(%arg0: i32, %arg1: i32, %arg2: i32) -> (i32, i32, i32) {
    %c0_i32 = arith.constant 0 : i32
    %c0_i32_0 = arith.constant 0 : i32
    return %arg0, %arg1, %c0_i32 : i32, i32, i32
  }
  func.func @transform_1(%arg0: i32, %arg1: i32, %arg2: i32) -> (i32, i32, i32) {
    %c1_i32 = arith.constant 1 : i32
    %c0_i32 = arith.constant 0 : i32
    return %arg0, %arg2, %c1_i32 : i32, i32, i32
  }
  func.func @transform_2(%arg0: i32, %arg1: i32, %arg2: i32) -> (i32, i32, i32) {
    %c2_i32 = arith.constant 2 : i32
    %c0_i32 = arith.constant 0 : i32
    return %arg0, %arg2, %c2_i32 : i32, i32, i32
  }
  func.func @transform_3(%arg0: i32, %arg1: i32, %arg2: i32) -> (i32, i32) {
    %c0_i32 = arith.constant 0 : i32
    %c0_i32_0 = arith.constant 0 : i32
    %c0_i32_1 = arith.constant 0 : i32
    return %c0_i32, %c0_i32_0 : i32, i32
  }
  func.func @transform_4(%arg0: i32, %arg1: i32, %arg2: i32) -> (i32, i32) {
    %c0_i32 = arith.constant 0 : i32
    %c0_i32_0 = arith.constant 0 : i32
    %c0_i32_1 = arith.constant 0 : i32
    return %c0_i32, %c0_i32_0 : i32, i32
  }
  func.func @transform_5(%arg0: i32, %arg1: i32, %arg2: i32) -> (i32, i32, i32) {
    %c0_i32 = arith.constant 0 : i32
    %c0_i32_0 = arith.constant 0 : i32
    return %arg0, %arg1, %c0_i32 : i32, i32, i32
  }
}

module attributes {stable_mosaic.version = 11 : i64} {
  func.func @residual_mlp_kernel(%arg0: i32, %arg1: i32, %arg2: memref<1x32x128xf32, #tpu.memory_space<vmem>>, %arg3: memref<1x32x128xf32, #tpu.memory_space<vmem>>, %arg4: memref<1x128xf32, #tpu.memory_space<vmem>>, %arg5: memref<1x128xf32, #tpu.memory_space<vmem>>, %arg6: memref<1x128xf32, #tpu.memory_space<vmem>>, %arg7: memref<128x512xf32, #tpu.memory_space<vmem>>, %arg8: memref<1x512xf32, #tpu.memory_space<vmem>>, %arg9: memref<512x128xf32, #tpu.memory_space<vmem>>, %arg10: memref<1x128xf32, #tpu.memory_space<vmem>>, %arg11: memref<1x128xf32, #tpu.memory_space<vmem>>, %arg12: memref<1x32x128xf32, #tpu.memory_space<vmem>>) attributes {dimension_semantics = [#tpu.dimension_semantics<parallel>, #tpu.dimension_semantics<parallel>], iteration_bounds = array<i64: 2, 1>, scalar_prefetch = 0 : i64, scratch_operands = 0 : i64, tpu.core_type = #tpu.core_type<tc>, window_params = [{transform_indices = @transform_0, window_bounds = array<i64: 1, 32, 128>}, {transform_indices = @transform_1, window_bounds = array<i64: 1, 32, 128>}, {pipeline_mode = #tpu.pipeline_mode<synchronous>, transform_indices = @transform_2, window_bounds = array<i64: 1, 128>}, {pipeline_mode = #tpu.pipeline_mode<synchronous>, transform_indices = @transform_3, window_bounds = array<i64: 1, 128>}, {pipeline_mode = #tpu.pipeline_mode<synchronous>, transform_indices = @transform_4, window_bounds = array<i64: 1, 128>}, {pipeline_mode = #tpu.pipeline_mode<synchronous>, transform_indices = @transform_5, window_bounds = array<i64: 128, 512>}, {pipeline_mode = #tpu.pipeline_mode<synchronous>, transform_indices = @transform_6, window_bounds = array<i64: 1, 512>}, {pipeline_mode = #tpu.pipeline_mode<synchronous>, transform_indices = @transform_7, window_bounds = array<i64: 512, 128>}, {pipeline_mode = #tpu.pipeline_mode<synchronous>, transform_indices = @transform_8, window_bounds = array<i64: 1, 128>}, {pipeline_mode = #tpu.pipeline_mode<synchronous>, transform_indices = @transform_9, window_bounds = array<i64: 1, 128>}, {transform_indices = @transform_10, window_bounds = array<i64: 1, 32, 128>}]} {
    %c0 = arith.constant 0 : index
    %c0_0 = arith.constant 0 : index
    %c0_1 = arith.constant 0 : index
    %0 = vector.load %arg2[%c0, %c0_0, %c0_1] : memref<1x32x128xf32, #tpu.memory_space<vmem>>, vector<1x32x128xf32>
    %1 = vector.shape_cast %0 : vector<1x32x128xf32> to vector<32x128xf32>
    %c0_2 = arith.constant 0 : index
    %c0_3 = arith.constant 0 : index
    %2 = vector.load %arg4[%c0_2, %c0_3] : memref<1x128xf32, #tpu.memory_space<vmem>>, vector<1x128xf32>
    %c0_4 = arith.constant 0 : index
    %c0_5 = arith.constant 0 : index
    %c0_6 = arith.constant 0 : index
    %3 = vector.load %arg3[%c0_4, %c0_5, %c0_6] : memref<1x32x128xf32, #tpu.memory_space<vmem>>, vector<1x32x128xf32>
    %4 = vector.shape_cast %3 : vector<1x32x128xf32> to vector<32x128xf32>
    %5 = vector.broadcast %2 : vector<1x128xf32> to vector<32x128xf32>
    %6 = arith.mulf %5, %4 : vector<32x128xf32>
    %7 = arith.addf %1, %6 : vector<32x128xf32>
    %c0_7 = arith.constant 0 : index
    %c0_8 = arith.constant 0 : index
    %8 = vector.load %arg5[%c0_7, %c0_8] : memref<1x128xf32, #tpu.memory_space<vmem>>, vector<1x128xf32>
    %c0_9 = arith.constant 0 : index
    %c0_10 = arith.constant 0 : index
    %9 = vector.load %arg6[%c0_9, %c0_10] : memref<1x128xf32, #tpu.memory_space<vmem>>, vector<1x128xf32>
    %cst = arith.constant dense<0.000000e+00> : vector<32xf32>
    %10 = vector.multi_reduction <add>, %7, %cst [1] : vector<32x128xf32> to vector<32xf32>
    %11 = vector.shape_cast %10 : vector<32xf32> to vector<32x1xf32>
    %cst_11 = arith.constant 1.280000e+02 : f32
    %12 = vector.broadcast %cst_11 : f32 to vector<32x1xf32>
    %13 = arith.divf %11, %12 : vector<32x1xf32>
    %14 = vector.broadcast %13 : vector<32x1xf32> to vector<32x128xf32>
    %15 = arith.subf %7, %14 : vector<32x128xf32>
    %16 = arith.mulf %15, %15 : vector<32x128xf32>
    %cst_12 = arith.constant dense<0.000000e+00> : vector<32xf32>
    %17 = vector.multi_reduction <add>, %16, %cst_12 [1] : vector<32x128xf32> to vector<32xf32>
    %18 = vector.shape_cast %17 : vector<32xf32> to vector<32x1xf32>
    %cst_13 = arith.constant 1.280000e+02 : f32
    %19 = vector.broadcast %cst_13 : f32 to vector<32x1xf32>
    %20 = arith.divf %18, %19 : vector<32x1xf32>
    %21 = vector.broadcast %13 : vector<32x1xf32> to vector<32x128xf32>
    %22 = arith.subf %7, %21 : vector<32x128xf32>
    %cst_14 = arith.constant 9.99999974E-6 : f32
    %23 = vector.broadcast %cst_14 : f32 to vector<32x1xf32>
    %24 = arith.addf %20, %23 : vector<32x1xf32>
    %25 = math.rsqrt %24 : vector<32x1xf32>
    %26 = vector.broadcast %25 : vector<32x1xf32> to vector<32x128xf32>
    %27 = arith.mulf %22, %26 : vector<32x128xf32>
    %28 = vector.broadcast %8 : vector<1x128xf32> to vector<32x128xf32>
    %29 = arith.mulf %27, %28 : vector<32x128xf32>
    %30 = vector.broadcast %9 : vector<1x128xf32> to vector<32x128xf32>
    %31 = arith.addf %29, %30 : vector<32x128xf32>
    %c0_15 = arith.constant 0 : index
    %c0_16 = arith.constant 0 : index
    %32 = vector.load %arg7[%c0_15, %c0_16] : memref<128x512xf32, #tpu.memory_space<vmem>>, vector<128x512xf32>
    %cst_17 = arith.constant dense<0.000000e+00> : vector<32x512xf32>
    %33 = tpu.matmul %31, %32, %cst_17 {dimension_numbers = #tpu.dot_dimension_numbers<[1], [0], [0], [1], [0, 0, 1, 1], [], []>} : vector<32x128xf32>, vector<128x512xf32>, vector<32x512xf32> -> vector<32x512xf32>
    %c0_18 = arith.constant 0 : index
    %c0_19 = arith.constant 0 : index
    %34 = vector.load %arg8[%c0_18, %c0_19] : memref<1x512xf32, #tpu.memory_space<vmem>>, vector<1x512xf32>
    %35 = vector.broadcast %34 : vector<1x512xf32> to vector<32x512xf32>
    %36 = arith.addf %33, %35 : vector<32x512xf32>
    %cst_20 = arith.constant 5.000000e-01 : f32
    %37 = vector.broadcast %cst_20 : f32 to vector<32x512xf32>
    %38 = arith.mulf %37, %36 : vector<32x512xf32>
    %cst_21 = arith.constant 0.707106769 : f32
    %39 = vector.broadcast %cst_21 : f32 to vector<32x512xf32>
    %40 = arith.mulf %36, %39 : vector<32x512xf32>
    %41 = math.erf %40 : vector<32x512xf32>
    %cst_22 = arith.constant 1.000000e+00 : f32
    %42 = vector.broadcast %cst_22 : f32 to vector<32x512xf32>
    %43 = arith.addf %42, %41 : vector<32x512xf32>
    %44 = arith.mulf %38, %43 : vector<32x512xf32>
    %c0_23 = arith.constant 0 : index
    %c0_24 = arith.constant 0 : index
    %45 = vector.load %arg9[%c0_23, %c0_24] : memref<512x128xf32, #tpu.memory_space<vmem>>, vector<512x128xf32>
    %cst_25 = arith.constant dense<0.000000e+00> : vector<32x128xf32>
    %46 = tpu.matmul %44, %45, %cst_25 {dimension_numbers = #tpu.dot_dimension_numbers<[1], [0], [0], [1], [0, 0, 1, 1], [], []>} : vector<32x512xf32>, vector<512x128xf32>, vector<32x128xf32> -> vector<32x128xf32>
    %c0_26 = arith.constant 0 : index
    %c0_27 = arith.constant 0 : index
    %47 = vector.load %arg10[%c0_26, %c0_27] : memref<1x128xf32, #tpu.memory_space<vmem>>, vector<1x128xf32>
    %48 = vector.broadcast %47 : vector<1x128xf32> to vector<32x128xf32>
    %49 = arith.addf %46, %48 : vector<32x128xf32>
    %c0_28 = arith.constant 0 : index
    %c0_29 = arith.constant 0 : index
    %50 = vector.load %arg11[%c0_28, %c0_29] : memref<1x128xf32, #tpu.memory_space<vmem>>, vector<1x128xf32>
    %51 = vector.broadcast %50 : vector<1x128xf32> to vector<32x128xf32>
    %52 = arith.mulf %51, %49 : vector<32x128xf32>
    %53 = arith.addf %7, %52 : vector<32x128xf32>
    %c0_30 = arith.constant 0 : index
    %c0_31 = arith.constant 0 : index
    %c0_32 = arith.constant 0 : index
    %54 = vector.load %arg12[%c0_30, %c0_31, %c0_32] : memref<1x32x128xf32, #tpu.memory_space<vmem>>, vector<1x32x128xf32>
    %55 = vector.shape_cast %54 : vector<1x32x128xf32> to vector<32x128xf32>
    %56 = vector.shape_cast %53 : vector<32x128xf32> to vector<1x32x128xf32>
    tpu.vector_store %arg12[%c0_30, %c0_31, %c0_32], %56 {strides = array<i32>} : memref<1x32x128xf32, #tpu.memory_space<vmem>>, vector<1x32x128xf32>,
    return
  }
  func.func @transform_0(%arg0: i32, %arg1: i32) -> (i32, i32, i32) {
    %c0_i32 = arith.constant 0 : i32
    %c0_i32_0 = arith.constant 0 : i32
    return %arg0, %arg1, %c0_i32 : i32, i32, i32
  }
  func.func @transform_1(%arg0: i32, %arg1: i32) -> (i32, i32, i32) {
    %c0_i32 = arith.constant 0 : i32
    %c0_i32_0 = arith.constant 0 : i32
    return %arg0, %arg1, %c0_i32 : i32, i32, i32
  }
  func.func @transform_2(%arg0: i32, %arg1: i32) -> (i32, i32) {
    %c0_i32 = arith.constant 0 : i32
    %c0_i32_0 = arith.constant 0 : i32
    %c0_i32_1 = arith.constant 0 : i32
    return %c0_i32, %c0_i32_0 : i32, i32
  }
  func.func @transform_3(%arg0: i32, %arg1: i32) -> (i32, i32) {
    %c0_i32 = arith.constant 0 : i32
    %c0_i32_0 = arith.constant 0 : i32
    %c0_i32_1 = arith.constant 0 : i32
    return %c0_i32, %c0_i32_0 : i32, i32
  }
  func.func @transform_4(%arg0: i32, %arg1: i32) -> (i32, i32) {
    %c0_i32 = arith.constant 0 : i32
    %c0_i32_0 = arith.constant 0 : i32
    %c0_i32_1 = arith.constant 0 : i32
    return %c0_i32, %c0_i32_0 : i32, i32
  }
  func.func @transform_5(%arg0: i32, %arg1: i32) -> (i32, i32) {
    %c0_i32 = arith.constant 0 : i32
    %c0_i32_0 = arith.constant 0 : i32
    %c0_i32_1 = arith.constant 0 : i32
    return %c0_i32, %c0_i32_0 : i32, i32
  }
  func.func @transform_6(%arg0: i32, %arg1: i32) -> (i32, i32) {
    %c0_i32 = arith.constant 0 : i32
    %c0_i32_0 = arith.constant 0 : i32
    %c0_i32_1 = arith.constant 0 : i32
    return %c0_i32, %c0_i32_0 : i32, i32
  }
  func.func @transform_7(%arg0: i32, %arg1: i32) -> (i32, i32) {
    %c0_i32 = arith.constant 0 : i32
    %c0_i32_0 = arith.constant 0 : i32
    %c0_i32_1 = arith.constant 0 : i32
    return %c0_i32, %c0_i32_0 : i32, i32
  }
  func.func @transform_8(%arg0: i32, %arg1: i32) -> (i32, i32) {
    %c0_i32 = arith.constant 0 : i32
    %c0_i32_0 = arith.constant 0 : i32
    %c0_i32_1 = arith.constant 0 : i32
    return %c0_i32, %c0_i32_0 : i32, i32
  }
  func.func @transform_9(%arg0: i32, %arg1: i32) -> (i32, i32) {
    %c0_i32 = arith.constant 0 : i32
    %c0_i32_0 = arith.constant 0 : i32
    %c0_i32_1 = arith.constant 0 : i32
    return %c0_i32, %c0_i32_0 : i32, i32
  }
  func.func @transform_10(%arg0: i32, %arg1: i32) -> (i32, i32, i32) {
    %c0_i32 = arith.constant 0 : i32
    %c0_i32_0 = arith.constant 0 : i32
    return %arg0, %arg1, %c0_i32 : i32, i32, i32
  }
}

</mosaic_0001>

<llo_original>
// kernel: mul.9
$region0: #{mul.9}
  #allocation0 [shape = 's32[1]{0}', space=sflag, size = 0x4, scoped, tag = 'scoped memory for mul.9']
  %s0 = inlined_call_operand.vmem [shape: f32[1,384], index: 0, kind: input, shape index: {}]
  %s1 = inlined_call_operand.vmem [shape: f32[1,384], index: 1, kind: input, shape index: {}]
  %s2 = inlined_call_operand.vmem [shape: f32[1,384], index: 2, kind: output, shape index: {}]
  %v3 = vld [vmem:[%s0] sm:$0x1]
  %v4 = vld [vmem:[%s1] sm:$0x1]
  %5 = xla_tuple %v3, %v4
  %6 = xla_tuple %5
  %v7 = vmul.f32 %v3, %v4
  %8 = xla_tuple %v7
  %9 = vst [vmem:[%s2] sm:$0x1] %v7
  %s10 = scalar_lea.vmem %s0, 1
  %v11 = vld [vmem:[%s10] sm:$0x1]
  %s12 = scalar_lea.vmem %s1, 1
  %v13 = vld [vmem:[%s12] sm:$0x1]
  %14 = xla_tuple %v11, %v13
  %15 = xla_tuple %14
  %v16 = vmul.f32 %v11, %v13
  %17 = xla_tuple %v16
  %s18 = scalar_lea.vmem %s2, 1
  %19 = vst [vmem:[%s18] sm:$0x1] %v16
  %s20 = scalar_lea.vmem %s0, 2
  %v21 = vld [vmem:[%s20] sm:$0x1]
  %s22 = scalar_lea.vmem %s1, 2
  %v23 = vld [vmem:[%s22] sm:$0x1]
  %24 = xla_tuple %v21, %v23
  %25 = xla_tuple %24
  %v26 = vmul.f32 %v21, %v23
  %27 = xla_tuple %v26
  %s28 = scalar_lea.vmem %s2, 2
  %29 = vst [vmem:[%s28] sm:$0x1] %v26

// kernel: block_forward.3
$region0: #{block_forward.3}
  #allocation0 [shape = 'u32[]', space=smem, size = 0x4, offset = 0x4, fixed_abs, tag = 'smem constant byte address 0x4 - core index']
  #allocation1 [shape = 'u32[72,128]{1,0:T(1,128)}', space=vmem, size = 0x9000, scoped, tag = 'internal scratch']
  %s0 = inlined_call_operand.vmem [shape: f32[2,32,128], index: 0, kind: input, shape index: {}]
  %s1 = inlined_call_operand.vmem [shape: f32[1,128], index: 1, kind: input, shape index: {}]
  %s2 = inlined_call_operand.vmem [shape: f32[1,128], index: 2, kind: input, shape index: {}]
  %s3 = inlined_call_operand.vmem [shape: f32[128,384], index: 3, kind: input, shape index: {}]
  %s4 = inlined_call_operand.vmem [shape: f32[1,384], index: 4, kind: input, shape index: {}]
  %s5 = inlined_call_operand.vmem [shape: f32[2,32,384], index: 5, kind: output, shape index: {}]
  %s6 = sld [smem:[#allocation0]]
  $region53: #{block_forward.3} parent=0
    _
  %s8 = ssub.s32 1, %s6
  %s9 = scalar_select 0, %s8, %s6
  loop: start=0, step=1, limit=4
  $region2: #{block_forward.3} parent=0 // loop_pre_header
    _
  $region3: #{block_forward.3} parent=0 // loop_header
    %s11 = sphi 0, %s15
    %p12 = scmp.ge.s32.totalorder %s11, 4
    %s18 = sphi 0, %s30
    %s19 = sphi 0, %s26
    %s20 = sphi 0, %s18
    %s21 = sphi 0, %s19
    %s22 = sphi 0, %s20
    %s23 = sphi 0, %s21
    %s35 = sphi 0, %s37
    %s38 = sphi 0, %s35
    %s39 = sphi 0, %s38
    %s55 = sphi 0, %s39
    %s59 = sphi 0, %s59
    %s61 = sphi 0, %s59
    %s62 = sphi 0, %s61
    %s76 = sphi 0, %s62
    %s80 = sphi 0, %s80
    %s82 = sphi 0, %s80
    %s83 = sphi 0, %s82
    %s97 = sphi 0, %s83
    %s101 = sphi 0, %s101
    %s103 = sphi 0, %s101
    %s104 = sphi 0, %s103
    %s118 = sphi 0, %s104
    %s122 = sphi 0, %s122
    %s124 = sphi 0, %s122
    %s125 = sphi 0, %s124
    %s139 = sphi 0, %s125
    %s147 = sphi 0, %s149
    %s150 = sphi 0, %s147
    %s151 = sphi 0, %s150
    %s167 = sphi 0, %s151
  $region4: #{block_forward.3} parent=0 // loop_header_branch
    %14 = sbr.rel (%p12) target = $region8
  $region5: #{block_forward.3} parent=0 // loop_body
    %s16 = ssub.s32 %s11, 1
    %s17 = ssub.s32 %s11, 2
    %s24 = sadd.s32 1, %s19
    %p25 = scmp.ge.s32.totalorder %s24, 1
    %s26 = scalar_select %p25, 0, %s24
    %s27 = sadd.s32 1, %s18
    %s28 = scalar_select %p25, %s27, %s18
    %p29 = scmp.ge.s32.totalorder %s28, 2
    %s30 = scalar_select %p29, 0, %s28
    %s31 = ssub.s32 %s18, %s30
    %s32 = ssub.s32 %s19, %s26
    %s33 = sor.u32 %s31, %s32
    %p34 = scmp.eq.s32.totalorder %s33, 0
    %s36 = sadd.s32 %s35, 1
    %s37 = scalar_select %p34, %s35, %s36
    %p40 = pneg %p34
    %p41 = scmp.eq.s32.totalorder %s11, 1
    %p42 = por %p40, %p41
    %p43 = scmp.ne.s32.totalorder %s35, %s38
    %p44 = scmp.eq.s32.totalorder %s11, 0
    %p45 = por %p43, %p44
    %p46 = scmp.ne.s32.totalorder %s35, %s38
    %p47 = scmp.eq.s32.totalorder %s16, 1
    %p48 = por %p46, %p47
    %p49 = scmp.ne.s32.totalorder %s38, %s39
    %p50 = scmp.eq.s32.totalorder %s16, 0
    %p51 = por %p49, %p50
    %p52 = scmp.ne.s32.totalorder %s38, %s39
    %p53 = scmp.eq.s32.totalorder %s17, 1
    %p54 = por %p52, %p53
    %p56 = scmp.ne.s32.totalorder %s39, %s55
    %p57 = scmp.eq.s32.totalorder %s17, 0
    %p58 = por %p56, %p57
    %s60 = sadd.s32 %s59, 1
    %p63 = scmp.eq.s32.totalorder %s11, 1
    %p64 = scmp.ne.s32.totalorder %s59, %s61
    %p65 = scmp.eq.s32.totalorder %s11, 0
    %p66 = por %p64, %p65
    %p67 = scmp.ne.s32.totalorder %s59, %s61
    %p68 = scmp.eq.s32.totalorder %s16, 1
    %p69 = por %p67, %p68
    %p70 = scmp.ne.s32.totalorder %s61, %s62
    %p71 = scmp.eq.s32.totalorder %s16, 0
    %p72 = por %p70, %p71
    %p73 = scmp.ne.s32.totalorder %s61, %s62
    %p74 = scmp.eq.s32.totalorder %s17, 1
    %p75 = por %p73, %p74
    %p77 = scmp.ne.s32.totalorder %s62, %s76
    %p78 = scmp.eq.s32.totalorder %s17, 0
    %p79 = por %p77, %p78
    %s81 = sadd.s32 %s80, 1
    %p84 = scmp.eq.s32.totalorder %s11, 1
    %p85 = scmp.ne.s32.totalorder %s80, %s82
    %p86 = scmp.eq.s32.totalorder %s11, 0
    %p87 = por %p85, %p86
    %p88 = scmp.ne.s32.totalorder %s80, %s82
    %p89 = scmp.eq.s32.totalorder %s16, 1
    %p90 = por %p88, %p89
    %p91 = scmp.ne.s32.totalorder %s82, %s83
    %p92 = scmp.eq.s32.totalorder %s16, 0
    %p93 = por %p91, %p92
    %p94 = scmp.ne.s32.totalorder %s82, %s83
    %p95 = scmp.eq.s32.totalorder %s17, 1
    %p96 = por %p94, %p95
    %p98 = scmp.ne.s32.totalorder %s83, %s97
    %p99 = scmp.eq.s32.totalorder %s17, 0
    %p100 = por %p98, %p99
    %s102 = sadd.s32 %s101, 1
    %p105 = scmp.eq.s32.totalorder %s11, 1
    %p106 = scmp.ne.s32.totalorder %s101, %s103
    %p107 = scmp.eq.s32.totalorder %s11, 0
    %p108 = por %p106, %p107
    %p109 = scmp.ne.s32.totalorder %s101, %s103
    %p110 = scmp.eq.s32.totalorder %s16, 1
    %p111 = por %p109, %p110
    %p112 = scmp.ne.s32.totalorder %s103, %s104
    %p113 = scmp.eq.s32.totalorder %s16, 0
    %p114 = por %p112, %p113
    %p115 = scmp.ne.s32.totalorder %s103, %s104
    %p116 = scmp.eq.s32.totalorder %s17, 1
    %p117 = por %p115, %p116
    %p119 = scmp.ne.s32.totalorder %s104, %s118
    %p120 = scmp.eq.s32.totalorder %s17, 0
    %p121 = por %p119, %p120
    %s123 = sadd.s32 %s122, 1
    %p126 = scmp.eq.s32.totalorder %s11, 1
    %p127 = scmp.ne.s32.totalorder %s122, %s124
    %p128 = scmp.eq.s32.totalorder %s11, 0
    %p129 = por %p127, %p128
    %p130 = scmp.ne.s32.totalorder %s122, %s124
    %p131 = scmp.eq.s32.totalorder %s16, 1
    %p132 = por %p130, %p131
    %p133 = scmp.ne.s32.totalorder %s124, %s125
    %p134 = scmp.eq.s32.totalorder %s16, 0
    %p135 = por %p133, %p134
    %p136 = scmp.ne.s32.totalorder %s124, %s125
    %p137 = scmp.eq.s32.totalorder %s17, 1
    %p138 = por %p136, %p137
    %p140 = scmp.ne.s32.totalorder %s125, %s139
    %p141 = scmp.eq.s32.totalorder %s17, 0
    %p142 = por %p140, %p141
    %s143 = ssub.s32 %s18, %s30
    %s144 = ssub.s32 %s19, %s26
    %s145 = sor.u32 %s143, %s144
    %p146 = scmp.eq.s32.totalorder %s145, 0
    %s148 = sadd.s32 %s147, 1
    %s149 = scalar_select %p146, %s147, %s148
    %p152 = pneg %p146
    %p153 = scmp.eq.s32.totalorder %s11, 1
    %p154 = por %p152, %p153
    %p155 = scmp.ne.s32.totalorder %s147, %s150
    %p156 = scmp.eq.s32.totalorder %s11, 0
    %p157 = por %p155, %p156
    %p158 = scmp.ne.s32.totalorder %s147, %s150
    %p159 = scmp.eq.s32.totalorder %s16, 1
    %p160 = por %p158, %p159
    %p161 = scmp.ne.s32.totalorder %s150, %s151
    %p162 = scmp.eq.s32.totalorder %s16, 0
    %p163 = por %p161, %p162
    %p164 = scmp.ne.s32.totalorder %s150, %s151
    %p165 = scmp.eq.s32.totalorder %s17, 1
    %p166 = por %p164, %p165
    %p168 = scmp.ne.s32.totalorder %s151, %s167
    %p169 = scmp.eq.s32.totalorder %s17, 0
    %p170 = por %p168, %p169
    %p171 = scmp.le.s32.totalorder 1, %s11
    %p172 = scmp.lt.s32.totalorder %s11, 3
    %p173 = pnand %p171, %p172
    %p174 = pneg %p173
    // Predicated region
    $region9: #{block_forward.3} parent=5 // pred_check
      _
    $region10: #{block_forward.3} parent=5 // pred_check_branch
      %176 = sbr.rel (%p173) target = $region12
    $region11: #{block_forward.3} parent=5 // pred_region
      %s177 = ssub.s32 %s11, 1
      // Predicated region
      $region13: #{block_forward.3} parent=11 // pred_check
        %p178 = pneg %p72
      $region14: #{block_forward.3} parent=11 // pred_check_branch
        %180 = sbr.rel (%p178) target = $region16
      $region15: #{block_forward.3} parent=11 // pred_region
        _
      $region16: #{block_forward.3} parent=11 // pred_fallthru
        _
      // Predicated region
      $region17: #{block_forward.3} parent=11 // pred_check
        %p181 = pneg %p93
      $region18: #{block_forward.3} parent=11 // pred_check_branch
        %183 = sbr.rel (%p181) target = $region20
      $region19: #{block_forward.3} parent=11 // pred_region
        _
      $region20: #{block_forward.3} parent=11 // pred_fallthru
        _
      // Predicated region
      $region21: #{block_forward.3} parent=11 // pred_check
        %p184 = pneg %p114
      $region22: #{block_forward.3} parent=11 // pred_check_branch
        %186 = sbr.rel (%p184) target = $region24
      $region23: #{block_forward.3} parent=11 // pred_region
        _
      $region24: #{block_forward.3} parent=11 // pred_fallthru
        _
      // Predicated region
      $region25: #{block_forward.3} parent=11 // pred_check
        %p187 = pneg %p135
      $region26: #{block_forward.3} parent=11 // pred_check_branch
        %189 = sbr.rel (%p187) target = $region28
      $region27: #{block_forward.3} parent=11 // pred_region
        _
      $region28: #{block_forward.3} parent=11 // pred_fallthru
        _
    $region12: #{block_forward.3} parent=5 // pred_fallthru
      _
    %p190 = scmp.lt.s32.totalorder %s11, 2
    // Predicated region
    $region29: #{block_forward.3} parent=5 // pred_check
      %p191 = pneg %p190
    $region30: #{block_forward.3} parent=5 // pred_check_branch
      %193 = sbr.rel (%p191) target = $region32
    $region31: #{block_forward.3} parent=5 // pred_region
      // Predicated region
      $region33: #{block_forward.3} parent=31 // pred_check
        %p194 = pneg %p45
      $region34: #{block_forward.3} parent=31 // pred_check_branch
        %196 = sbr.rel (%p194) target = $region36
      $region35: #{block_forward.3} parent=31 // pred_region
        %s197 = smul.u32 4, %s19
        %p198 = scmp.lt.s32.totalorder %s18, 1
        %s199 = scalar_select %p198, %s18, 1
        %p200 = scmp.lt.s32.totalorder %s197, 3
        %s201 = scalar_select %p200, %s197, 3
        %s202 = smul.addr %s199, 4
        %s203 = sadd.s32 %s201, %s202
        %s204 = smul.addr %s203, 8
        %s205 = scalar_lea.vmem %s0, %s204
        %s206 = smul.u32 4, %s19
      $region36: #{block_forward.3} parent=31 // pred_fallthru
        _
    $region32: #{block_forward.3} parent=5 // pred_fallthru
      _
    %p207 = scmp.le.s32.totalorder 1, %s11
    %p208 = scmp.lt.s32.totalorder %s11, 3
    %p209 = pnand %p207, %p208
    %p210 = pneg %p209
    // Predicated region
    $region37: #{block_forward.3} parent=5 // pred_check
      _
    $region38: #{block_forward.3} parent=5 // pred_check_branch
      %212 = sbr.rel (%p209) target = $region40
    $region39: #{block_forward.3} parent=5 // pred_region
      %s213 = ssub.s32 %s11, 1
      %s214 = smul.u32 4, %s21
      %p215 = scmp.lt.s32.totalorder %s20, 1
      %s216 = scalar_select %p215, %s20, 1
      %p217 = scmp.lt.s32.totalorder %s214, 3
      %s218 = scalar_select %p217, %s214, 3
      %s219 = smul.addr %s216, 4
      %s220 = sadd.s32 %s218, %s219
      %s221 = smul.addr %s220, 8
      %s222 = scalar_lea.vmem %s0, %s221
      %p223 = pneg %p51
      %p224 = pneg %p48
      %p225 = pneg %p72
      %p226 = pneg %p69
      %p227 = pneg %p93
      %p228 = pneg %p90
      %p229 = pneg %p114
      %p230 = pneg %p111
      %p231 = pneg %p135
      %p232 = pneg %p132
      %p233 = pneg %p163
      %p234 = pneg %p160
      %s235 = smul.u32 4, %s21
      %p236 = scmp.lt.s32.totalorder %s20, 1
      %s237 = scalar_select %p236, %s20, 1
      %p238 = scmp.lt.s32.totalorder %s235, 3
      %s239 = scalar_select %p238, %s235, 3
      %s240 = smul.addr %s239, 3
      %s241 = smul.addr %s237, 12
      %s242 = sadd.s32 %s240, %s241
      %s243 = smul.addr %s242, 8
      %s244 = scalar_lea.vmem %s5, %s243
      %s245 = smul.u32 4, %s21
      %p246 = scmp.lt.s32.totalorder %s20, 1
      %s247 = scalar_select %p246, %s20, 1
      %p248 = scmp.lt.s32.totalorder %s245, 3
      %s249 = scalar_select %p248, %s245, 3
      %s250 = smul.addr %s247, 4
      %s251 = sadd.s32 %s249, %s250
      %s252 = smul.addr %s251, 8
      %s253 = scalar_lea.vmem %s0, %s252
      %s254 = smul.u32 4, %s21
      %s255 = smul.u32 4, %s21
      %p256 = scmp.lt.s32.totalorder %s20, 1
      %s257 = scalar_select %p256, %s20, 1
      %p258 = scmp.lt.s32.totalorder %s255, 3
      %s259 = scalar_select %p258, %s255, 3
      %s260 = smul.addr %s259, 3
      %s261 = smul.addr %s257, 12
      %s262 = sadd.s32 %s260, %s261
      %s263 = smul.addr %s262, 8
      %s264 = scalar_lea.vmem %s5, %s263
      %s265 = smul.u32 4, %s21
      %v266 = vld [vmem:[%s253] sm:$0xff]
      %v267 = vld [vmem:[%s253 + $0x8] sm:$0xff]
      %v268 = vld [vmem:[%s253 + $0x10] sm:$0xff]
      %v269 = vld [vmem:[%s253 + $0x18] sm:$0xff]
      %v270 = vld [vmem:[%s1] sm:$0x1]
      %v271 = vld [vmem:[%s2] sm:$0x1]
      %272 = vadd.xlane.f32.xlu0 %v266
      %v273 = vpop.xlane.xlu0 %272
      %274 = vadd.xlane.f32.xlu0 %v267
      %v275 = vpop.xlane.xlu0 %274
      %276 = vadd.xlane.f32.xlu0 %v268
      %v277 = vpop.xlane.xlu0 %276
      %278 = vadd.xlane.f32.xlu0 %v269
      %v279 = vpop.xlane.xlu0 %278
      %v280 = vrcp.pop 128.0
      %v281 = vmul.f32 128.0, %v280
      %v282 = vsub.f32 1.0, %v281
      %v283 = vmul.f32 %v280, %v282
      %v284 = vadd.f32 %v280, %v283
      %vm285 = vweird.f32 %v280
      %v286 = vsel %vm285, %v280, %v284
      %v287 = vmul.f32 %v273, %v286
      %v288 = vmul.f32 %v275, %v286
      %v289 = vmul.f32 %v277, %v286
      %v290 = vmul.f32 %v279, %v286
      %v291 = vsub.f32 %v266, %v287
      %v292 = vsub.f32 %v267, %v288
      %v293 = vsub.f32 %v268, %v289
      %v294 = vsub.f32 %v269, %v290
      %v295 = vmul.f32 %v291, %v291
      %v296 = vmul.f32 %v292, %v292
      %v297 = vmul.f32 %v293, %v293
      %v298 = vmul.f32 %v294, %v294
      %299 = vadd.xlane.f32.xlu0 %v295
      %v300 = vpop.xlane.xlu0 %299
      %301 = vadd.xlane.f32.xlu0 %v296
      %v302 = vpop.xlane.xlu0 %301
      %303 = vadd.xlane.f32.xlu0 %v297
      %v304 = vpop.xlane.xlu0 %303
      %305 = vadd.xlane.f32.xlu0 %v298
      %v306 = vpop.xlane.xlu0 %305
      %v307 = vmul.f32 %v300, %v286
      %v308 = vmul.f32 %v302, %v286
      %v309 = vmul.f32 %v304, %v286
      %v310 = vmul.f32 %v306, %v286
      %v311 = vadd.f32 %v307, 1e-05
      %v312 = vadd.f32 %v308, 1e-05
      %v313 = vadd.f32 %v309, 1e-05
      %v314 = vadd.f32 %v310, 1e-05
      %v315 = vrsqrt.pop %v311
      %v316 = vmul.f32 %v315, %v311
      %v317 = vmul.f32 %v316, %v315
      %v318 = vmul.f32 0.5, %v317
      %v319 = vsub.f32 1.5, %v318
      %v320 = vmul.f32 %v315, %v319
      %vm321 = vweird.f32 %v311
      %vm322 = vweird.f32 %v315
      %vm323 = vmor %vm321, %vm322
      %v324 = vsel %vm323, %v315, %v320
      %v325 = vrsqrt.pop %v312
      %v326 = vmul.f32 %v325, %v312
      %v327 = vmul.f32 %v326, %v325
      %v328 = vmul.f32 0.5, %v327
      %v329 = vsub.f32 1.5, %v328
      %v330 = vmul.f32 %v325, %v329
      %vm331 = vweird.f32 %v312
      %vm332 = vweird.f32 %v325
      %vm333 = vmor %vm331, %vm332
      %v334 = vsel %vm333, %v325, %v330
      %v335 = vrsqrt.pop %v313
      %v336 = vmul.f32 %v335, %v313
      %v337 = vmul.f32 %v336, %v335
      %v338 = vmul.f32 0.5, %v337
      %v339 = vsub.f32 1.5, %v338
      %v340 = vmul.f32 %v335, %v339
      %vm341 = vweird.f32 %v313
      %vm342 = vweird.f32 %v335
      %vm343 = vmor %vm341, %vm342
      %v344 = vsel %vm343, %v335, %v340
      %v345 = vrsqrt.pop %v314
      %v346 = vmul.f32 %v345, %v314
      %v347 = vmul.f32 %v346, %v345
      %v348 = vmul.f32 0.5, %v347
      %v349 = vsub.f32 1.5, %v348
      %v350 = vmul.f32 %v345, %v349
      %vm351 = vweird.f32 %v314
      %vm352 = vweird.f32 %v345
      %vm353 = vmor %vm351, %vm352
      %v354 = vsel %vm353, %v345, %v350
      %v355 = vmul.f32 %v291, %v324
      %v356 = vmul.f32 %v292, %v334
      %v357 = vmul.f32 %v293, %v344
      %v358 = vmul.f32 %v294, %v354
      %v360 = vperm.slane %v270, 0
      %v362 = vmul.f32 %v355, %v360
      %v363 = vmul.f32 %v356, %v360
      %v364 = vmul.f32 %v357, %v360
      %v365 = vmul.f32 %v358, %v360
      %v367 = vperm.slane %v271, 0
      %v369 = vadd.f32 %v362, %v367
      %v370 = vadd.f32 %v363, %v367
      %v371 = vadd.f32 %v364, %v367
      %v372 = vadd.f32 %v365, %v367
      %v373 = vld [vmem:[%s3] sm:$0xff]
      %v374 = vld [vmem:[%s3 + $0x8] sm:$0xff]
      %v375 = vld [vmem:[%s3 + $0x10] sm:$0xff]
      %v376 = vld [vmem:[%s3 + $0x18] sm:$0xff]
      %v377 = vld [vmem:[%s3 + $0x20] sm:$0xff]
      %v378 = vld [vmem:[%s3 + $0x28] sm:$0xff]
      %v379 = vld [vmem:[%s3 + $0x30] sm:$0xff]
      %v380 = vld [vmem:[%s3 + $0x38] sm:$0xff]
      %v381 = vld [vmem:[%s3 + $0x40] sm:$0xff]
      %v382 = vld [vmem:[%s3 + $0x48] sm:$0xff]
      %v383 = vld [vmem:[%s3 + $0x50] sm:$0xff]
      %v384 = vld [vmem:[%s3 + $0x58] sm:$0xff]
      %v385 = vld [vmem:[%s3 + $0x60] sm:$0xff]
      %v386 = vld [vmem:[%s3 + $0x68] sm:$0xff]
      %v387 = vld [vmem:[%s3 + $0x70] sm:$0xff]
      %v388 = vld [vmem:[%s3 + $0x78] sm:$0xff]
      %v389 = vld [vmem:[%s3 + $0x80] sm:$0xff]
      %v390 = vld [vmem:[%s3 + $0x88] sm:$0xff]
      %v391 = vld [vmem:[%s3 + $0x90] sm:$0xff]
      %v392 = vld [vmem:[%s3 + $0x98] sm:$0xff]
      %v393 = vld [vmem:[%s3 + $0xa0] sm:$0xff]
      %v394 = vld [vmem:[%s3 + $0xa8] sm:$0xff]
      %v395 = vld [vmem:[%s3 + $0xb0] sm:$0xff]
      %v396 = vld [vmem:[%s3 + $0xb8] sm:$0xff]
      %v397 = vld [vmem:[%s3 + $0xc0] sm:$0xff]
      %v398 = vld [vmem:[%s3 + $0xc8] sm:$0xff]
      %v399 = vld [vmem:[%s3 + $0xd0] sm:$0xff]
      %v400 = vld [vmem:[%s3 + $0xd8] sm:$0xff]
      %v401 = vld [vmem:[%s3 + $0xe0] sm:$0xff]
      %v402 = vld [vmem:[%s3 + $0xe8] sm:$0xff]
      %v403 = vld [vmem:[%s3 + $0xf0] sm:$0xff]
      %v404 = vld [vmem:[%s3 + $0xf8] sm:$0xff]
      %v405 = vld [vmem:[%s3 + $0x100] sm:$0xff]
      %v406 = vld [vmem:[%s3 + $0x108] sm:$0xff]
      %v407 = vld [vmem:[%s3 + $0x110] sm:$0xff]
      %v408 = vld [vmem:[%s3 + $0x118] sm:$0xff]
      %v409 = vld [vmem:[%s3 + $0x120] sm:$0xff]
      %v410 = vld [vmem:[%s3 + $0x128] sm:$0xff]
      %v411 = vld [vmem:[%s3 + $0x130] sm:$0xff]
      %v412 = vld [vmem:[%s3 + $0x138] sm:$0xff]
      %v413 = vld [vmem:[%s3 + $0x140] sm:$0xff]
      %v414 = vld [vmem:[%s3 + $0x148] sm:$0xff]
      %v415 = vld [vmem:[%s3 + $0x150] sm:$0xff]
      %v416 = vld [vmem:[%s3 + $0x158] sm:$0xff]
      %v417 = vld [vmem:[%s3 + $0x160] sm:$0xff]
      %v418 = vld [vmem:[%s3 + $0x168] sm:$0xff]
      %v419 = vld [vmem:[%s3 + $0x170] sm:$0xff]
      %v420 = vld [vmem:[%s3 + $0x178] sm:$0xff]
      %v421 = vld [vmem:[%s4] sm:$0x7]
      %v423 = vperm.slane %v421, 0
      %v424 = vperm.slane %v421, 1
      %v425 = vperm.slane %v421, 2
      %429 = vmatpush.msra.mxu0 %v418
      %430 = vmatpush.msra.mxu0 %v415
      %431 = vmatpush.msra.mxu0 %v412
      %432 = vmatpush.msra.mxu0 %v409
      %433 = vmatpush.msra.mxu0 %v406
      %434 = vmatpush.msra.mxu0 %v403
      %435 = vmatpush.msra.mxu0 %v400
      %436 = vmatpush.msra.mxu0 %v397
      %437 = vmatpush.msra.mxu0 %v394
      %438 = vmatpush.msra.mxu0 %v391
      %439 = vmatpush.msra.mxu0 %v388
      %440 = vmatpush.msra.mxu0 %v385
      %441 = vmatpush.msra.mxu0 %v382
      %442 = vmatpush.msra.mxu0 %v379
      %443 = vmatpush.msra.mxu0 %v376
      %444 = vmatpush.msra.mxu0 %v373
      %445 = vmatmul.f32.gmra.mxu0 %v369
      %v446 = vpop.f32.mrf.mxu0
      %v447 = vadd.f32 %v423, %v446
      %448 = vmatmul.f32.gmra.mxu0 %v370
      %v449 = vpop.f32.mrf.mxu0
      %v450 = vadd.f32 %v423, %v449
      %451 = vmatmul.f32.gmra.mxu0 %v371
      %v452 = vpop.f32.mrf.mxu0
      %v453 = vadd.f32 %v423, %v452
      %454 = vmatmul.f32.gmra.mxu0 %v372
      %v455 = vpop.f32.mrf.mxu0
      %v456 = vadd.f32 %v423, %v455
      %457 = vdwg.mxu0
      %458 = vmatpush.msra.mxu0 %v419
      %459 = vmatpush.msra.mxu0 %v416
      %460 = vmatpush.msra.mxu0 %v413
      %461 = vmatpush.msra.mxu0 %v410
      %462 = vmatpush.msra.mxu0 %v407
      %463 = vmatpush.msra.mxu0 %v404
      %464 = vmatpush.msra.mxu0 %v401
      %465 = vmatpush.msra.mxu0 %v398
      %466 = vmatpush.msra.mxu0 %v395
      %467 = vmatpush.msra.mxu0 %v392
      %468 = vmatpush.msra.mxu0 %v389
      %469 = vmatpush.msra.mxu0 %v386
      %470 = vmatpush.msra.mxu0 %v383
      %471 = vmatpush.msra.mxu0 %v380
      %472 = vmatpush.msra.mxu0 %v377
      %473 = vmatpush.msra.mxu0 %v374
      %474 = vmatmul.f32.gmra.mxu0 %v369
      %v475 = vpop.f32.mrf.mxu0
      %v476 = vadd.f32 %v424, %v475
      %477 = vmatmul.f32.gmra.mxu0 %v370
      %v478 = vpop.f32.mrf.mxu0
      %v479 = vadd.f32 %v424, %v478
      %480 = vmatmul.f32.gmra.mxu0 %v371
      %v481 = vpop.f32.mrf.mxu0
      %v482 = vadd.f32 %v424, %v481
      %483 = vmatmul.f32.gmra.mxu0 %v372
      %v484 = vpop.f32.mrf.mxu0
      %v485 = vadd.f32 %v424, %v484
      %486 = vdwg.mxu0
      %487 = vmatpush.msra.mxu0 %v420
      %488 = vmatpush.msra.mxu0 %v417
      %489 = vmatpush.msra.mxu0 %v414
      %490 = vmatpush.msra.mxu0 %v411
      %491 = vmatpush.msra.mxu0 %v408
      %492 = vmatpush.msra.mxu0 %v405
      %493 = vmatpush.msra.mxu0 %v402
      %494 = vmatpush.msra.mxu0 %v399
      %495 = vmatpush.msra.mxu0 %v396
      %496 = vmatpush.msra.mxu0 %v393
      %497 = vmatpush.msra.mxu0 %v390
      %498 = vmatpush.msra.mxu0 %v387
      %499 = vmatpush.msra.mxu0 %v384
      %500 = vmatpush.msra.mxu0 %v381
      %501 = vmatpush.msra.mxu0 %v378
      %502 = vmatpush.msra.mxu0 %v375
      %503 = vmatmul.f32.gmra.mxu0 %v369
      %v504 = vpop.f32.mrf.mxu0
      %v505 = vadd.f32 %v425, %v504
      %506 = vmatmul.f32.gmra.mxu0 %v370
      %v507 = vpop.f32.mrf.mxu0
      %v508 = vadd.f32 %v425, %v507
      %509 = vmatmul.f32.gmra.mxu0 %v371
      %v510 = vpop.f32.mrf.mxu0
      %v511 = vadd.f32 %v425, %v510
      %512 = vmatmul.f32.gmra.mxu0 %v372
      %v513 = vpop.f32.mrf.mxu0
      %v514 = vadd.f32 %v425, %v513
      %515 = vdwg.mxu0
      %516 = vst [vmem:[%s264] sm:$0xff] %v447
      %517 = vst [vmem:[%s264 + $0x8] sm:$0xff] %v476
      %518 = vst [vmem:[%s264 + $0x10] sm:$0xff] %v505
      %519 = vst [vmem:[%s264 + $0x18] sm:$0xff] %v450
      %520 = vst [vmem:[%s264 + $0x20] sm:$0xff] %v479
      %521 = vst [vmem:[%s264 + $0x28] sm:$0xff] %v508
      %522 = vst [vmem:[%s264 + $0x30] sm:$0xff] %v453
      %523 = vst [vmem:[%s264 + $0x38] sm:$0xff] %v482
      %524 = vst [vmem:[%s264 + $0x40] sm:$0xff] %v511
      %525 = vst [vmem:[%s264 + $0x48] sm:$0xff] %v456
      %526 = vst [vmem:[%s264 + $0x50] sm:$0xff] %v485
      %527 = vst [vmem:[%s264 + $0x58] sm:$0xff] %v514
      %s528 = smul.u32 4, %s21
      %p529 = scmp.lt.s32.totalorder %s20, 1
      %s530 = scalar_select %p529, %s20, 1
      %p531 = scmp.lt.s32.totalorder %s528, 3
      %s532 = scalar_select %p531, %s528, 3
      %s533 = smul.addr %s532, 3
      %s534 = smul.addr %s530, 12
      %s535 = sadd.s32 %s533, %s534
      %s536 = smul.addr %s535, 8
      %s537 = scalar_lea.vmem %s5, %s536
      // Predicated region
      $region41: #{block_forward.3} parent=39 // pred_check
        %p538 = pneg %p160
      $region42: #{block_forward.3} parent=39 // pred_check_branch
        %540 = sbr.rel (%p538) target = $region44
      $region43: #{block_forward.3} parent=39 // pred_region
        %s541 = smul.u32 4, %s21
      $region44: #{block_forward.3} parent=39 // pred_fallthru
        _
    $region40: #{block_forward.3} parent=5 // pred_fallthru
      _
    %p542 = scmp.le.s32.totalorder 2, %s11
    // Predicated region
    $region45: #{block_forward.3} parent=5 // pred_check
      %p543 = pneg %p542
    $region46: #{block_forward.3} parent=5 // pred_check_branch
      %545 = sbr.rel (%p543) target = $region48
    $region47: #{block_forward.3} parent=5 // pred_region
      %s546 = ssub.s32 %s11, 2
      // Predicated region
      $region49: #{block_forward.3} parent=47 // pred_check
        %p547 = pneg %p166
      $region50: #{block_forward.3} parent=47 // pred_check_branch
        %549 = sbr.rel (%p547) target = $region52
      $region51: #{block_forward.3} parent=47 // pred_region
        %s550 = smul.u32 4, %s23
        %p551 = scmp.lt.s32.totalorder %s22, 1
        %s552 = scalar_select %p551, %s22, 1
        %p553 = scmp.lt.s32.totalorder %s550, 3
        %s554 = scalar_select %p553, %s550, 3
        %s555 = smul.addr %s554, 3
        %s556 = smul.addr %s552, 12
        %s557 = sadd.s32 %s555, %s556
        %s558 = smul.addr %s557, 8
        %s559 = scalar_lea.vmem %s5, %s558
      $region52: #{block_forward.3} parent=47 // pred_fallthru
        _
    $region48: #{block_forward.3} parent=5 // pred_fallthru
      _
  $region6: #{block_forward.3} parent=0 // loop_footer
    %s15 = sadd.s32 1, %s11
  $region7: #{block_forward.3} parent=0 // loop_footer_branch
    %10 = sbr.rel target = $region3
  $region8: #{block_forward.3} parent=0 // loop_exit
    _

// kernel: block_forward.5
$region0: #{block_forward.5}
  #allocation0 [shape = 'u32[]', space=smem, size = 0x4, offset = 0x4, fixed_abs, tag = 'smem constant byte address 0x4 - core index']
  #allocation1 [shape = 'u32[72,128]{1,0:T(1,128)}', space=vmem, size = 0x9000, scoped, tag = 'internal scratch']
  %s0 = inlined_call_operand.vmem [shape: f32[2,32,128], index: 0, kind: input, shape index: {}]
  %s1 = inlined_call_operand.vmem [shape: f32[2,32,128], index: 1, kind: input, shape index: {}]
  %s2 = inlined_call_operand.vmem [shape: f32[1,128], index: 2, kind: input, shape index: {}]
  %s3 = inlined_call_operand.vmem [shape: f32[1,128], index: 3, kind: input, shape index: {}]
  %s4 = inlined_call_operand.vmem [shape: f32[1,128], index: 4, kind: input, shape index: {}]
  %s5 = inlined_call_operand.vmem [shape: f32[128,512], index: 5, kind: input, shape index: {}]
  %s6 = inlined_call_operand.vmem [shape: f32[1,512], index: 6, kind: input, shape index: {}]
  %s7 = inlined_call_operand.hbm [shape: f32[512,128], index: 7, kind: input, shape index: {}]
  %s8 = inlined_call_operand.vmem [shape: f32[1,128], index: 8, kind: input, shape index: {}]
  %s9 = inlined_call_operand.vmem [shape: f32[1,128], index: 9, kind: input, shape index: {}]
  %s10 = inlined_call_operand.hbm [shape: f32[2,32,128], index: 10, kind: output, shape index: {}]
  %s11 = sld [smem:[#allocation0]]
  $region77: #{block_forward.5} parent=0
    _
  %s13 = ssub.s32 1, %s11
  %s14 = scalar_select 0, %s13, %s11
  $region1: #{block_forward.5} parent=0
    #allocation2 [shape = 'u8[262144]{0}', space=vmem, size = 0x40000, scoped, tag = 'input window, operand 7, single buffered']
    #allocation3 [shape = 's32[2]{0}', space=sflag, size = 0x8, scoped, tag = 'scoped memory for block_forward.5']
    #allocation4 [shape = 's32[2]{0}', space=sflag, size = 0x8, scoped, tag = 'scoped memory for block_forward.5']
    #allocation5 [shape = 'u8[32768]{0}', space=vmem, size = 0x8000, scoped, tag = 'output window, operand 0']
    %15 = vsyncpa [#allocation3], 0
    %16 = vsyncpa [#allocation4], 0
    %s17 = scalar_lea.sflag [#allocation4], 1
    %18 = vsyncpa %s17, 0
    loop: start=0, step=1, limit=4
    $region2: #{block_forward.5} parent=1 // loop_pre_header
      _
    $region3: #{block_forward.5} parent=1 // loop_header
      %s20 = sphi 0, %s24
      %p21 = scmp.ge.s32.totalorder %s20, 4
      %s27 = sphi 0, %s39
      %s28 = sphi 0, %s35
      %s29 = sphi 0, %s27
      %s30 = sphi 0, %s28
      %s31 = sphi 0, %s29
      %s32 = sphi 0, %s30
      %s44 = sphi 0, %s46
      %s47 = sphi 0, %s44
      %s48 = sphi 0, %s47
      %s64 = sphi 0, %s48
      %s72 = sphi 0, %s74
      %s75 = sphi 0, %s72
      %s76 = sphi 0, %s75
      %s92 = sphi 0, %s76
      %s96 = sphi 0, %s96
      %s98 = sphi 0, %s96
      %s99 = sphi 0, %s98
      %s113 = sphi 0, %s99
      %s117 = sphi 0, %s117
      %s119 = sphi 0, %s117
      %s120 = sphi 0, %s119
      %s134 = sphi 0, %s120
      %s138 = sphi 0, %s138
      %s140 = sphi 0, %s138
      %s141 = sphi 0, %s140
      %s155 = sphi 0, %s141
      %s159 = sphi 0, %s159
      %s161 = sphi 0, %s159
      %s162 = sphi 0, %s161
      %s176 = sphi 0, %s162
      %s180 = sphi 0, %s180
      %s182 = sphi 0, %s180
      %s183 = sphi 0, %s182
      %s197 = sphi 0, %s183
      %s201 = sphi 0, %s201
      %s203 = sphi 0, %s201
      %s204 = sphi 0, %s203
      %s218 = sphi 0, %s204
      %s222 = sphi 0, %s222
      %s224 = sphi 0, %s222
      %s225 = sphi 0, %s224
      %s239 = sphi 0, %s225
      %s243 = sphi 0, %s243
      %s245 = sphi 0, %s243
      %s246 = sphi 0, %s245
      %s260 = sphi 0, %s246
      %s268 = sphi 0, %s270
      %s271 = sphi 0, %s268
      %s272 = sphi 0, %s271
      %s288 = sphi 0, %s272
    $region4: #{block_forward.5} parent=1 // loop_header_branch
      %23 = sbr.rel (%p21) target = $region8
    $region5: #{block_forward.5} parent=1 // loop_body
      %s25 = ssub.s32 %s20, 1
      %s26 = ssub.s32 %s20, 2
      %s33 = sadd.s32 1, %s28
      %p34 = scmp.ge.s32.totalorder %s33, 1
      %s35 = scalar_select %p34, 0, %s33
      %s36 = sadd.s32 1, %s27
      %s37 = scalar_select %p34, %s36, %s27
      %p38 = scmp.ge.s32.totalorder %s37, 2
      %s39 = scalar_select %p38, 0, %s37
      %s40 = ssub.s32 %s27, %s39
      %s41 = ssub.s32 %s28, %s35
      %s42 = sor.u32 %s40, %s41
      %p43 = scmp.eq.s32.totalorder %s42, 0
      %s45 = sadd.s32 %s44, 1
      %s46 = scalar_select %p43, %s44, %s45
      %p49 = pneg %p43
      %p50 = scmp.eq.s32.totalorder %s20, 1
      %p51 = por %p49, %p50
      %p52 = scmp.ne.s32.totalorder %s44, %s47
      %p53 = scmp.eq.s32.totalorder %s20, 0
      %p54 = por %p52, %p53
      %p55 = scmp.ne.s32.totalorder %s44, %s47
      %p56 = scmp.eq.s32.totalorder %s25, 1
      %p57 = por %p55, %p56
      %p58 = scmp.ne.s32.totalorder %s47, %s48
      %p59 = scmp.eq.s32.totalorder %s25, 0
      %p60 = por %p58, %p59
      %p61 = scmp.ne.s32.totalorder %s47, %s48
      %p62 = scmp.eq.s32.totalorder %s26, 1
      %p63 = por %p61, %p62
      %p65 = scmp.ne.s32.totalorder %s48, %s64
      %p66 = scmp.eq.s32.totalorder %s26, 0
      %p67 = por %p65, %p66
      %s68 = ssub.s32 %s27, %s39
      %s69 = ssub.s32 %s28, %s35
      %s70 = sor.u32 %s68, %s69
      %p71 = scmp.eq.s32.totalorder %s70, 0
      %s73 = sadd.s32 %s72, 1
      %s74 = scalar_select %p71, %s72, %s73
      %p77 = pneg %p71
      %p78 = scmp.eq.s32.totalorder %s20, 1
      %p79 = por %p77, %p78
      %p80 = scmp.ne.s32.totalorder %s72, %s75
      %p81 = scmp.eq.s32.totalorder %s20, 0
      %p82 = por %p80, %p81
      %p83 = scmp.ne.s32.totalorder %s72, %s75
      %p84 = scmp.eq.s32.totalorder %s25, 1
      %p85 = por %p83, %p84
      %p86 = scmp.ne.s32.totalorder %s75, %s76
      %p87 = scmp.eq.s32.totalorder %s25, 0
      %p88 = por %p86, %p87
      %p89 = scmp.ne.s32.totalorder %s75, %s76
      %p90 = scmp.eq.s32.totalorder %s26, 1
      %p91 = por %p89, %p90
      %p93 = scmp.ne.s32.totalorder %s76, %s92
      %p94 = scmp.eq.s32.totalorder %s26, 0
      %p95 = por %p93, %p94
      %s97 = sadd.s32 %s96, 1
      %p100 = scmp.eq.s32.totalorder %s20, 1
      %p101 = scmp.ne.s32.totalorder %s96, %s98
      %p102 = scmp.eq.s32.totalorder %s20, 0
      %p103 = por %p101, %p102
      %p104 = scmp.ne.s32.totalorder %s96, %s98
      %p105 = scmp.eq.s32.totalorder %s25, 1
      %p106 = por %p104, %p105
      %p107 = scmp.ne.s32.totalorder %s98, %s99
      %p108 = scmp.eq.s32.totalorder %s25, 0
      %p109 = por %p107, %p108
      %p110 = scmp.ne.s32.totalorder %s98, %s99
      %p111 = scmp.eq.s32.totalorder %s26, 1
      %p112 = por %p110, %p111
      %p114 = scmp.ne.s32.totalorder %s99, %s113
      %p115 = scmp.eq.s32.totalorder %s26, 0
      %p116 = por %p114, %p115
      %s118 = sadd.s32 %s117, 1
      %p121 = scmp.eq.s32.totalorder %s20, 1
      %p122 = scmp.ne.s32.totalorder %s117, %s119
      %p123 = scmp.eq.s32.totalorder %s20, 0
      %p124 = por %p122, %p123
      %p125 = scmp.ne.s32.totalorder %s117, %s119
      %p126 = scmp.eq.s32.totalorder %s25, 1
      %p127 = por %p125, %p126
      %p128 = scmp.ne.s32.totalorder %s119, %s120
      %p129 = scmp.eq.s32.totalorder %s25, 0
      %p130 = por %p128, %p129
      %p131 = scmp.ne.s32.totalorder %s119, %s120
      %p132 = scmp.eq.s32.totalorder %s26, 1
      %p133 = por %p131, %p132
      %p135 = scmp.ne.s32.totalorder %s120, %s134
      %p136 = scmp.eq.s32.totalorder %s26, 0
      %p137 = por %p135, %p136
      %s139 = sadd.s32 %s138, 1
      %p142 = scmp.eq.s32.totalorder %s20, 1
      %p143 = scmp.ne.s32.totalorder %s138, %s140
      %p144 = scmp.eq.s32.totalorder %s20, 0
      %p145 = por %p143, %p144
      %p146 = scmp.ne.s32.totalorder %s138, %s140
      %p147 = scmp.eq.s32.totalorder %s25, 1
      %p148 = por %p146, %p147
      %p149 = scmp.ne.s32.totalorder %s140, %s141
      %p150 = scmp.eq.s32.totalorder %s25, 0
      %p151 = por %p149, %p150
      %p152 = scmp.ne.s32.totalorder %s140, %s141
      %p153 = scmp.eq.s32.totalorder %s26, 1
      %p154 = por %p152, %p153
      %p156 = scmp.ne.s32.totalorder %s141, %s155
      %p157 = scmp.eq.s32.totalorder %s26, 0
      %p158 = por %p156, %p157
      %s160 = sadd.s32 %s159, 1
      %p163 = scmp.eq.s32.totalorder %s20, 1
      %p164 = scmp.ne.s32.totalorder %s159, %s161
      %p165 = scmp.eq.s32.totalorder %s20, 0
      %p166 = por %p164, %p165
      %p167 = scmp.ne.s32.totalorder %s159, %s161
      %p168 = scmp.eq.s32.totalorder %s25, 1
      %p169 = por %p167, %p168
      %p170 = scmp.ne.s32.totalorder %s161, %s162
      %p171 = scmp.eq.s32.totalorder %s25, 0
      %p172 = por %p170, %p171
      %p173 = scmp.ne.s32.totalorder %s161, %s162
      %p174 = scmp.eq.s32.totalorder %s26, 1
      %p175 = por %p173, %p174
      %p177 = scmp.ne.s32.totalorder %s162, %s176
      %p178 = scmp.eq.s32.totalorder %s26, 0
      %p179 = por %p177, %p178
      %s181 = sadd.s32 %s180, 1
      %p184 = scmp.eq.s32.totalorder %s20, 1
      %p185 = scmp.ne.s32.totalorder %s180, %s182
      %p186 = scmp.eq.s32.totalorder %s20, 0
      %p187 = por %p185, %p186
      %p188 = scmp.ne.s32.totalorder %s180, %s182
      %p189 = scmp.eq.s32.totalorder %s25, 1
      %p190 = por %p188, %p189
      %p191 = scmp.ne.s32.totalorder %s182, %s183
      %p192 = scmp.eq.s32.totalorder %s25, 0
      %p193 = por %p191, %p192
      %p194 = scmp.ne.s32.totalorder %s182, %s183
      %p195 = scmp.eq.s32.totalorder %s26, 1
      %p196 = por %p194, %p195
      %p198 = scmp.ne.s32.totalorder %s183, %s197
      %p199 = scmp.eq.s32.totalorder %s26, 0
      %p200 = por %p198, %p199
      %s202 = sadd.s32 %s201, 1
      %p205 = scmp.eq.s32.totalorder %s20, 1
      %p206 = scmp.ne.s32.totalorder %s201, %s203
      %p207 = scmp.eq.s32.totalorder %s20, 0
      %p208 = por %p206, %p207
      %p209 = scmp.ne.s32.totalorder %s201, %s203
      %p210 = scmp.eq.s32.totalorder %s25, 1
      %p211 = por %p209, %p210
      %p212 = scmp.ne.s32.totalorder %s203, %s204
      %p213 = scmp.eq.s32.totalorder %s25, 0
      %p214 = por %p212, %p213
      %p215 = scmp.ne.s32.totalorder %s203, %s204
      %p216 = scmp.eq.s32.totalorder %s26, 1
      %p217 = por %p215, %p216
      %p219 = scmp.ne.s32.totalorder %s204, %s218
      %p220 = scmp.eq.s32.totalorder %s26, 0
      %p221 = por %p219, %p220
      %s223 = sadd.s32 %s222, 1
      %p226 = scmp.eq.s32.totalorder %s20, 1
      %p227 = scmp.ne.s32.totalorder %s222, %s224
      %p228 = scmp.eq.s32.totalorder %s20, 0
      %p229 = por %p227, %p228
      %p230 = scmp.ne.s32.totalorder %s222, %s224
      %p231 = scmp.eq.s32.totalorder %s25, 1
      %p232 = por %p230, %p231
      %p233 = scmp.ne.s32.totalorder %s224, %s225
      %p234 = scmp.eq.s32.totalorder %s25, 0
      %p235 = por %p233, %p234
      %p236 = scmp.ne.s32.totalorder %s224, %s225
      %p237 = scmp.eq.s32.totalorder %s26, 1
      %p238 = por %p236, %p237
      %p240 = scmp.ne.s32.totalorder %s225, %s239
      %p241 = scmp.eq.s32.totalorder %s26, 0
      %p242 = por %p240, %p241
      %s244 = sadd.s32 %s243, 1
      %p247 = scmp.eq.s32.totalorder %s20, 1
      %p248 = scmp.ne.s32.totalorder %s243, %s245
      %p249 = scmp.eq.s32.totalorder %s20, 0
      %p250 = por %p248, %p249
      %p251 = scmp.ne.s32.totalorder %s243, %s245
      %p252 = scmp.eq.s32.totalorder %s25, 1
      %p253 = por %p251, %p252
      %p254 = scmp.ne.s32.totalorder %s245, %s246
      %p255 = scmp.eq.s32.totalorder %s25, 0
      %p256 = por %p254, %p255
      %p257 = scmp.ne.s32.totalorder %s245, %s246
      %p258 = scmp.eq.s32.totalorder %s26, 1
      %p259 = por %p257, %p258
      %p261 = scmp.ne.s32.totalorder %s246, %s260
      %p262 = scmp.eq.s32.totalorder %s26, 0
      %p263 = por %p261, %p262
      %s264 = ssub.s32 %s27, %s39
      %s265 = ssub.s32 %s28, %s35
      %s266 = sor.u32 %s264, %s265
      %p267 = scmp.eq.s32.totalorder %s266, 0
      %s269 = sadd.s32 %s268, 1
      %s270 = scalar_select %p267, %s268, %s269
      %p273 = pneg %p267
      %p274 = scmp.eq.s32.totalorder %s20, 1
      %p275 = por %p273, %p274
      %p276 = scmp.ne.s32.totalorder %s268, %s271
      %p277 = scmp.eq.s32.totalorder %s20, 0
      %p278 = por %p276, %p277
      %p279 = scmp.ne.s32.totalorder %s268, %s271
      %p280 = scmp.eq.s32.totalorder %s25, 1
      %p281 = por %p279, %p280
      %p282 = scmp.ne.s32.totalorder %s271, %s272
      %p283 = scmp.eq.s32.totalorder %s25, 0
      %p284 = por %p282, %p283
      %p285 = scmp.ne.s32.totalorder %s271, %s272
      %p286 = scmp.eq.s32.totalorder %s26, 1
      %p287 = por %p285, %p286
      %p289 = scmp.ne.s32.totalorder %s272, %s288
      %p290 = scmp.eq.s32.totalorder %s26, 0
      %p291 = por %p289, %p290
      %p292 = scmp.le.s32.totalorder 1, %s20
      %p293 = scmp.lt.s32.totalorder %s20, 3
      %p294 = pnand %p292, %p293
      %p295 = pneg %p294
      // Predicated region
      $region9: #{block_forward.5} parent=5 // pred_check
        _
      $region10: #{block_forward.5} parent=5 // pred_check_branch
        %297 = sbr.rel (%p294) target = $region12
      $region11: #{block_forward.5} parent=5 // pred_region
        %s298 = ssub.s32 %s20, 1
        // Predicated region
        $region13: #{block_forward.5} parent=11 // pred_check
          %p299 = pneg %p109
        $region14: #{block_forward.5} parent=11 // pred_check_branch
          %301 = sbr.rel (%p299) target = $region16
        $region15: #{block_forward.5} parent=11 // pred_region
          _
        $region16: #{block_forward.5} parent=11 // pred_fallthru
          _
        // Predicated region
        $region17: #{block_forward.5} parent=11 // pred_check
          %p302 = pneg %p130
        $region18: #{block_forward.5} parent=11 // pred_check_branch
          %304 = sbr.rel (%p302) target = $region20
        $region19: #{block_forward.5} parent=11 // pred_region
          _
        $region20: #{block_forward.5} parent=11 // pred_fallthru
          _
        // Predicated region
        $region21: #{block_forward.5} parent=11 // pred_check
          %p305 = pneg %p151
        $region22: #{block_forward.5} parent=11 // pred_check_branch
          %307 = sbr.rel (%p305) target = $region24
        $region23: #{block_forward.5} parent=11 // pred_region
          _
        $region24: #{block_forward.5} parent=11 // pred_fallthru
          _
        // Predicated region
        $region25: #{block_forward.5} parent=11 // pred_check
          %p308 = pneg %p172
        $region26: #{block_forward.5} parent=11 // pred_check_branch
          %310 = sbr.rel (%p308) target = $region28
        $region27: #{block_forward.5} parent=11 // pred_region
          _
        $region28: #{block_forward.5} parent=11 // pred_fallthru
          _
        // Predicated region
        $region29: #{block_forward.5} parent=11 // pred_check
          %p311 = pneg %p193
        $region30: #{block_forward.5} parent=11 // pred_check_branch
          %313 = sbr.rel (%p311) target = $region32
        $region31: #{block_forward.5} parent=11 // pred_region
          _
        $region32: #{block_forward.5} parent=11 // pred_fallthru
          _
        // Predicated region
        $region33: #{block_forward.5} parent=11 // pred_check
          %p314 = pneg %p214
        $region34: #{block_forward.5} parent=11 // pred_check_branch
          %316 = sbr.rel (%p314) target = $region36
        $region35: #{block_forward.5} parent=11 // pred_region
          %318 = vsyncadd [#allocation3], 0
          %s319 = sshll.u32 %s7, 4
          %s320 = int_to_ptr.hbm [resolvable:$true] %s319
          %s321 = sshll.u32 [#allocation2], 4
          %s322 = int_to_ptr.vmem [resolvable:$true] %s321
          %327 = dma.hbm_to_vmem [thread:$0]  %s320, 8192, %s322, [#allocation3], 128, 128, 8
        $region36: #{block_forward.5} parent=11 // pred_fallthru
          _
        // Predicated region
        $region37: #{block_forward.5} parent=11 // pred_check
          %p328 = pneg %p235
        $region38: #{block_forward.5} parent=11 // pred_check_branch
          %330 = sbr.rel (%p328) target = $region40
        $region39: #{block_forward.5} parent=11 // pred_region
          _
        $region40: #{block_forward.5} parent=11 // pred_fallthru
          _
        // Predicated region
        $region41: #{block_forward.5} parent=11 // pred_check
          %p331 = pneg %p256
        $region42: #{block_forward.5} parent=11 // pred_check_branch
          %333 = sbr.rel (%p331) target = $region44
        $region43: #{block_forward.5} parent=11 // pred_region
          _
        $region44: #{block_forward.5} parent=11 // pred_fallthru
          _
      $region12: #{block_forward.5} parent=5 // pred_fallthru
        _
      %p334 = scmp.lt.s32.totalorder %s20, 2
      // Predicated region
      $region45: #{block_forward.5} parent=5 // pred_check
        %p335 = pneg %p334
      $region46: #{block_forward.5} parent=5 // pred_check_branch
        %337 = sbr.rel (%p335) target = $region48
      $region47: #{block_forward.5} parent=5 // pred_region
        // Predicated region
        $region49: #{block_forward.5} parent=47 // pred_check
          %p338 = pneg %p54
        $region50: #{block_forward.5} parent=47 // pred_check_branch
          %340 = sbr.rel (%p338) target = $region52
        $region51: #{block_forward.5} parent=47 // pred_region
          %s341 = smul.u32 4, %s28
          %p342 = scmp.lt.s32.totalorder %s27, 1
          %s343 = scalar_select %p342, %s27, 1
          %p344 = scmp.lt.s32.totalorder %s341, 3
          %s345 = scalar_select %p344, %s341, 3
          %s346 = smul.addr %s343, 4
          %s347 = sadd.s32 %s345, %s346
          %s348 = smul.addr %s347, 8
          %s349 = scalar_lea.vmem %s0, %s348
          %s350 = smul.u32 4, %s28
        $region52: #{block_forward.5} parent=47 // pred_fallthru
          _
        // Predicated region
        $region53: #{block_forward.5} parent=47 // pred_check
          %p351 = pneg %p82
        $region54: #{block_forward.5} parent=47 // pred_check_branch
          %353 = sbr.rel (%p351) target = $region56
        $region55: #{block_forward.5} parent=47 // pred_region
          %s354 = smul.u32 4, %s28
          %p355 = scmp.lt.s32.totalorder %s27, 1
          %s356 = scalar_select %p355, %s27, 1
          %p357 = scmp.lt.s32.totalorder %s354, 3
          %s358 = scalar_select %p357, %s354, 3
          %s359 = smul.addr %s356, 4
          %s360 = sadd.s32 %s358, %s359
          %s361 = smul.addr %s360, 8
          %s362 = scalar_lea.vmem %s1, %s361
          %s363 = smul.u32 4, %s28
        $region56: #{block_forward.5} parent=47 // pred_fallthru
          _
      $region48: #{block_forward.5} parent=5 // pred_fallthru
        _
      %p364 = scmp.le.s32.totalorder 1, %s20
      %p365 = scmp.lt.s32.totalorder %s20, 3
      %p366 = pnand %p364, %p365
      %p367 = pneg %p366
      // Predicated region
      $region57: #{block_forward.5} parent=5 // pred_check
        _
      $region58: #{block_forward.5} parent=5 // pred_check_branch
        %369 = sbr.rel (%p366) target = $region60
      $region59: #{block_forward.5} parent=5 // pred_region
        %s370 = ssub.s32 %s20, 1
        // Predicated region
        $region61: #{block_forward.5} parent=59 // pred_check
          %p371 = pneg %p214
        $region62: #{block_forward.5} parent=59 // pred_check_branch
          %373 = sbr.rel (%p371) target = $region64
        $region63: #{block_forward.5} parent=59 // pred_region
          %375 = dma.done [#allocation3], 8192
        $region64: #{block_forward.5} parent=59 // pred_fallthru
          _
        %s376 = smul.u32 4, %s30
        %p377 = scmp.lt.s32.totalorder %s29, 1
        %s378 = scalar_select %p377, %s29, 1
        %p379 = scmp.lt.s32.totalorder %s376, 3
        %s380 = scalar_select %p379, %s376, 3
        %s381 = smul.addr %s378, 4
        %s382 = sadd.s32 %s380, %s381
        %s383 = smul.addr %s382, 8
        %s384 = scalar_lea.vmem %s0, %s383
        %p385 = pneg %p60
        %p386 = pneg %p57
        %s387 = smul.u32 4, %s30
        %p388 = scmp.lt.s32.totalorder %s29, 1
        %s389 = scalar_select %p388, %s29, 1
        %p390 = scmp.lt.s32.totalorder %s387, 3
        %s391 = scalar_select %p390, %s387, 3
        %s392 = smul.addr %s389, 4
        %s393 = sadd.s32 %s391, %s392
        %s394 = smul.addr %s393, 8
        %s395 = scalar_lea.vmem %s1, %s394
        %p396 = pneg %p88
        %p397 = pneg %p85
        %p398 = pneg %p109
        %p399 = pneg %p106
        %p400 = pneg %p130
        %p401 = pneg %p127
        %p402 = pneg %p151
        %p403 = pneg %p148
        %p404 = pneg %p172
        %p405 = pneg %p169
        %p406 = pneg %p193
        %p407 = pneg %p190
        %p408 = pneg %p214
        %p409 = pneg %p211
        %p410 = pneg %p235
        %p411 = pneg %p232
        %p412 = pneg %p256
        %p413 = pneg %p253
        %p414 = pneg %p284
        %p415 = pneg %p281
        %s416 = sand.u32 %s271, 1
        %s417 = scalar_lea.sflag [#allocation4], %s416
        %s418 = sand.u32 %s271, 1
        %s419 = smul.addr %s418, 32
        %s420 = scalar_lea.vmem [#allocation5], %s419
        %s421 = smul.u32 4, %s30
        %p422 = scmp.lt.s32.totalorder %s29, 1
        %s423 = scalar_select %p422, %s29, 1
        %p424 = scmp.lt.s32.totalorder %s421, 3
        %s425 = scalar_select %p424, %s421, 3
        %s426 = smul.addr %s423, 4
        %s427 = sadd.s32 %s425, %s426
        %s428 = smul.addr %s427, 8
        %s429 = scalar_lea.vmem %s0, %s428
        %s430 = smul.u32 4, %s30
        %s431 = smul.u32 4, %s30
        %p432 = scmp.lt.s32.totalorder %s29, 1
        %s433 = scalar_select %p432, %s29, 1
        %p434 = scmp.lt.s32.totalorder %s431, 3
        %s435 = scalar_select %p434, %s431, 3
        %s436 = smul.addr %s433, 4
        %s437 = sadd.s32 %s435, %s436
        %s438 = smul.addr %s437, 8
        %s439 = scalar_lea.vmem %s1, %s438
        %s440 = smul.u32 4, %s30
        %s441 = smul.u32 4, %s30
        %v442 = vld [vmem:[%s429] sm:$0xff]
        %v443 = vld [vmem:[%s429 + $0x8] sm:$0xff]
        %v444 = vld [vmem:[%s429 + $0x10] sm:$0xff]
        %v445 = vld [vmem:[%s429 + $0x18] sm:$0xff]
        %v446 = vld [vmem:[%s2] sm:$0x1]
        %v447 = vld [vmem:[%s439] sm:$0xff]
        %v448 = vld [vmem:[%s439 + $0x8] sm:$0xff]
        %v449 = vld [vmem:[%s439 + $0x10] sm:$0xff]
        %v450 = vld [vmem:[%s439 + $0x18] sm:$0xff]
        %v452 = vperm.slane %v446, 0
        %v454 = vmul.f32 %v452, %v447
        %v455 = vmul.f32 %v452, %v448
        %v456 = vmul.f32 %v452, %v449
        %v457 = vmul.f32 %v452, %v450
        %v458 = vadd.f32 %v442, %v454
        %v459 = vadd.f32 %v443, %v455
        %v460 = vadd.f32 %v444, %v456
        %v461 = vadd.f32 %v445, %v457
        %v462 = vld [vmem:[%s3] sm:$0x1]
        %v463 = vld [vmem:[%s4] sm:$0x1]
        %464 = vadd.xlane.f32.xlu0 %v458
        %v465 = vpop.xlane.xlu0 %464
        %466 = vadd.xlane.f32.xlu0 %v459
        %v467 = vpop.xlane.xlu0 %466
        %468 = vadd.xlane.f32.xlu0 %v460
        %v469 = vpop.xlane.xlu0 %468
        %470 = vadd.xlane.f32.xlu0 %v461
        %v471 = vpop.xlane.xlu0 %470
        %v472 = vrcp.pop 128.0
        %v473 = vmul.f32 128.0, %v472
        %v474 = vsub.f32 1.0, %v473
        %v475 = vmul.f32 %v472, %v474
        %v476 = vadd.f32 %v472, %v475
        %vm477 = vweird.f32 %v472
        %v478 = vsel %vm477, %v472, %v476
        %v479 = vmul.f32 %v465, %v478
        %v480 = vmul.f32 %v467, %v478
        %v481 = vmul.f32 %v469, %v478
        %v482 = vmul.f32 %v471, %v478
        %v483 = vsub.f32 %v458, %v479
        %v484 = vsub.f32 %v459, %v480
        %v485 = vsub.f32 %v460, %v481
        %v486 = vsub.f32 %v461, %v482
        %v487 = vmul.f32 %v483, %v483
        %v488 = vmul.f32 %v484, %v484
        %v489 = vmul.f32 %v485, %v485
        %v490 = vmul.f32 %v486, %v486
        %491 = vadd.xlane.f32.xlu0 %v487
        %v492 = vpop.xlane.xlu0 %491
        %493 = vadd.xlane.f32.xlu0 %v488
        %v494 = vpop.xlane.xlu0 %493
        %495 = vadd.xlane.f32.xlu0 %v489
        %v496 = vpop.xlane.xlu0 %495
        %497 = vadd.xlane.f32.xlu0 %v490
        %v498 = vpop.xlane.xlu0 %497
        %v499 = vmul.f32 %v492, %v478
        %v500 = vmul.f32 %v494, %v478
        %v501 = vmul.f32 %v496, %v478
        %v502 = vmul.f32 %v498, %v478
        %v503 = vadd.f32 %v499, 1e-05
        %v504 = vadd.f32 %v500, 1e-05
        %v505 = vadd.f32 %v501, 1e-05
        %v506 = vadd.f32 %v502, 1e-05
        %v507 = vrsqrt.pop %v503
        %v508 = vmul.f32 %v507, %v503
        %v509 = vmul.f32 %v508, %v507
        %v510 = vmul.f32 0.5, %v509
        %v511 = vsub.f32 1.5, %v510
        %v512 = vmul.f32 %v507, %v511
        %vm513 = vweird.f32 %v503
        %vm514 = vweird.f32 %v507
        %vm515 = vmor %vm513, %vm514
        %v516 = vsel %vm515, %v507, %v512
        %v517 = vrsqrt.pop %v504
        %v518 = vmul.f32 %v517, %v504
        %v519 = vmul.f32 %v518, %v517
        %v520 = vmul.f32 0.5, %v519
        %v521 = vsub.f32 1.5, %v520
        %v522 = vmul.f32 %v517, %v521
        %vm523 = vweird.f32 %v504
        %vm524 = vweird.f32 %v517
        %vm525 = vmor %vm523, %vm524
        %v526 = vsel %vm525, %v517, %v522
        %v527 = vrsqrt.pop %v505
        %v528 = vmul.f32 %v527, %v505
        %v529 = vmul.f32 %v528, %v527
        %v530 = vmul.f32 0.5, %v529
        %v531 = vsub.f32 1.5, %v530
        %v532 = vmul.f32 %v527, %v531
        %vm533 = vweird.f32 %v505
        %vm534 = vweird.f32 %v527
        %vm535 = vmor %vm533, %vm534
        %v536 = vsel %vm535, %v527, %v532
        %v537 = vrsqrt.pop %v506
        %v538 = vmul.f32 %v537, %v506
        %v539 = vmul.f32 %v538, %v537
        %v540 = vmul.f32 0.5, %v539
        %v541 = vsub.f32 1.5, %v540
        %v542 = vmul.f32 %v537, %v541
        %vm543 = vweird.f32 %v506
        %vm544 = vweird.f32 %v537
        %vm545 = vmor %vm543, %vm544
        %v546 = vsel %vm545, %v537, %v542
        %v547 = vmul.f32 %v483, %v516
        %v548 = vmul.f32 %v484, %v526
        %v549 = vmul.f32 %v485, %v536
        %v550 = vmul.f32 %v486, %v546
        %v552 = vperm.slane %v462, 0
        %v554 = vmul.f32 %v547, %v552
        %v555 = vmul.f32 %v548, %v552
        %v556 = vmul.f32 %v549, %v552
        %v557 = vmul.f32 %v550, %v552
        %v559 = vperm.slane %v463, 0
        %v561 = vadd.f32 %v554, %v559
        %v562 = vadd.f32 %v555, %v559
        %v563 = vadd.f32 %v556, %v559
        %v564 = vadd.f32 %v557, %v559
        %v565 = vld [vmem:[%s5] sm:$0xff]
        %v566 = vld [vmem:[%s5 + $0x8] sm:$0xff]
        %v567 = vld [vmem:[%s5 + $0x10] sm:$0xff]
        %v568 = vld [vmem:[%s5 + $0x18] sm:$0xff]
        %v569 = vld [vmem:[%s5 + $0x20] sm:$0xff]
        %v570 = vld [vmem:[%s5 + $0x28] sm:$0xff]
        %v571 = vld [vmem:[%s5 + $0x30] sm:$0xff]
        %v572 = vld [vmem:[%s5 + $0x38] sm:$0xff]
        %v573 = vld [vmem:[%s5 + $0x40] sm:$0xff]
        %v574 = vld [vmem:[%s5 + $0x48] sm:$0xff]
        %v575 = vld [vmem:[%s5 + $0x50] sm:$0xff]
        %v576 = vld [vmem:[%s5 + $0x58] sm:$0xff]
        %v577 = vld [vmem:[%s5 + $0x60] sm:$0xff]
        %v578 = vld [vmem:[%s5 + $0x68] sm:$0xff]
        %v579 = vld [vmem:[%s5 + $0x70] sm:$0xff]
        %v580 = vld [vmem:[%s5 + $0x78] sm:$0xff]
        %v581 = vld [vmem:[%s5 + $0x80] sm:$0xff]
        %v582 = vld [vmem:[%s5 + $0x88] sm:$0xff]
        %v583 = vld [vmem:[%s5 + $0x90] sm:$0xff]
        %v584 = vld [vmem:[%s5 + $0x98] sm:$0xff]
        %v585 = vld [vmem:[%s5 + $0xa0] sm:$0xff]
        %v586 = vld [vmem:[%s5 + $0xa8] sm:$0xff]
        %v587 = vld [vmem:[%s5 + $0xb0] sm:$0xff]
        %v588 = vld [vmem:[%s5 + $0xb8] sm:$0xff]
        %v589 = vld [vmem:[%s5 + $0xc0] sm:$0xff]
        %v590 = vld [vmem:[%s5 + $0xc8] sm:$0xff]
        %v591 = vld [vmem:[%s5 + $0xd0] sm:$0xff]
        %v592 = vld [vmem:[%s5 + $0xd8] sm:$0xff]
        %v593 = vld [vmem:[%s5 + $0xe0] sm:$0xff]
        %v594 = vld [vmem:[%s5 + $0xe8] sm:$0xff]
        %v595 = vld [vmem:[%s5 + $0xf0] sm:$0xff]
        %v596 = vld [vmem:[%s5 + $0xf8] sm:$0xff]
        %v597 = vld [vmem:[%s5 + $0x100] sm:$0xff]
        %v598 = vld [vmem:[%s5 + $0x108] sm:$0xff]
        %v599 = vld [vmem:[%s5 + $0x110] sm:$0xff]
        %v600 = vld [vmem:[%s5 + $0x118] sm:$0xff]
        %v601 = vld [vmem:[%s5 + $0x120] sm:$0xff]
        %v602 = vld [vmem:[%s5 + $0x128] sm:$0xff]
        %v603 = vld [vmem:[%s5 + $0x130] sm:$0xff]
        %v604 = vld [vmem:[%s5 + $0x138] sm:$0xff]
        %v605 = vld [vmem:[%s5 + $0x140] sm:$0xff]
        %v606 = vld [vmem:[%s5 + $0x148] sm:$0xff]
        %v607 = vld [vmem:[%s5 + $0x150] sm:$0xff]
        %v608 = vld [vmem:[%s5 + $0x158] sm:$0xff]
        %v609 = vld [vmem:[%s5 + $0x160] sm:$0xff]
        %v610 = vld [vmem:[%s5 + $0x168] sm:$0xff]
        %v611 = vld [vmem:[%s5 + $0x170] sm:$0xff]
        %v612 = vld [vmem:[%s5 + $0x178] sm:$0xff]
        %v613 = vld [vmem:[%s5 + $0x180] sm:$0xff]
        %v614 = vld [vmem:[%s5 + $0x188] sm:$0xff]
        %v615 = vld [vmem:[%s5 + $0x190] sm:$0xff]
        %v616 = vld [vmem:[%s5 + $0x198] sm:$0xff]
        %v617 = vld [vmem:[%s5 + $0x1a0] sm:$0xff]
        %v618 = vld [vmem:[%s5 + $0x1a8] sm:$0xff]
        %v619 = vld [vmem:[%s5 + $0x1b0] sm:$0xff]
        %v620 = vld [vmem:[%s5 + $0x1b8] sm:$0xff]
        %v621 = vld [vmem:[%s5 + $0x1c0] sm:$0xff]
        %v622 = vld [vmem:[%s5 + $0x1c8] sm:$0xff]
        %v623 = vld [vmem:[%s5 + $0x1d0] sm:$0xff]
        %v624 = vld [vmem:[%s5 + $0x1d8] sm:$0xff]
        %v625 = vld [vmem:[%s5 + $0x1e0] sm:$0xff]
        %v626 = vld [vmem:[%s5 + $0x1e8] sm:$0xff]
        %v627 = vld [vmem:[%s5 + $0x1f0] sm:$0xff]
        %v628 = vld [vmem:[%s5 + $0x1f8] sm:$0xff]
        %v629 = vld [vmem:[%s6] sm:$0xf]
        %v631 = vperm.slane %v629, 0
        %v632 = vperm.slane %v629, 1
        %v633 = vperm.slane %v629, 2
        %v634 = vperm.slane %v629, 3
        %639 = vmatpush.msra.mxu0 %v625
        %640 = vmatpush.msra.mxu0 %v621
        %641 = vmatpush.msra.mxu0 %v617
        %642 = vmatpush.msra.mxu0 %v613
        %643 = vmatpush.msra.mxu0 %v609
        %644 = vmatpush.msra.mxu0 %v605
        %645 = vmatpush.msra.mxu0 %v601
        %646 = vmatpush.msra.mxu0 %v597
        %647 = vmatpush.msra.mxu0 %v593
        %648 = vmatpush.msra.mxu0 %v589
        %649 = vmatpush.msra.mxu0 %v585
        %650 = vmatpush.msra.mxu0 %v581
        %651 = vmatpush.msra.mxu0 %v577
        %652 = vmatpush.msra.mxu0 %v573
        %653 = vmatpush.msra.mxu0 %v569
        %654 = vmatpush.msra.mxu0 %v565
        %655 = vmatmul.f32.gmra.mxu0 %v561
        %v656 = vpop.f32.mrf.mxu0
        %v657 = vadd.f32 %v631, %v656
        %658 = vmatmul.f32.gmra.mxu0 %v562
        %v659 = vpop.f32.mrf.mxu0
        %v660 = vadd.f32 %v631, %v659
        %661 = vmatmul.f32.gmra.mxu0 %v563
        %v662 = vpop.f32.mrf.mxu0
        %v663 = vadd.f32 %v631, %v662
        %664 = vmatmul.f32.gmra.mxu0 %v564
        %v665 = vpop.f32.mrf.mxu0
        %v666 = vadd.f32 %v631, %v665
        %667 = vdwg.mxu0
        %668 = vmatpush.msra.mxu0 %v626
        %669 = vmatpush.msra.mxu0 %v622
        %670 = vmatpush.msra.mxu0 %v618
        %671 = vmatpush.msra.mxu0 %v614
        %672 = vmatpush.msra.mxu0 %v610
        %673 = vmatpush.msra.mxu0 %v606
        %674 = vmatpush.msra.mxu0 %v602
        %675 = vmatpush.msra.mxu0 %v598
        %676 = vmatpush.msra.mxu0 %v594
        %677 = vmatpush.msra.mxu0 %v590
        %678 = vmatpush.msra.mxu0 %v586
        %679 = vmatpush.msra.mxu0 %v582
        %680 = vmatpush.msra.mxu0 %v578
        %681 = vmatpush.msra.mxu0 %v574
        %682 = vmatpush.msra.mxu0 %v570
        %683 = vmatpush.msra.mxu0 %v566
        %684 = vmatmul.f32.gmra.mxu0 %v561
        %v685 = vpop.f32.mrf.mxu0
        %v686 = vadd.f32 %v632, %v685
        %687 = vmatmul.f32.gmra.mxu0 %v562
        %v688 = vpop.f32.mrf.mxu0
        %v689 = vadd.f32 %v632, %v688
        %690 = vmatmul.f32.gmra.mxu0 %v563
        %v691 = vpop.f32.mrf.mxu0
        %v692 = vadd.f32 %v632, %v691
        %693 = vmatmul.f32.gmra.mxu0 %v564
        %v694 = vpop.f32.mrf.mxu0
        %v695 = vadd.f32 %v632, %v694
        %696 = vdwg.mxu0
        %697 = vmatpush.msra.mxu0 %v627
        %698 = vmatpush.msra.mxu0 %v623
        %699 = vmatpush.msra.mxu0 %v619
        %700 = vmatpush.msra.mxu0 %v615
        %701 = vmatpush.msra.mxu0 %v611
        %702 = vmatpush.msra.mxu0 %v607
        %703 = vmatpush.msra.mxu0 %v603
        %704 = vmatpush.msra.mxu0 %v599
        %705 = vmatpush.msra.mxu0 %v595
        %706 = vmatpush.msra.mxu0 %v591
        %707 = vmatpush.msra.mxu0 %v587
        %708 = vmatpush.msra.mxu0 %v583
        %709 = vmatpush.msra.mxu0 %v579
        %710 = vmatpush.msra.mxu0 %v575
        %711 = vmatpush.msra.mxu0 %v571
        %712 = vmatpush.msra.mxu0 %v567
        %713 = vmatmul.f32.gmra.mxu0 %v561
        %v714 = vpop.f32.mrf.mxu0
        %v715 = vadd.f32 %v633, %v714
        %716 = vmatmul.f32.gmra.mxu0 %v562
        %v717 = vpop.f32.mrf.mxu0
        %v718 = vadd.f32 %v633, %v717
        %719 = vmatmul.f32.gmra.mxu0 %v563
        %v720 = vpop.f32.mrf.mxu0
        %v721 = vadd.f32 %v633, %v720
        %722 = vmatmul.f32.gmra.mxu0 %v564
        %v723 = vpop.f32.mrf.mxu0
        %v724 = vadd.f32 %v633, %v723
        %725 = vdwg.mxu0
        %726 = vmatpush.msra.mxu0 %v628
        %727 = vmatpush.msra.mxu0 %v624
        %728 = vmatpush.msra.mxu0 %v620
        %729 = vmatpush.msra.mxu0 %v616
        %730 = vmatpush.msra.mxu0 %v612
        %731 = vmatpush.msra.mxu0 %v608
        %732 = vmatpush.msra.mxu0 %v604
        %733 = vmatpush.msra.mxu0 %v600
        %734 = vmatpush.msra.mxu0 %v596
        %735 = vmatpush.msra.mxu0 %v592
        %736 = vmatpush.msra.mxu0 %v588
        %737 = vmatpush.msra.mxu0 %v584
        %738 = vmatpush.msra.mxu0 %v580
        %739 = vmatpush.msra.mxu0 %v576
        %740 = vmatpush.msra.mxu0 %v572
        %741 = vmatpush.msra.mxu0 %v568
        %742 = vmatmul.f32.gmra.mxu0 %v561
        %v743 = vpop.f32.mrf.mxu0
        %v744 = vadd.f32 %v634, %v743
        %745 = vmatmul.f32.gmra.mxu0 %v562
        %v746 = vpop.f32.mrf.mxu0
        %v747 = vadd.f32 %v634, %v746
        %748 = vmatmul.f32.gmra.mxu0 %v563
        %v749 = vpop.f32.mrf.mxu0
        %v750 = vadd.f32 %v634, %v749
        %751 = vmatmul.f32.gmra.mxu0 %v564
        %v752 = vpop.f32.mrf.mxu0
        %v753 = vadd.f32 %v634, %v752
        %754 = vdwg.mxu0
        %v755 = vmul.f32 %v657, 0.5
        %v756 = vmul.f32 %v686, 0.5
        %v757 = vmul.f32 %v715, 0.5
        %v758 = vmul.f32 %v744, 0.5
        %v759 = vmul.f32 %v660, 0.5
        %v760 = vmul.f32 %v689, 0.5
        %v761 = vmul.f32 %v718, 0.5
        %v762 = vmul.f32 %v747, 0.5
        %v763 = vmul.f32 %v663, 0.5
        %v764 = vmul.f32 %v692, 0.5
        %v765 = vmul.f32 %v721, 0.5
        %v766 = vmul.f32 %v750, 0.5
        %v767 = vmul.f32 %v666, 0.5
        %v768 = vmul.f32 %v695, 0.5
        %v769 = vmul.f32 %v724, 0.5
        %v770 = vmul.f32 %v753, 0.5
        %v771 = vmul.f32 %v657, 0.70710677
        %v772 = vmul.f32 %v686, 0.70710677
        %v773 = vmul.f32 %v715, 0.70710677
        %v774 = vmul.f32 %v744, 0.70710677
        %v775 = vmul.f32 %v660, 0.70710677
        %v776 = vmul.f32 %v689, 0.70710677
        %v777 = vmul.f32 %v718, 0.70710677
        %v778 = vmul.f32 %v747, 0.70710677
        %v779 = vmul.f32 %v663, 0.70710677
        %v780 = vmul.f32 %v692, 0.70710677
        %v781 = vmul.f32 %v721, 0.70710677
        %v782 = vmul.f32 %v750, 0.70710677
        %v783 = vmul.f32 %v666, 0.70710677
        %v784 = vmul.f32 %v695, 0.70710677
        %v785 = vmul.f32 %v724, 0.70710677
        %v786 = vmul.f32 %v753, 0.70710677
        %v787 = vmul.f32 %v771, %v771
        %v788 = vmin.f32 16.0, %v787
        %v789 = vmul.f32 %v788, 2.1237322e-06
        %v790 = vadd.f32 %v789, 0.00028619796
        %v791 = vmul.f32 %v788, %v790
        %v792 = vadd.f32 %v791, 0.0036580483
        %v793 = vmul.f32 %v788, %v792
        %v794 = vadd.f32 %v793, 0.05243302
        %v795 = vmul.f32 %v788, %v794
        %v796 = vadd.f32 %v795, 0.18741608
        %v797 = vmul.f32 %v788, %v796
        %v798 = vadd.f32 %v797, 1.1283791
        %v799 = vmul.f32 %v771, %v798
        %v800 = vmul.f32 %v788, 3.8918573e-05
        %v801 = vadd.f32 %v800, 0.001143296
        %v802 = vmul.f32 %v788, %v801
        %v803 = vadd.f32 %v802, 0.014752088
        %v804 = vmul.f32 %v788, %v803
        %v805 = vadd.f32 %v804, 0.112945676
        %v806 = vmul.f32 %v788, %v805
        %v807 = vadd.f32 %v806, 0.4994258
        %v808 = vmul.f32 %v788, %v807
        %v809 = vadd.f32 %v808, 1.0
        %v810 = vrcp.pop %v809
        %v811 = vmul.f32 %v809, %v810
        %v812 = vsub.f32 1.0, %v811
        %v813 = vmul.f32 %v810, %v812
        %v814 = vadd.f32 %v810, %v813
        %vm815 = vweird.f32 %v809
        %vm816 = vweird.f32 %v810
        %vm817 = vmor %vm815, %vm816
        %v818 = vsel %vm817, %v810, %v814
        %v819 = vand.u32 2147483647, %v809
        %vm820 = vcmp.eq.f32.partialorder %v819, 8.507059e+37
        %v821 = vand.u32 %v809, 2147483648
        %v822 = vor.u32 1.1754944e-38, %v821
        %v823 = vsel %vm820, %v822, %v818
        %v824 = vmul.f32 %v799, %v823
        %v825 = vmin.f32 %v824, 1.0
        %v826 = vmax.f32 %v825, -1.0
        %v827 = vmul.f32 %v772, %v772
        %v828 = vmin.f32 16.0, %v827
        %v829 = vmul.f32 %v828, 2.1237322e-06
        %v830 = vadd.f32 %v829, 0.00028619796
        %v831 = vmul.f32 %v828, %v830
        %v832 = vadd.f32 %v831, 0.0036580483
        %v833 = vmul.f32 %v828, %v832
        %v834 = vadd.f32 %v833, 0.05243302
        %v835 = vmul.f32 %v828, %v834
        %v836 = vadd.f32 %v835, 0.18741608
        %v837 = vmul.f32 %v828, %v836
        %v838 = vadd.f32 %v837, 1.1283791
        %v839 = vmul.f32 %v772, %v838
        %v840 = vmul.f32 %v828, 3.8918573e-05
        %v841 = vadd.f32 %v840, 0.001143296
        %v842 = vmul.f32 %v828, %v841
        %v843 = vadd.f32 %v842, 0.014752088
        %v844 = vmul.f32 %v828, %v843
        %v845 = vadd.f32 %v844, 0.112945676
        %v846 = vmul.f32 %v828, %v845
        %v847 = vadd.f32 %v846, 0.4994258
        %v848 = vmul.f32 %v828, %v847
        %v849 = vadd.f32 %v848, 1.0
        %v850 = vrcp.pop %v849
        %v851 = vmul.f32 %v849, %v850
        %v852 = vsub.f32 1.0, %v851
        %v853 = vmul.f32 %v850, %v852
        %v854 = vadd.f32 %v850, %v853
        %vm855 = vweird.f32 %v849
        %vm856 = vweird.f32 %v850
        %vm857 = vmor %vm855, %vm856
        %v858 = vsel %vm857, %v850, %v854
        %v859 = vand.u32 2147483647, %v849
        %vm860 = vcmp.eq.f32.partialorder %v859, 8.507059e+37
        %v861 = vand.u32 %v849, 2147483648
        %v862 = vor.u32 1.1754944e-38, %v861
        %v863 = vsel %vm860, %v862, %v858
        %v864 = vmul.f32 %v839, %v863
        %v865 = vmin.f32 %v864, 1.0
        %v866 = vmax.f32 %v865, -1.0
        %v867 = vmul.f32 %v773, %v773
        %v868 = vmin.f32 16.0, %v867
        %v869 = vmul.f32 %v868, 2.1237322e-06
        %v870 = vadd.f32 %v869, 0.00028619796
        %v871 = vmul.f32 %v868, %v870
        %v872 = vadd.f32 %v871, 0.0036580483
        %v873 = vmul.f32 %v868, %v872
        %v874 = vadd.f32 %v873, 0.05243302
        %v875 = vmul.f32 %v868, %v874
        %v876 = vadd.f32 %v875, 0.18741608
        %v877 = vmul.f32 %v868, %v876
        %v878 = vadd.f32 %v877, 1.1283791
        %v879 = vmul.f32 %v773, %v878
        %v880 = vmul.f32 %v868, 3.8918573e-05
        %v881 = vadd.f32 %v880, 0.001143296
        %v882 = vmul.f32 %v868, %v881
        %v883 = vadd.f32 %v882, 0.014752088
        %v884 = vmul.f32 %v868, %v883
        %v885 = vadd.f32 %v884, 0.112945676
        %v886 = vmul.f32 %v868, %v885
        %v887 = vadd.f32 %v886, 0.4994258
        %v888 = vmul.f32 %v868, %v887
        %v889 = vadd.f32 %v888, 1.0
        %v890 = vrcp.pop %v889
        %v891 = vmul.f32 %v889, %v890
        %v892 = vsub.f32 1.0, %v891
        %v893 = vmul.f32 %v890, %v892
        %v894 = vadd.f32 %v890, %v893
        %vm895 = vweird.f32 %v889
        %vm896 = vweird.f32 %v890
        %vm897 = vmor %vm895, %vm896
        %v898 = vsel %vm897, %v890, %v894
        %v899 = vand.u32 2147483647, %v889
        %vm900 = vcmp.eq.f32.partialorder %v899, 8.507059e+37
        %v901 = vand.u32 %v889, 2147483648
        %v902 = vor.u32 1.1754944e-38, %v901
        %v903 = vsel %vm900, %v902, %v898
        %v904 = vmul.f32 %v879, %v903
        %v905 = vmin.f32 %v904, 1.0
        %v906 = vmax.f32 %v905, -1.0
        %v907 = vmul.f32 %v774, %v774
        %v908 = vmin.f32 16.0, %v907
        %v909 = vmul.f32 %v908, 2.1237322e-06
        %v910 = vadd.f32 %v909, 0.00028619796
        %v911 = vmul.f32 %v908, %v910
        %v912 = vadd.f32 %v911, 0.0036580483
        %v913 = vmul.f32 %v908, %v912
        %v914 = vadd.f32 %v913, 0.05243302
        %v915 = vmul.f32 %v908, %v914
        %v916 = vadd.f32 %v915, 0.18741608
        %v917 = vmul.f32 %v908, %v916
        %v918 = vadd.f32 %v917, 1.1283791
        %v919 = vmul.f32 %v774, %v918
        %v920 = vmul.f32 %v908, 3.8918573e-05
        %v921 = vadd.f32 %v920, 0.001143296
        %v922 = vmul.f32 %v908, %v921
        %v923 = vadd.f32 %v922, 0.014752088
        %v924 = vmul.f32 %v908, %v923
        %v925 = vadd.f32 %v924, 0.112945676
        %v926 = vmul.f32 %v908, %v925
        %v927 = vadd.f32 %v926, 0.4994258
        %v928 = vmul.f32 %v908, %v927
        %v929 = vadd.f32 %v928, 1.0
        %v930 = vrcp.pop %v929
        %v931 = vmul.f32 %v929, %v930
        %v932 = vsub.f32 1.0, %v931
        %v933 = vmul.f32 %v930, %v932
        %v934 = vadd.f32 %v930, %v933
        %vm935 = vweird.f32 %v929
        %vm936 = vweird.f32 %v930
        %vm937 = vmor %vm935, %vm936
        %v938 = vsel %vm937, %v930, %v934
        %v939 = vand.u32 2147483647, %v929
        %vm940 = vcmp.eq.f32.partialorder %v939, 8.507059e+37
        %v941 = vand.u32 %v929, 2147483648
        %v942 = vor.u32 1.1754944e-38, %v941
        %v943 = vsel %vm940, %v942, %v938
        %v944 = vmul.f32 %v919, %v943
        %v945 = vmin.f32 %v944, 1.0
        %v946 = vmax.f32 %v945, -1.0
        %v947 = vmul.f32 %v775, %v775
        %v948 = vmin.f32 16.0, %v947
        %v949 = vmul.f32 %v948, 2.1237322e-06
        %v950 = vadd.f32 %v949, 0.00028619796
        %v951 = vmul.f32 %v948, %v950
        %v952 = vadd.f32 %v951, 0.0036580483
        %v953 = vmul.f32 %v948, %v952
        %v954 = vadd.f32 %v953, 0.05243302
        %v955 = vmul.f32 %v948, %v954
        %v956 = vadd.f32 %v955, 0.18741608
        %v957 = vmul.f32 %v948, %v956
        %v958 = vadd.f32 %v957, 1.1283791
        %v959 = vmul.f32 %v775, %v958
        %v960 = vmul.f32 %v948, 3.8918573e-05
        %v961 = vadd.f32 %v960, 0.001143296
        %v962 = vmul.f32 %v948, %v961
        %v963 = vadd.f32 %v962, 0.014752088
        %v964 = vmul.f32 %v948, %v963
        %v965 = vadd.f32 %v964, 0.112945676
        %v966 = vmul.f32 %v948, %v965
        %v967 = vadd.f32 %v966, 0.4994258
        %v968 = vmul.f32 %v948, %v967
        %v969 = vadd.f32 %v968, 1.0
        %v970 = vrcp.pop %v969
        %v971 = vmul.f32 %v969, %v970
        %v972 = vsub.f32 1.0, %v971
        %v973 = vmul.f32 %v970, %v972
        %v974 = vadd.f32 %v970, %v973
        %vm975 = vweird.f32 %v969
        %vm976 = vweird.f32 %v970
        %vm977 = vmor %vm975, %vm976
        %v978 = vsel %vm977, %v970, %v974
        %v979 = vand.u32 2147483647, %v969
        %vm980 = vcmp.eq.f32.partialorder %v979, 8.507059e+37
        %v981 = vand.u32 %v969, 2147483648
        %v982 = vor.u32 1.1754944e-38, %v981
        %v983 = vsel %vm980, %v982, %v978
        %v984 = vmul.f32 %v959, %v983
        %v985 = vmin.f32 %v984, 1.0
        %v986 = vmax.f32 %v985, -1.0
        %v987 = vmul.f32 %v776, %v776
        %v988 = vmin.f32 16.0, %v987
        %v989 = vmul.f32 %v988, 2.1237322e-06
        %v990 = vadd.f32 %v989, 0.00028619796
        %v991 = vmul.f32 %v988, %v990
        %v992 = vadd.f32 %v991, 0.0036580483
        %v993 = vmul.f32 %v988, %v992
        %v994 = vadd.f32 %v993, 0.05243302
        %v995 = vmul.f32 %v988, %v994
        %v996 = vadd.f32 %v995, 0.18741608
        %v997 = vmul.f32 %v988, %v996
        %v998 = vadd.f32 %v997, 1.1283791
        %v999 = vmul.f32 %v776, %v998
        %v1000 = vmul.f32 %v988, 3.8918573e-05
        %v1001 = vadd.f32 %v1000, 0.001143296
        %v1002 = vmul.f32 %v988, %v1001
        %v1003 = vadd.f32 %v1002, 0.014752088
        %v1004 = vmul.f32 %v988, %v1003
        %v1005 = vadd.f32 %v1004, 0.112945676
        %v1006 = vmul.f32 %v988, %v1005
        %v1007 = vadd.f32 %v1006, 0.4994258
        %v1008 = vmul.f32 %v988, %v1007
        %v1009 = vadd.f32 %v1008, 1.0
        %v1010 = vrcp.pop %v1009
        %v1011 = vmul.f32 %v1009, %v1010
        %v1012 = vsub.f32 1.0, %v1011
        %v1013 = vmul.f32 %v1010, %v1012
        %v1014 = vadd.f32 %v1010, %v1013
        %vm1015 = vweird.f32 %v1009
        %vm1016 = vweird.f32 %v1010
        %vm1017 = vmor %vm1015, %vm1016
        %v1018 = vsel %vm1017, %v1010, %v1014
        %v1019 = vand.u32 2147483647, %v1009
        %vm1020 = vcmp.eq.f32.partialorder %v1019, 8.507059e+37
        %v1021 = vand.u32 %v1009, 2147483648
        %v1022 = vor.u32 1.1754944e-38, %v1021
        %v1023 = vsel %vm1020, %v1022, %v1018
        %v1024 = vmul.f32 %v999, %v1023
        %v1025 = vmin.f32 %v1024, 1.0
        %v1026 = vmax.f32 %v1025, -1.0
        %v1027 = vmul.f32 %v777, %v777
        %v1028 = vmin.f32 16.0, %v1027
        %v1029 = vmul.f32 %v1028, 2.1237322e-06
        %v1030 = vadd.f32 %v1029, 0.00028619796
        %v1031 = vmul.f32 %v1028, %v1030
        %v1032 = vadd.f32 %v1031, 0.0036580483
        %v1033 = vmul.f32 %v1028, %v1032
        %v1034 = vadd.f32 %v1033, 0.05243302
        %v1035 = vmul.f32 %v1028, %v1034
        %v1036 = vadd.f32 %v1035, 0.18741608
        %v1037 = vmul.f32 %v1028, %v1036
        %v1038 = vadd.f32 %v1037, 1.1283791
        %v1039 = vmul.f32 %v777, %v1038
        %v1040 = vmul.f32 %v1028, 3.8918573e-05
        %v1041 = vadd.f32 %v1040, 0.001143296
        %v1042 = vmul.f32 %v1028, %v1041
        %v1043 = vadd.f32 %v1042, 0.014752088
        %v1044 = vmul.f32 %v1028, %v1043
        %v1045 = vadd.f32 %v1044, 0.112945676
        %v1046 = vmul.f32 %v1028, %v1045
        %v1047 = vadd.f32 %v1046, 0.4994258
        %v1048 = vmul.f32 %v1028, %v1047
        %v1049 = vadd.f32 %v1048, 1.0
        %v1050 = vrcp.pop %v1049
        %v1051 = vmul.f32 %v1049, %v1050
        %v1052 = vsub.f32 1.0, %v1051
        %v1053 = vmul.f32 %v1050, %v1052
        %v1054 = vadd.f32 %v1050, %v1053
        %vm1055 = vweird.f32 %v1049
        %vm1056 = vweird.f32 %v1050
        %vm1057 = vmor %vm1055, %vm1056
        %v1058 = vsel %vm1057, %v1050, %v1054
        %v1059 = vand.u32 2147483647, %v1049
        %vm1060 = vcmp.eq.f32.partialorder %v1059, 8.507059e+37
        %v1061 = vand.u32 %v1049, 2147483648
        %v1062 = vor.u32 1.1754944e-38, %v1061
        %v1063 = vsel %vm1060, %v1062, %v1058
        %v1064 = vmul.f32 %v1039, %v1063
        %v1065 = vmin.f32 %v1064, 1.0
        %v1066 = vmax.f32 %v1065, -1.0
        %v1067 = vmul.f32 %v778, %v778
        %v1068 = vmin.f32 16.0, %v1067
        %v1069 = vmul.f32 %v1068, 2.1237322e-06
        %v1070 = vadd.f32 %v1069, 0.00028619796
        %v1071 = vmul.f32 %v1068, %v1070
        %v1072 = vadd.f32 %v1071, 0.0036580483
        %v1073 = vmul.f32 %v1068, %v1072
        %v1074 = vadd.f32 %v1073, 0.05243302
        %v1075 = vmul.f32 %v1068, %v1074
        %v1076 = vadd.f32 %v1075, 0.18741608
        %v1077 = vmul.f32 %v1068, %v1076
        %v1078 = vadd.f32 %v1077, 1.1283791
        %v1079 = vmul.f32 %v778, %v1078
        %v1080 = vmul.f32 %v1068, 3.8918573e-05
        %v1081 = vadd.f32 %v1080, 0.001143296
        %v1082 = vmul.f32 %v1068, %v1081
        %v1083 = vadd.f32 %v1082, 0.014752088
        %v1084 = vmul.f32 %v1068, %v1083
        %v1085 = vadd.f32 %v1084, 0.112945676
        %v1086 = vmul.f32 %v1068, %v1085
        %v1087 = vadd.f32 %v1086, 0.4994258
        %v1088 = vmul.f32 %v1068, %v1087
        %v1089 = vadd.f32 %v1088, 1.0
        %v1090 = vrcp.pop %v1089
        %v1091 = vmul.f32 %v1089, %v1090
        %v1092 = vsub.f32 1.0, %v1091
        %v1093 = vmul.f32 %v1090, %v1092
        %v1094 = vadd.f32 %v1090, %v1093
        %vm1095 = vweird.f32 %v1089
        %vm1096 = vweird.f32 %v1090
        %vm1097 = vmor %vm1095, %vm1096
        %v1098 = vsel %vm1097, %v1090, %v1094
        %v1099 = vand.u32 2147483647, %v1089
        %vm1100 = vcmp.eq.f32.partialorder %v1099, 8.507059e+37
        %v1101 = vand.u32 %v1089, 2147483648
        %v1102 = vor.u32 1.1754944e-38, %v1101
        %v1103 = vsel %vm1100, %v1102, %v1098
        %v1104 = vmul.f32 %v1079, %v1103
        %v1105 = vmin.f32 %v1104, 1.0
        %v1106 = vmax.f32 %v1105, -1.0
        %v1107 = vmul.f32 %v779, %v779
        %v1108 = vmin.f32 16.0, %v1107
        %v1109 = vmul.f32 %v1108, 2.1237322e-06
        %v1110 = vadd.f32 %v1109, 0.00028619796
        %v1111 = vmul.f32 %v1108, %v1110
        %v1112 = vadd.f32 %v1111, 0.0036580483
        %v1113 = vmul.f32 %v1108, %v1112
        %v1114 = vadd.f32 %v1113, 0.05243302
        %v1115 = vmul.f32 %v1108, %v1114
        %v1116 = vadd.f32 %v1115, 0.18741608
        %v1117 = vmul.f32 %v1108, %v1116
        %v1118 = vadd.f32 %v1117, 1.1283791
        %v1119 = vmul.f32 %v779, %v1118
        %v1120 = vmul.f32 %v1108, 3.8918573e-05
        %v1121 = vadd.f32 %v1120, 0.001143296
        %v1122 = vmul.f32 %v1108, %v1121
        %v1123 = vadd.f32 %v1122, 0.014752088
        %v1124 = vmul.f32 %v1108, %v1123
        %v1125 = vadd.f32 %v1124, 0.112945676
        %v1126 = vmul.f32 %v1108, %v1125
        %v1127 = vadd.f32 %v1126, 0.4994258
        %v1128 = vmul.f32 %v1108, %v1127
        %v1129 = vadd.f32 %v1128, 1.0
        %v1130 = vrcp.pop %v1129
        %v1131 = vmul.f32 %v1129, %v1130
        %v1132 = vsub.f32 1.0, %v1131
        %v1133 = vmul.f32 %v1130, %v1132
        %v1134 = vadd.f32 %v1130, %v1133
        %vm1135 = vweird.f32 %v1129
        %vm1136 = vweird.f32 %v1130
        %vm1137 = vmor %vm1135, %vm1136
        %v1138 = vsel %vm1137, %v1130, %v1134
        %v1139 = vand.u32 2147483647, %v1129
        %vm1140 = vcmp.eq.f32.partialorder %v1139, 8.507059e+37
        %v1141 = vand.u32 %v1129, 2147483648
        %v1142 = vor.u32 1.1754944e-38, %v1141
        %v1143 = vsel %vm1140, %v1142, %v1138
        %v1144 = vmul.f32 %v1119, %v1143
        %v1145 = vmin.f32 %v1144, 1.0
        %v1146 = vmax.f32 %v1145, -1.0
        %v1147 = vmul.f32 %v780, %v780
        %v1148 = vmin.f32 16.0, %v1147
        %v1149 = vmul.f32 %v1148, 2.1237322e-06
        %v1150 = vadd.f32 %v1149, 0.00028619796
        %v1151 = vmul.f32 %v1148, %v1150
        %v1152 = vadd.f32 %v1151, 0.0036580483
        %v1153 = vmul.f32 %v1148, %v1152
        %v1154 = vadd.f32 %v1153, 0.05243302
        %v1155 = vmul.f32 %v1148, %v1154
        %v1156 = vadd.f32 %v1155, 0.18741608
        %v1157 = vmul.f32 %v1148, %v1156
        %v1158 = vadd.f32 %v1157, 1.1283791
        %v1159 = vmul.f32 %v780, %v1158
        %v1160 = vmul.f32 %v1148, 3.8918573e-05
        %v1161 = vadd.f32 %v1160, 0.001143296
        %v1162 = vmul.f32 %v1148, %v1161
        %v1163 = vadd.f32 %v1162, 0.014752088
        %v1164 = vmul.f32 %v1148, %v1163
        %v1165 = vadd.f32 %v1164, 0.112945676
        %v1166 = vmul.f32 %v1148, %v1165
        %v1167 = vadd.f32 %v1166, 0.4994258
        %v1168 = vmul.f32 %v1148, %v1167
        %v1169 = vadd.f32 %v1168, 1.0
        %v1170 = vrcp.pop %v1169
        %v1171 = vmul.f32 %v1169, %v1170
        %v1172 = vsub.f32 1.0, %v1171
        %v1173 = vmul.f32 %v1170, %v1172
        %v1174 = vadd.f32 %v1170, %v1173
        %vm1175 = vweird.f32 %v1169
        %vm1176 = vweird.f32 %v1170
        %vm1177 = vmor %vm1175, %vm1176
        %v1178 = vsel %vm1177, %v1170, %v1174
        %v1179 = vand.u32 2147483647, %v1169
        %vm1180 = vcmp.eq.f32.partialorder %v1179, 8.507059e+37
        %v1181 = vand.u32 %v1169, 2147483648
        %v1182 = vor.u32 1.1754944e-38, %v1181
        %v1183 = vsel %vm1180, %v1182, %v1178
        %v1184 = vmul.f32 %v1159, %v1183
        %v1185 = vmin.f32 %v1184, 1.0
        %v1186 = vmax.f32 %v1185, -1.0
        %v1187 = vmul.f32 %v781, %v781
        %v1188 = vmin.f32 16.0, %v1187
        %v1189 = vmul.f32 %v1188, 2.1237322e-06
        %v1190 = vadd.f32 %v1189, 0.00028619796
        %v1191 = vmul.f32 %v1188, %v1190
        %v1192 = vadd.f32 %v1191, 0.0036580483
        %v1193 = vmul.f32 %v1188, %v1192
        %v1194 = vadd.f32 %v1193, 0.05243302
        %v1195 = vmul.f32 %v1188, %v1194
        %v1196 = vadd.f32 %v1195, 0.18741608
        %v1197 = vmul.f32 %v1188, %v1196
        %v1198 = vadd.f32 %v1197, 1.1283791
        %v1199 = vmul.f32 %v781, %v1198
        %v1200 = vmul.f32 %v1188, 3.8918573e-05
        %v1201 = vadd.f32 %v1200, 0.001143296
        %v1202 = vmul.f32 %v1188, %v1201
        %v1203 = vadd.f32 %v1202, 0.014752088
        %v1204 = vmul.f32 %v1188, %v1203
        %v1205 = vadd.f32 %v1204, 0.112945676
        %v1206 = vmul.f32 %v1188, %v1205
        %v1207 = vadd.f32 %v1206, 0.4994258
        %v1208 = vmul.f32 %v1188, %v1207
        %v1209 = vadd.f32 %v1208, 1.0
        %v1210 = vrcp.pop %v1209
        %v1211 = vmul.f32 %v1209, %v1210
        %v1212 = vsub.f32 1.0, %v1211
        %v1213 = vmul.f32 %v1210, %v1212
        %v1214 = vadd.f32 %v1210, %v1213
        %vm1215 = vweird.f32 %v1209
        %vm1216 = vweird.f32 %v1210
        %vm1217 = vmor %vm1215, %vm1216
        %v1218 = vsel %vm1217, %v1210, %v1214
        %v1219 = vand.u32 2147483647, %v1209
        %vm1220 = vcmp.eq.f32.partialorder %v1219, 8.507059e+37
        %v1221 = vand.u32 %v1209, 2147483648
        %v1222 = vor.u32 1.1754944e-38, %v1221
        %v1223 = vsel %vm1220, %v1222, %v1218
        %v1224 = vmul.f32 %v1199, %v1223
        %v1225 = vmin.f32 %v1224, 1.0
        %v1226 = vmax.f32 %v1225, -1.0
        %v1227 = vmul.f32 %v782, %v782
        %v1228 = vmin.f32 16.0, %v1227
        %v1229 = vmul.f32 %v1228, 2.1237322e-06
        %v1230 = vadd.f32 %v1229, 0.00028619796
        %v1231 = vmul.f32 %v1228, %v1230
        %v1232 = vadd.f32 %v1231, 0.0036580483
        %v1233 = vmul.f32 %v1228, %v1232
        %v1234 = vadd.f32 %v1233, 0.05243302
        %v1235 = vmul.f32 %v1228, %v1234
        %v1236 = vadd.f32 %v1235, 0.18741608
        %v1237 = vmul.f32 %v1228, %v1236
        %v1238 = vadd.f32 %v1237, 1.1283791
        %v1239 = vmul.f32 %v782, %v1238
        %v1240 = vmul.f32 %v1228, 3.8918573e-05
        %v1241 = vadd.f32 %v1240, 0.001143296
        %v1242 = vmul.f32 %v1228, %v1241
        %v1243 = vadd.f32 %v1242, 0.014752088
        %v1244 = vmul.f32 %v1228, %v1243
        %v1245 = vadd.f32 %v1244, 0.112945676
        %v1246 = vmul.f32 %v1228, %v1245
        %v1247 = vadd.f32 %v1246, 0.4994258
        %v1248 = vmul.f32 %v1228, %v1247
        %v1249 = vadd.f32 %v1248, 1.0
        %v1250 = vrcp.pop %v1249
        %v1251 = vmul.f32 %v1249, %v1250
        %v1252 = vsub.f32 1.0, %v1251
        %v1253 = vmul.f32 %v1250, %v1252
        %v1254 = vadd.f32 %v1250, %v1253
        %vm1255 = vweird.f32 %v1249
        %vm1256 = vweird.f32 %v1250
        %vm1257 = vmor %vm1255, %vm1256
        %v1258 = vsel %vm1257, %v1250, %v1254
        %v1259 = vand.u32 2147483647, %v1249
        %vm1260 = vcmp.eq.f32.partialorder %v1259, 8.507059e+37
        %v1261 = vand.u32 %v1249, 2147483648
        %v1262 = vor.u32 1.1754944e-38, %v1261
        %v1263 = vsel %vm1260, %v1262, %v1258
        %v1264 = vmul.f32 %v1239, %v1263
        %v1265 = vmin.f32 %v1264, 1.0
        %v1266 = vmax.f32 %v1265, -1.0
        %v1267 = vmul.f32 %v783, %v783
        %v1268 = vmin.f32 16.0, %v1267
        %v1269 = vmul.f32 %v1268, 2.1237322e-06
        %v1270 = vadd.f32 %v1269, 0.00028619796
        %v1271 = vmul.f32 %v1268, %v1270
        %v1272 = vadd.f32 %v1271, 0.0036580483
        %v1273 = vmul.f32 %v1268, %v1272
        %v1274 = vadd.f32 %v1273, 0.05243302
        %v1275 = vmul.f32 %v1268, %v1274
        %v1276 = vadd.f32 %v1275, 0.18741608
        %v1277 = vmul.f32 %v1268, %v1276
        %v1278 = vadd.f32 %v1277, 1.1283791
        %v1279 = vmul.f32 %v783, %v1278
        %v1280 = vmul.f32 %v1268, 3.8918573e-05
        %v1281 = vadd.f32 %v1280, 0.001143296
        %v1282 = vmul.f32 %v1268, %v1281
        %v1283 = vadd.f32 %v1282, 0.014752088
        %v1284 = vmul.f32 %v1268, %v1283
        %v1285 = vadd.f32 %v1284, 0.112945676
        %v1286 = vmul.f32 %v1268, %v1285
        %v1287 = vadd.f32 %v1286, 0.4994258
        %v1288 = vmul.f32 %v1268, %v1287
        %v1289 = vadd.f32 %v1288, 1.0
        %v1290 = vrcp.pop %v1289
        %v1291 = vmul.f32 %v1289, %v1290
        %v1292 = vsub.f32 1.0, %v1291
        %v1293 = vmul.f32 %v1290, %v1292
        %v1294 = vadd.f32 %v1290, %v1293
        %vm1295 = vweird.f32 %v1289
        %vm1296 = vweird.f32 %v1290
        %vm1297 = vmor %vm1295, %vm1296
        %v1298 = vsel %vm1297, %v1290, %v1294
        %v1299 = vand.u32 2147483647, %v1289
        %vm1300 = vcmp.eq.f32.partialorder %v1299, 8.507059e+37
        %v1301 = vand.u32 %v1289, 2147483648
        %v1302 = vor.u32 1.1754944e-38, %v1301
        %v1303 = vsel %vm1300, %v1302, %v1298
        %v1304 = vmul.f32 %v1279, %v1303
        %v1305 = vmin.f32 %v1304, 1.0
        %v1306 = vmax.f32 %v1305, -1.0
        %v1307 = vmul.f32 %v784, %v784
        %v1308 = vmin.f32 16.0, %v1307
        %v1309 = vmul.f32 %v1308, 2.1237322e-06
        %v1310 = vadd.f32 %v1309, 0.00028619796
        %v1311 = vmul.f32 %v1308, %v1310
        %v1312 = vadd.f32 %v1311, 0.0036580483
        %v1313 = vmul.f32 %v1308, %v1312
        %v1314 = vadd.f32 %v1313, 0.05243302
        %v1315 = vmul.f32 %v1308, %v1314
        %v1316 = vadd.f32 %v1315, 0.18741608
        %v1317 = vmul.f32 %v1308, %v1316
        %v1318 = vadd.f32 %v1317, 1.1283791
        %v1319 = vmul.f32 %v784, %v1318
        %v1320 = vmul.f32 %v1308, 3.8918573e-05
        %v1321 = vadd.f32 %v1320, 0.001143296
        %v1322 = vmul.f32 %v1308, %v1321
        %v1323 = vadd.f32 %v1322, 0.014752088
        %v1324 = vmul.f32 %v1308, %v1323
        %v1325 = vadd.f32 %v1324, 0.112945676
        %v1326 = vmul.f32 %v1308, %v1325
        %v1327 = vadd.f32 %v1326, 0.4994258
        %v1328 = vmul.f32 %v1308, %v1327
        %v1329 = vadd.f32 %v1328, 1.0
        %v1330 = vrcp.pop %v1329
        %v1331 = vmul.f32 %v1329, %v1330
        %v1332 = vsub.f32 1.0, %v1331
        %v1333 = vmul.f32 %v1330, %v1332
        %v1334 = vadd.f32 %v1330, %v1333
        %vm1335 = vweird.f32 %v1329
        %vm1336 = vweird.f32 %v1330
        %vm1337 = vmor %vm1335, %vm1336
        %v1338 = vsel %vm1337, %v1330, %v1334
        %v1339 = vand.u32 2147483647, %v1329
        %vm1340 = vcmp.eq.f32.partialorder %v1339, 8.507059e+37
        %v1341 = vand.u32 %v1329, 2147483648
        %v1342 = vor.u32 1.1754944e-38, %v1341
        %v1343 = vsel %vm1340, %v1342, %v1338
        %v1344 = vmul.f32 %v1319, %v1343
        %v1345 = vmin.f32 %v1344, 1.0
        %v1346 = vmax.f32 %v1345, -1.0
        %v1347 = vmul.f32 %v785, %v785
        %v1348 = vmin.f32 16.0, %v1347
        %v1349 = vmul.f32 %v1348, 2.1237322e-06
        %v1350 = vadd.f32 %v1349, 0.00028619796
        %v1351 = vmul.f32 %v1348, %v1350
        %v1352 = vadd.f32 %v1351, 0.0036580483
        %v1353 = vmul.f32 %v1348, %v1352
        %v1354 = vadd.f32 %v1353, 0.05243302
        %v1355 = vmul.f32 %v1348, %v1354
        %v1356 = vadd.f32 %v1355, 0.18741608
        %v1357 = vmul.f32 %v1348, %v1356
        %v1358 = vadd.f32 %v1357, 1.1283791
        %v1359 = vmul.f32 %v785, %v1358
        %v1360 = vmul.f32 %v1348, 3.8918573e-05
        %v1361 = vadd.f32 %v1360, 0.001143296
        %v1362 = vmul.f32 %v1348, %v1361
        %v1363 = vadd.f32 %v1362, 0.014752088
        %v1364 = vmul.f32 %v1348, %v1363
        %v1365 = vadd.f32 %v1364, 0.112945676
        %v1366 = vmul.f32 %v1348, %v1365
        %v1367 = vadd.f32 %v1366, 0.4994258
        %v1368 = vmul.f32 %v1348, %v1367
        %v1369 = vadd.f32 %v1368, 1.0
        %v1370 = vrcp.pop %v1369
        %v1371 = vmul.f32 %v1369, %v1370
        %v1372 = vsub.f32 1.0, %v1371
        %v1373 = vmul.f32 %v1370, %v1372
        %v1374 = vadd.f32 %v1370, %v1373
        %vm1375 = vweird.f32 %v1369
        %vm1376 = vweird.f32 %v1370
        %vm1377 = vmor %vm1375, %vm1376
        %v1378 = vsel %vm1377, %v1370, %v1374
        %v1379 = vand.u32 2147483647, %v1369
        %vm1380 = vcmp.eq.f32.partialorder %v1379, 8.507059e+37
        %v1381 = vand.u32 %v1369, 2147483648
        %v1382 = vor.u32 1.1754944e-38, %v1381
        %v1383 = vsel %vm1380, %v1382, %v1378
        %v1384 = vmul.f32 %v1359, %v1383
        %v1385 = vmin.f32 %v1384, 1.0
        %v1386 = vmax.f32 %v1385, -1.0
        %v1387 = vmul.f32 %v786, %v786
        %v1388 = vmin.f32 16.0, %v1387
        %v1389 = vmul.f32 %v1388, 2.1237322e-06
        %v1390 = vadd.f32 %v1389, 0.00028619796
        %v1391 = vmul.f32 %v1388, %v1390
        %v1392 = vadd.f32 %v1391, 0.0036580483
        %v1393 = vmul.f32 %v1388, %v1392
        %v1394 = vadd.f32 %v1393, 0.05243302
        %v1395 = vmul.f32 %v1388, %v1394
        %v1396 = vadd.f32 %v1395, 0.18741608
        %v1397 = vmul.f32 %v1388, %v1396
        %v1398 = vadd.f32 %v1397, 1.1283791
        %v1399 = vmul.f32 %v786, %v1398
        %v1400 = vmul.f32 %v1388, 3.8918573e-05
        %v1401 = vadd.f32 %v1400, 0.001143296
        %v1402 = vmul.f32 %v1388, %v1401
        %v1403 = vadd.f32 %v1402, 0.014752088
        %v1404 = vmul.f32 %v1388, %v1403
        %v1405 = vadd.f32 %v1404, 0.112945676
        %v1406 = vmul.f32 %v1388, %v1405
        %v1407 = vadd.f32 %v1406, 0.4994258
        %v1408 = vmul.f32 %v1388, %v1407
        %v1409 = vadd.f32 %v1408, 1.0
        %v1410 = vrcp.pop %v1409
        %v1411 = vmul.f32 %v1409, %v1410
        %v1412 = vsub.f32 1.0, %v1411
        %v1413 = vmul.f32 %v1410, %v1412
        %v1414 = vadd.f32 %v1410, %v1413
        %vm1415 = vweird.f32 %v1409
        %vm1416 = vweird.f32 %v1410
        %vm1417 = vmor %vm1415, %vm1416
        %v1418 = vsel %vm1417, %v1410, %v1414
        %v1419 = vand.u32 2147483647, %v1409
        %vm1420 = vcmp.eq.f32.partialorder %v1419, 8.507059e+37
        %v1421 = vand.u32 %v1409, 2147483648
        %v1422 = vor.u32 1.1754944e-38, %v1421
        %v1423 = vsel %vm1420, %v1422, %v1418
        %v1424 = vmul.f32 %v1399, %v1423
        %v1425 = vmin.f32 %v1424, 1.0
        %v1426 = vmax.f32 %v1425, -1.0
        %v1427 = vadd.f32 %v826, 1.0
        %v1428 = vadd.f32 %v866, 1.0
        %v1429 = vadd.f32 %v906, 1.0
        %v1430 = vadd.f32 %v946, 1.0
        %v1431 = vadd.f32 %v986, 1.0
        %v1432 = vadd.f32 %v1026, 1.0
        %v1433 = vadd.f32 %v1066, 1.0
        %v1434 = vadd.f32 %v1106, 1.0
        %v1435 = vadd.f32 %v1146, 1.0
        %v1436 = vadd.f32 %v1186, 1.0
        %v1437 = vadd.f32 %v1226, 1.0
        %v1438 = vadd.f32 %v1266, 1.0
        %v1439 = vadd.f32 %v1306, 1.0
        %v1440 = vadd.f32 %v1346, 1.0
        %v1441 = vadd.f32 %v1386, 1.0
        %v1442 = vadd.f32 %v1426, 1.0
        %v1443 = vmul.f32 %v755, %v1427
        %v1444 = vmul.f32 %v756, %v1428
        %v1445 = vmul.f32 %v757, %v1429
        %v1446 = vmul.f32 %v758, %v1430
        %v1447 = vmul.f32 %v759, %v1431
        %v1448 = vmul.f32 %v760, %v1432
        %v1449 = vmul.f32 %v761, %v1433
        %v1450 = vmul.f32 %v762, %v1434
        %v1451 = vmul.f32 %v763, %v1435
        %v1452 = vmul.f32 %v764, %v1436
        %v1453 = vmul.f32 %v765, %v1437
        %v1454 = vmul.f32 %v766, %v1438
        %v1455 = vmul.f32 %v767, %v1439
        %v1456 = vmul.f32 %v768, %v1440
        %v1457 = vmul.f32 %v769, %v1441
        %v1458 = vmul.f32 %v770, %v1442
        %v1459 = vld [vmem:[#allocation2] sm:$0xff]
        %v1460 = vld [vmem:[#allocation2 + $0x8] sm:$0xff]
        %v1461 = vld [vmem:[#allocation2 + $0x10] sm:$0xff]
        %v1462 = vld [vmem:[#allocation2 + $0x18] sm:$0xff]
        %v1463 = vld [vmem:[#allocation2 + $0x20] sm:$0xff]
        %v1464 = vld [vmem:[#allocation2 + $0x28] sm:$0xff]
        %v1465 = vld [vmem:[#allocation2 + $0x30] sm:$0xff]
        %v1466 = vld [vmem:[#allocation2 + $0x38] sm:$0xff]
        %v1467 = vld [vmem:[#allocation2 + $0x40] sm:$0xff]
        %v1468 = vld [vmem:[#allocation2 + $0x48] sm:$0xff]
        %v1469 = vld [vmem:[#allocation2 + $0x50] sm:$0xff]
        %v1470 = vld [vmem:[#allocation2 + $0x58] sm:$0xff]
        %v1471 = vld [vmem:[#allocation2 + $0x60] sm:$0xff]
        %v1472 = vld [vmem:[#allocation2 + $0x68] sm:$0xff]
        %v1473 = vld [vmem:[#allocation2 + $0x70] sm:$0xff]
        %v1474 = vld [vmem:[#allocation2 + $0x78] sm:$0xff]
        %v1475 = vld [vmem:[#allocation2 + $0x80] sm:$0xff]
        %v1476 = vld [vmem:[#allocation2 + $0x88] sm:$0xff]
        %v1477 = vld [vmem:[#allocation2 + $0x90] sm:$0xff]
        %v1478 = vld [vmem:[#allocation2 + $0x98] sm:$0xff]
        %v1479 = vld [vmem:[#allocation2 + $0xa0] sm:$0xff]
        %v1480 = vld [vmem:[#allocation2 + $0xa8] sm:$0xff]
        %v1481 = vld [vmem:[#allocation2 + $0xb0] sm:$0xff]
        %v1482 = vld [vmem:[#allocation2 + $0xb8] sm:$0xff]
        %v1483 = vld [vmem:[#allocation2 + $0xc0] sm:$0xff]
        %v1484 = vld [vmem:[#allocation2 + $0xc8] sm:$0xff]
        %v1485 = vld [vmem:[#allocation2 + $0xd0] sm:$0xff]
        %v1486 = vld [vmem:[#allocation2 + $0xd8] sm:$0xff]
        %v1487 = vld [vmem:[#allocation2 + $0xe0] sm:$0xff]
        %v1488 = vld [vmem:[#allocation2 + $0xe8] sm:$0xff]
        %v1489 = vld [vmem:[#allocation2 + $0xf0] sm:$0xff]
        %v1490 = vld [vmem:[#allocation2 + $0xf8] sm:$0xff]
        %v1491 = vld [vmem:[#allocation2 + $0x100] sm:$0xff]
        %v1492 = vld [vmem:[#allocation2 + $0x108] sm:$0xff]
        %v1493 = vld [vmem:[#allocation2 + $0x110] sm:$0xff]
        %v1494 = vld [vmem:[#allocation2 + $0x118] sm:$0xff]
        %v1495 = vld [vmem:[#allocation2 + $0x120] sm:$0xff]
        %v1496 = vld [vmem:[#allocation2 + $0x128] sm:$0xff]
        %v1497 = vld [vmem:[#allocation2 + $0x130] sm:$0xff]
        %v1498 = vld [vmem:[#allocation2 + $0x138] sm:$0xff]
        %v1499 = vld [vmem:[#allocation2 + $0x140] sm:$0xff]
        %v1500 = vld [vmem:[#allocation2 + $0x148] sm:$0xff]
        %v1501 = vld [vmem:[#allocation2 + $0x150] sm:$0xff]
        %v1502 = vld [vmem:[#allocation2 + $0x158] sm:$0xff]
        %v1503 = vld [vmem:[#allocation2 + $0x160] sm:$0xff]
        %v1504 = vld [vmem:[#allocation2 + $0x168] sm:$0xff]
        %v1505 = vld [vmem:[#allocation2 + $0x170] sm:$0xff]
        %v1506 = vld [vmem:[#allocation2 + $0x178] sm:$0xff]
        %v1507 = vld [vmem:[#allocation2 + $0x180] sm:$0xff]
        %v1508 = vld [vmem:[#allocation2 + $0x188] sm:$0xff]
        %v1509 = vld [vmem:[#allocation2 + $0x190] sm:$0xff]
        %v1510 = vld [vmem:[#allocation2 + $0x198] sm:$0xff]
        %v1511 = vld [vmem:[#allocation2 + $0x1a0] sm:$0xff]
        %v1512 = vld [vmem:[#allocation2 + $0x1a8] sm:$0xff]
        %v1513 = vld [vmem:[#allocation2 + $0x1b0] sm:$0xff]
        %v1514 = vld [vmem:[#allocation2 + $0x1b8] sm:$0xff]
        %v1515 = vld [vmem:[#allocation2 + $0x1c0] sm:$0xff]
        %v1516 = vld [vmem:[#allocation2 + $0x1c8] sm:$0xff]
        %v1517 = vld [vmem:[#allocation2 + $0x1d0] sm:$0xff]
        %v1518 = vld [vmem:[#allocation2 + $0x1d8] sm:$0xff]
        %v1519 = vld [vmem:[#allocation2 + $0x1e0] sm:$0xff]
        %v1520 = vld [vmem:[#allocation2 + $0x1e8] sm:$0xff]
        %v1521 = vld [vmem:[#allocation2 + $0x1f0] sm:$0xff]
        %v1522 = vld [vmem:[#allocation2 + $0x1f8] sm:$0xff]
        %v1523 = vld [vmem:[%s8] sm:$0x1]
        %v1525 = vperm.slane %v1523, 0
        %1527 = vmatpush.msra.mxu0 %v1474
        %1528 = vmatpush.msra.mxu0 %v1473
        %1529 = vmatpush.msra.mxu0 %v1472
        %1530 = vmatpush.msra.mxu0 %v1471
        %1531 = vmatpush.msra.mxu0 %v1470
        %1532 = vmatpush.msra.mxu0 %v1469
        %1533 = vmatpush.msra.mxu0 %v1468
        %1534 = vmatpush.msra.mxu0 %v1467
        %1535 = vmatpush.msra.mxu0 %v1466
        %1536 = vmatpush.msra.mxu0 %v1465
        %1537 = vmatpush.msra.mxu0 %v1464
        %1538 = vmatpush.msra.mxu0 %v1463
        %1539 = vmatpush.msra.mxu0 %v1462
        %1540 = vmatpush.msra.mxu0 %v1461
        %1541 = vmatpush.msra.mxu0 %v1460
        %1542 = vmatpush.msra.mxu0 %v1459
        %1543 = vmatmul.f32.gmra.mxu0 %v1443
        %v1544 = vpop.f32.mrf.mxu0
        %v1545 = vadd.f32 %v1525, %v1544
        %1546 = vmatmul.f32.gmra.mxu0 %v1447
        %v1547 = vpop.f32.mrf.mxu0
        %v1548 = vadd.f32 %v1525, %v1547
        %1549 = vmatmul.f32.gmra.mxu0 %v1451
        %v1550 = vpop.f32.mrf.mxu0
        %v1551 = vadd.f32 %v1525, %v1550
        %1552 = vmatmul.f32.gmra.mxu0 %v1455
        %v1553 = vpop.f32.mrf.mxu0
        %v1554 = vadd.f32 %v1525, %v1553
        %1555 = vdwg.mxu0
        %1556 = vmatpush.msra.mxu0 %v1490
        %1557 = vmatpush.msra.mxu0 %v1489
        %1558 = vmatpush.msra.mxu0 %v1488
        %1559 = vmatpush.msra.mxu0 %v1487
        %1560 = vmatpush.msra.mxu0 %v1486
        %1561 = vmatpush.msra.mxu0 %v1485
        %1562 = vmatpush.msra.mxu0 %v1484
        %1563 = vmatpush.msra.mxu0 %v1483
        %1564 = vmatpush.msra.mxu0 %v1482
        %1565 = vmatpush.msra.mxu0 %v1481
        %1566 = vmatpush.msra.mxu0 %v1480
        %1567 = vmatpush.msra.mxu0 %v1479
        %1568 = vmatpush.msra.mxu0 %v1478
        %1569 = vmatpush.msra.mxu0 %v1477
        %1570 = vmatpush.msra.mxu0 %v1476
        %1571 = vmatpush.msra.mxu0 %v1475
        %1572 = vmatmul.f32.gmra.mxu0 %v1444
        %v1573 = vpop.f32.mrf.mxu0
        %v1574 = vadd.f32 %v1545, %v1573
        %1575 = vmatmul.f32.gmra.mxu0 %v1448
        %v1576 = vpop.f32.mrf.mxu0
        %v1577 = vadd.f32 %v1548, %v1576
        %1578 = vmatmul.f32.gmra.mxu0 %v1452
        %v1579 = vpop.f32.mrf.mxu0
        %v1580 = vadd.f32 %v1551, %v1579
        %1581 = vmatmul.f32.gmra.mxu0 %v1456
        %v1582 = vpop.f32.mrf.mxu0
        %v1583 = vadd.f32 %v1554, %v1582
        %1584 = vdwg.mxu0
        %1585 = vmatpush.msra.mxu0 %v1506
        %1586 = vmatpush.msra.mxu0 %v1505
        %1587 = vmatpush.msra.mxu0 %v1504
        %1588 = vmatpush.msra.mxu0 %v1503
        %1589 = vmatpush.msra.mxu0 %v1502
        %1590 = vmatpush.msra.mxu0 %v1501
        %1591 = vmatpush.msra.mxu0 %v1500
        %1592 = vmatpush.msra.mxu0 %v1499
        %1593 = vmatpush.msra.mxu0 %v1498
        %1594 = vmatpush.msra.mxu0 %v1497
        %1595 = vmatpush.msra.mxu0 %v1496
        %1596 = vmatpush.msra.mxu0 %v1495
        %1597 = vmatpush.msra.mxu0 %v1494
        %1598 = vmatpush.msra.mxu0 %v1493
        %1599 = vmatpush.msra.mxu0 %v1492
        %1600 = vmatpush.msra.mxu0 %v1491
        %1601 = vmatmul.f32.gmra.mxu0 %v1445
        %v1602 = vpop.f32.mrf.mxu0
        %v1603 = vadd.f32 %v1574, %v1602
        %1604 = vmatmul.f32.gmra.mxu0 %v1449
        %v1605 = vpop.f32.mrf.mxu0
        %v1606 = vadd.f32 %v1577, %v1605
        %1607 = vmatmul.f32.gmra.mxu0 %v1453
        %v1608 = vpop.f32.mrf.mxu0
        %v1609 = vadd.f32 %v1580, %v1608
        %1610 = vmatmul.f32.gmra.mxu0 %v1457
        %v1611 = vpop.f32.mrf.mxu0
        %v1612 = vadd.f32 %v1583, %v1611
        %1613 = vdwg.mxu0
        %1614 = vmatpush.msra.mxu0 %v1522
        %1615 = vmatpush.msra.mxu0 %v1521
        %1616 = vmatpush.msra.mxu0 %v1520
        %1617 = vmatpush.msra.mxu0 %v1519
        %1618 = vmatpush.msra.mxu0 %v1518
        %1619 = vmatpush.msra.mxu0 %v1517
        %1620 = vmatpush.msra.mxu0 %v1516
        %1621 = vmatpush.msra.mxu0 %v1515
        %1622 = vmatpush.msra.mxu0 %v1514
        %1623 = vmatpush.msra.mxu0 %v1513
        %1624 = vmatpush.msra.mxu0 %v1512
        %1625 = vmatpush.msra.mxu0 %v1511
        %1626 = vmatpush.msra.mxu0 %v1510
        %1627 = vmatpush.msra.mxu0 %v1509
        %1628 = vmatpush.msra.mxu0 %v1508
        %1629 = vmatpush.msra.mxu0 %v1507
        %1630 = vmatmul.f32.gmra.mxu0 %v1446
        %v1631 = vpop.f32.mrf.mxu0
        %v1632 = vadd.f32 %v1603, %v1631
        %1633 = vmatmul.f32.gmra.mxu0 %v1450
        %v1634 = vpop.f32.mrf.mxu0
        %v1635 = vadd.f32 %v1606, %v1634
        %1636 = vmatmul.f32.gmra.mxu0 %v1454
        %v1637 = vpop.f32.mrf.mxu0
        %v1638 = vadd.f32 %v1609, %v1637
        %1639 = vmatmul.f32.gmra.mxu0 %v1458
        %v1640 = vpop.f32.mrf.mxu0
        %v1641 = vadd.f32 %v1612, %v1640
        %1642 = vdwg.mxu0
        %v1643 = vld [vmem:[%s9] sm:$0x1]
        %v1645 = vperm.slane %v1643, 0
        %v1647 = vmul.f32 %v1645, %v1632
        %v1648 = vmul.f32 %v1645, %v1635
        %v1649 = vmul.f32 %v1645, %v1638
        %v1650 = vmul.f32 %v1645, %v1641
        %v1651 = vadd.f32 %v458, %v1647
        %v1652 = vadd.f32 %v459, %v1648
        %v1653 = vadd.f32 %v460, %v1649
        %v1654 = vadd.f32 %v461, %v1650
        %1655 = vst [vmem:[%s420] sm:$0xff] %v1651
        %1656 = vst [vmem:[%s420 + $0x8] sm:$0xff] %v1652
        %1657 = vst [vmem:[%s420 + $0x10] sm:$0xff] %v1653
        %1658 = vst [vmem:[%s420 + $0x18] sm:$0xff] %v1654
        %s1659 = sand.u32 %s271, 1
        %s1660 = scalar_lea.sflag [#allocation4], %s1659
        %s1661 = sand.u32 %s271, 1
        %s1662 = smul.addr %s1661, 32
        %s1663 = scalar_lea.vmem [#allocation5], %s1662
        // Predicated region
        $region65: #{block_forward.5} parent=59 // pred_check
          %p1664 = pneg %p281
        $region66: #{block_forward.5} parent=59 // pred_check_branch
          %1666 = sbr.rel (%p1664) target = $region68
        $region67: #{block_forward.5} parent=59 // pred_region
          %s1667 = smul.u32 4, %s30
          %1669 = vsyncadd %s1660, 0
          %s1670 = smul.addr %s29, 4
          %s1671 = sadd.s32 %s1667, %s1670
          %s1672 = smul.addr %s1671, 8
          %s1673 = scalar_lea.hbm %s10, %s1672
          %s1674 = sshll.u32 %s1663, 4
          %s1675 = int_to_ptr.vmem [resolvable:$true] %s1674
          %s1676 = sshll.u32 %s1673, 4
          %s1677 = int_to_ptr.hbm [resolvable:$true] %s1676
          %1682 = dma.vmem_to_hbm [thread:$0]  %s1675, 512, %s1677, %s1660, 128, 128, 8
        $region68: #{block_forward.5} parent=59 // pred_fallthru
          _
      $region60: #{block_forward.5} parent=5 // pred_fallthru
        _
      %p1683 = scmp.le.s32.totalorder 2, %s20
      // Predicated region
      $region69: #{block_forward.5} parent=5 // pred_check
        %p1684 = pneg %p1683
      $region70: #{block_forward.5} parent=5 // pred_check_branch
        %1686 = sbr.rel (%p1684) target = $region72
      $region71: #{block_forward.5} parent=5 // pred_region
        %s1687 = ssub.s32 %s20, 2
        // Predicated region
        $region73: #{block_forward.5} parent=71 // pred_check
          %p1688 = pneg %p287
        $region74: #{block_forward.5} parent=71 // pred_check_branch
          %1690 = sbr.rel (%p1688) target = $region76
        $region75: #{block_forward.5} parent=71 // pred_region
          %s1691 = sand.u32 %s272, 1
          %s1692 = scalar_lea.sflag [#allocation4], %s1691
          %s1693 = sand.u32 %s272, 1
          %s1694 = smul.addr %s1693, 32
          %s1695 = scalar_lea.vmem [#allocation5], %s1694
          %1697 = dma.done %s1692, 512
        $region76: #{block_forward.5} parent=71 // pred_fallthru
          _
      $region72: #{block_forward.5} parent=5 // pred_fallthru
        _
    $region6: #{block_forward.5} parent=1 // loop_footer
      %s24 = sadd.s32 1, %s20
    $region7: #{block_forward.5} parent=1 // loop_footer_branch
      %19 = sbr.rel target = $region3
    $region8: #{block_forward.5} parent=1 // loop_exit
      _
    %1698 = vsyncpa [#allocation3], 1
    %s1699 = scalar_lea.sflag [#allocation3], 1
    %1700 = vsyncpa %s1699, 1
    %1701 = vsyncpa [#allocation4], 1
    %s1702 = scalar_lea.sflag [#allocation4], 1
    %1703 = vsyncpa %s1702, 1

// kernel: block_forward.4
$region0: #{block_forward.4}
  #allocation0 [shape = 'u32[]', space=smem, size = 0x4, offset = 0x4, fixed_abs, tag = 'smem constant byte address 0x4 - core index']
  #allocation1 [shape = 'u32[72,128]{1,0:T(1,128)}', space=vmem, size = 0x9000, scoped, tag = 'internal scratch']
  #allocation2 [shape = 'f32[4,32,1]{2,1,0:T(8,128)}', space=vmem, size = 0x10000, scoped, tag = 'scratch operand']
  #allocation3 [shape = 'f32[4,32,1]{2,1,0:T(8,128)}', space=vmem, size = 0x10000, scoped, tag = 'scratch operand']
  #allocation4 [shape = 'f32[4,32,32]{2,1,0:T(8,128)}', space=vmem, size = 0x10000, scoped, tag = 'scratch operand']
  %s0 = inlined_call_operand.vmem [shape: f32[2,32,384], index: 0, kind: input, shape index: {}, may-alias: {0,1,2}]
  %s1 = inlined_call_operand.vmem [shape: f32[2,32,384], index: 1, kind: input, shape index: {}, may-alias: {0,1,2}]
  %s2 = inlined_call_operand.vmem [shape: f32[2,32,384], index: 2, kind: input, shape index: {}, may-alias: {0,1,2}]
  %s3 = inlined_call_operand.vmem [shape: f32[128,128], index: 3, kind: input, shape index: {}]
  %s4 = inlined_call_operand.vmem [shape: f32[1,128], index: 4, kind: input, shape index: {}]
  %s5 = inlined_call_operand.vmem [shape: f32[2,32,128], index: 5, kind: output, shape index: {}]
  %s6 = sld [smem:[#allocation0]]
  $region175: #{block_forward.4} parent=0
    _
  %s8 = ssub.s32 1, %s6
  %s9 = scalar_select 0, %s8, %s6
  $region1: #{block_forward.4} parent=0
    #allocation5 [shape = 'u8[32768]{0}', space=vmem, size = 0x8000, scoped, tag = 'input window, operand 0']
    #allocation6 [shape = 'u8[16384]{0}', space=vmem, size = 0x4000, scoped, tag = 'input window, operand 1, single buffered']
    #allocation7 [shape = 'u8[16384]{0}', space=vmem, size = 0x4000, scoped, tag = 'input window, operand 2, single buffered']
    loop: start=0, step=1, limit=4
    $region2: #{block_forward.4} parent=1 // loop_pre_header
      _
    $region3: #{block_forward.4} parent=1 // loop_header
      %s11 = sphi 0, %s15
      %p12 = scmp.ge.s32.totalorder %s11, 4
      %s18 = sphi 0, %s37
      %s19 = sphi 0, %s33
      %s20 = sphi 0, %s29
      %s21 = sphi 0, %s18
      %s22 = sphi 0, %s19
      %s23 = sphi 0, %s20
      %s24 = sphi 0, %s21
      %s25 = sphi 0, %s22
      %s26 = sphi 0, %s23
      %s42 = sphi 0, %s44
      %s45 = sphi 0, %s42
      %s46 = sphi 0, %s45
      %s62 = sphi 0, %s46
      %s70 = sphi 0, %s72
      %s73 = sphi 0, %s70
      %s74 = sphi 0, %s73
      %s90 = sphi 0, %s74
      %s98 = sphi 0, %s100
      %s101 = sphi 0, %s98
      %s102 = sphi 0, %s101
      %s118 = sphi 0, %s102
      %s122 = sphi 0, %s122
      %s124 = sphi 0, %s122
      %s125 = sphi 0, %s124
      %s139 = sphi 0, %s125
      %s143 = sphi 0, %s143
      %s145 = sphi 0, %s143
      %s146 = sphi 0, %s145
      %s160 = sphi 0, %s146
      %s168 = sphi 0, %s170
      %s171 = sphi 0, %s168
      %s172 = sphi 0, %s171
      %s188 = sphi 0, %s172
    $region4: #{block_forward.4} parent=1 // loop_header_branch
      %14 = sbr.rel (%p12) target = $region8
    $region5: #{block_forward.4} parent=1 // loop_body
      %s16 = ssub.s32 %s11, 1
      %s17 = ssub.s32 %s11, 2
      %s27 = sadd.s32 1, %s20
      %p28 = scmp.ge.s32.totalorder %s27, 1
      %s29 = scalar_select %p28, 0, %s27
      %s30 = sadd.s32 1, %s19
      %s31 = scalar_select %p28, %s30, %s19
      %p32 = scmp.ge.s32.totalorder %s31, 1
      %s33 = scalar_select %p32, 0, %s31
      %s34 = sadd.s32 1, %s18
      %s35 = scalar_select %p32, %s34, %s18
      %p36 = scmp.ge.s32.totalorder %s35, 2
      %s37 = scalar_select %p36, 0, %s35
      %s38 = ssub.s32 %s18, %s37
      %s39 = ssub.s32 %s19, %s33
      %s40 = sor.u32 %s38, %s39
      %p41 = scmp.eq.s32.totalorder %s40, 0
      %s43 = sadd.s32 %s42, 1
      %s44 = scalar_select %p41, %s42, %s43
      %p47 = pneg %p41
      %p48 = scmp.eq.s32.totalorder %s11, 1
      %p49 = por %p47, %p48
      %p50 = scmp.ne.s32.totalorder %s42, %s45
      %p51 = scmp.eq.s32.totalorder %s11, 0
      %p52 = por %p50, %p51
      %p53 = scmp.ne.s32.totalorder %s42, %s45
      %p54 = scmp.eq.s32.totalorder %s16, 1
      %p55 = por %p53, %p54
      %p56 = scmp.ne.s32.totalorder %s45, %s46
      %p57 = scmp.eq.s32.totalorder %s16, 0
      %p58 = por %p56, %p57
      %p59 = scmp.ne.s32.totalorder %s45, %s46
      %p60 = scmp.eq.s32.totalorder %s17, 1
      %p61 = por %p59, %p60
      %p63 = scmp.ne.s32.totalorder %s46, %s62
      %p64 = scmp.eq.s32.totalorder %s17, 0
      %p65 = por %p63, %p64
      %s66 = ssub.s32 %s18, %s37
      %s67 = ssub.s32 %s20, %s29
      %s68 = sor.u32 %s66, %s67
      %p69 = scmp.eq.s32.totalorder %s68, 0
      %s71 = sadd.s32 %s70, 1
      %s72 = scalar_select %p69, %s70, %s71
      %p75 = pneg %p69
      %p76 = scmp.eq.s32.totalorder %s11, 1
      %p77 = por %p75, %p76
      %p78 = scmp.ne.s32.totalorder %s70, %s73
      %p79 = scmp.eq.s32.totalorder %s11, 0
      %p80 = por %p78, %p79
      %p81 = scmp.ne.s32.totalorder %s70, %s73
      %p82 = scmp.eq.s32.totalorder %s16, 1
      %p83 = por %p81, %p82
      %p84 = scmp.ne.s32.totalorder %s73, %s74
      %p85 = scmp.eq.s32.totalorder %s16, 0
      %p86 = por %p84, %p85
      %p87 = scmp.ne.s32.totalorder %s73, %s74
      %p88 = scmp.eq.s32.totalorder %s17, 1
      %p89 = por %p87, %p88
      %p91 = scmp.ne.s32.totalorder %s74, %s90
      %p92 = scmp.eq.s32.totalorder %s17, 0
      %p93 = por %p91, %p92
      %s94 = ssub.s32 %s18, %s37
      %s95 = ssub.s32 %s20, %s29
      %s96 = sor.u32 %s94, %s95
      %p97 = scmp.eq.s32.totalorder %s96, 0
      %s99 = sadd.s32 %s98, 1
      %s100 = scalar_select %p97, %s98, %s99
      %p103 = pneg %p97
      %p104 = scmp.eq.s32.totalorder %s11, 1
      %p105 = por %p103, %p104
      %p106 = scmp.ne.s32.totalorder %s98, %s101
      %p107 = scmp.eq.s32.totalorder %s11, 0
      %p108 = por %p106, %p107
      %p109 = scmp.ne.s32.totalorder %s98, %s101
      %p110 = scmp.eq.s32.totalorder %s16, 1
      %p111 = por %p109, %p110
      %p112 = scmp.ne.s32.totalorder %s101, %s102
      %p113 = scmp.eq.s32.totalorder %s16, 0
      %p114 = por %p112, %p113
      %p115 = scmp.ne.s32.totalorder %s101, %s102
      %p116 = scmp.eq.s32.totalorder %s17, 1
      %p117 = por %p115, %p116
      %p119 = scmp.ne.s32.totalorder %s102, %s118
      %p120 = scmp.eq.s32.totalorder %s17, 0
      %p121 = por %p119, %p120
      %s123 = sadd.s32 %s122, 1
      %p126 = scmp.eq.s32.totalorder %s11, 1
      %p127 = scmp.ne.s32.totalorder %s122, %s124
      %p128 = scmp.eq.s32.totalorder %s11, 0
      %p129 = por %p127, %p128
      %p130 = scmp.ne.s32.totalorder %s122, %s124
      %p131 = scmp.eq.s32.totalorder %s16, 1
      %p132 = por %p130, %p131
      %p133 = scmp.ne.s32.totalorder %s124, %s125
      %p134 = scmp.eq.s32.totalorder %s16, 0
      %p135 = por %p133, %p134
      %p136 = scmp.ne.s32.totalorder %s124, %s125
      %p137 = scmp.eq.s32.totalorder %s17, 1
      %p138 = por %p136, %p137
      %p140 = scmp.ne.s32.totalorder %s125, %s139
      %p141 = scmp.eq.s32.totalorder %s17, 0
      %p142 = por %p140, %p141
      %s144 = sadd.s32 %s143, 1
      %p147 = scmp.eq.s32.totalorder %s11, 1
      %p148 = scmp.ne.s32.totalorder %s143, %s145
      %p149 = scmp.eq.s32.totalorder %s11, 0
      %p150 = por %p148, %p149
      %p151 = scmp.ne.s32.totalorder %s143, %s145
      %p152 = scmp.eq.s32.totalorder %s16, 1
      %p153 = por %p151, %p152
      %p154 = scmp.ne.s32.totalorder %s145, %s146
      %p155 = scmp.eq.s32.totalorder %s16, 0
      %p156 = por %p154, %p155
      %p157 = scmp.ne.s32.totalorder %s145, %s146
      %p158 = scmp.eq.s32.totalorder %s17, 1
      %p159 = por %p157, %p158
      %p161 = scmp.ne.s32.totalorder %s146, %s160
      %p162 = scmp.eq.s32.totalorder %s17, 0
      %p163 = por %p161, %p162
      %s164 = ssub.s32 %s18, %s37
      %s165 = ssub.s32 %s19, %s33
      %s166 = sor.u32 %s164, %s165
      %p167 = scmp.eq.s32.totalorder %s166, 0
      %s169 = sadd.s32 %s168, 1
      %s170 = scalar_select %p167, %s168, %s169
      %p173 = pneg %p167
      %p174 = scmp.eq.s32.totalorder %s11, 1
      %p175 = por %p173, %p174
      %p176 = scmp.ne.s32.totalorder %s168, %s171
      %p177 = scmp.eq.s32.totalorder %s11, 0
      %p178 = por %p176, %p177
      %p179 = scmp.ne.s32.totalorder %s168, %s171
      %p180 = scmp.eq.s32.totalorder %s16, 1
      %p181 = por %p179, %p180
      %p182 = scmp.ne.s32.totalorder %s171, %s172
      %p183 = scmp.eq.s32.totalorder %s16, 0
      %p184 = por %p182, %p183
      %p185 = scmp.ne.s32.totalorder %s171, %s172
      %p186 = scmp.eq.s32.totalorder %s17, 1
      %p187 = por %p185, %p186
      %p189 = scmp.ne.s32.totalorder %s172, %s188
      %p190 = scmp.eq.s32.totalorder %s17, 0
      %p191 = por %p189, %p190
      %p192 = scmp.le.s32.totalorder 1, %s11
      %p193 = scmp.lt.s32.totalorder %s11, 3
      %p194 = pnand %p192, %p193
      %p195 = pneg %p194
      // Predicated region
      $region9: #{block_forward.4} parent=5 // pred_check
        _
      $region10: #{block_forward.4} parent=5 // pred_check_branch
        %197 = sbr.rel (%p194) target = $region12
      $region11: #{block_forward.4} parent=5 // pred_region
        %s198 = ssub.s32 %s11, 1
        // Predicated region
        $region13: #{block_forward.4} parent=11 // pred_check
          %p199 = pneg %p86
        $region14: #{block_forward.4} parent=11 // pred_check_branch
          %201 = sbr.rel (%p199) target = $region16
        $region15: #{block_forward.4} parent=11 // pred_region
          %s202 = smul.u32 4, %s23
          %s203 = smul.addr %s202, 3
          %s204 = sadd.s32 1, %s203
          %s205 = smul.addr %s21, 12
          %s206 = sadd.s32 %s204, %s205
          %s207 = smul.addr %s206, 8
          %s208 = scalar_lea.vmem %s1, %s207
          // Predicated region
          $region17: #{block_forward.4} parent=15 // pred_check
            _
          $region18: #{block_forward.4} parent=15 // pred_check_branch
            %210 = sbr.rel (0) target = $region20
          $region19: #{block_forward.4} parent=15 // pred_region
            // Predicated region
            $region21: #{block_forward.4} parent=19 // pred_check
              _
            $region22: #{block_forward.4} parent=19 // pred_check_branch
              %212 = sbr.rel (0) target = $region24
            $region23: #{block_forward.4} parent=19 // pred_region
              // Predicated region
              $region36: #{block_forward.4} parent=23 // pred_check
                _
              $region37: #{block_forward.4} parent=23 // pred_check_branch
                %234 = sbr.rel (0) target = $region39
              $region38: #{block_forward.4} parent=23 // pred_region
                loop: start=0, step=1, limit=1
                $region40: #{block_forward.4} parent=38 // loop_pre_header
                  _
                $region41: #{block_forward.4} parent=38 // loop_header
                  %s236 = sphi 0, %s240
                  %p237 = scmp.ge.s32.totalorder %s236, 1
                  %s241 = sphi %s208, %s208
                  %s242 = sphi [#allocation6], [#allocation6]
                $region42: #{block_forward.4} parent=38 // loop_header_branch
                  %239 = sbr.rel (%p237) target = $region46
                $region43: #{block_forward.4} parent=38 // loop_body
                  %v243 = vld [vmem:[%s241] sm:$0xff]
                  %244 = vst [vmem:[%s242] sm:$0xff] %v243
                  %v245 = vld [vmem:[%s241 + $0x18] sm:$0xff]
                  %246 = vst [vmem:[%s242 + $0x8] sm:$0xff] %v245
                  %v247 = vld [vmem:[%s241 + $0x30] sm:$0xff]
                  %248 = vst [vmem:[%s242 + $0x10] sm:$0xff] %v247
                  %v249 = vld [vmem:[%s241 + $0x48] sm:$0xff]
                  %250 = vst [vmem:[%s242 + $0x18] sm:$0xff] %v249
                $region44: #{block_forward.4} parent=38 // loop_footer
                  %s240 = sadd.s32 1, %s236
                $region45: #{block_forward.4} parent=38 // loop_footer_branch
                  %235 = sbr.rel target = $region41
                $region46: #{block_forward.4} parent=38 // loop_exit
                  _
              $region39: #{block_forward.4} parent=23 // pred_fallthru
                _
              // Predicated region
              $region47: #{block_forward.4} parent=23 // pred_check
                _
              $region48: #{block_forward.4} parent=23 // pred_check_branch
                %252 = sbr.rel target = $region50
              $region49: #{block_forward.4} parent=23 // pred_region
                _
              $region50: #{block_forward.4} parent=23 // pred_fallthru
                _
            $region24: #{block_forward.4} parent=19 // pred_fallthru
              _
            // Predicated region
            $region25: #{block_forward.4} parent=19 // pred_check
              _
            $region26: #{block_forward.4} parent=19 // pred_check_branch
              %214 = sbr.rel target = $region28
            $region27: #{block_forward.4} parent=19 // pred_region
              %s216 = ssub.s32 256, 1
              loop: start=0, step=1, limit=1
              $region29: #{block_forward.4} parent=27 // loop_pre_header
                _
              $region30: #{block_forward.4} parent=27 // loop_header
                %s218 = sphi 0, %s222
                %p219 = scmp.ge.s32.totalorder %s218, 1
                %s223 = sphi %s208, %s208
                %s224 = sphi [#allocation6], [#allocation6]
              $region31: #{block_forward.4} parent=27 // loop_header_branch
                %221 = sbr.rel (%p219) target = $region35
              $region32: #{block_forward.4} parent=27 // loop_body
                %v225 = vld [vmem:[%s223] sm:%s216]
                %226 = vst [vmem:[%s224] sm:%s216] %v225
                %v227 = vld [vmem:[%s223 + $0x18] sm:%s216]
                %228 = vst [vmem:[%s224 + $0x8] sm:%s216] %v227
                %v229 = vld [vmem:[%s223 + $0x30] sm:%s216]
                %230 = vst [vmem:[%s224 + $0x10] sm:%s216] %v229
                %v231 = vld [vmem:[%s223 + $0x48] sm:%s216]
                %232 = vst [vmem:[%s224 + $0x18] sm:%s216] %v231
              $region33: #{block_forward.4} parent=27 // loop_footer
                %s222 = sadd.s32 1, %s218
              $region34: #{block_forward.4} parent=27 // loop_footer_branch
                %217 = sbr.rel target = $region30
              $region35: #{block_forward.4} parent=27 // loop_exit
                _
            $region28: #{block_forward.4} parent=19 // pred_fallthru
              _
          $region20: #{block_forward.4} parent=15 // pred_fallthru
            _
          %253 = vnop
        $region16: #{block_forward.4} parent=11 // pred_fallthru
          _
        // Predicated region
        $region51: #{block_forward.4} parent=11 // pred_check
          %p254 = pneg %p114
        $region52: #{block_forward.4} parent=11 // pred_check_branch
          %256 = sbr.rel (%p254) target = $region54
        $region53: #{block_forward.4} parent=11 // pred_region
          %s257 = smul.u32 4, %s23
          %s258 = smul.addr %s257, 3
          %s259 = sadd.s32 2, %s258
          %s260 = smul.addr %s21, 12
          %s261 = sadd.s32 %s259, %s260
          %s262 = smul.addr %s261, 8
          %s263 = scalar_lea.vmem %s2, %s262
          // Predicated region
          $region55: #{block_forward.4} parent=53 // pred_check
            _
          $region56: #{block_forward.4} parent=53 // pred_check_branch
            %265 = sbr.rel (0) target = $region58
          $region57: #{block_forward.4} parent=53 // pred_region
            // Predicated region
            $region59: #{block_forward.4} parent=57 // pred_check
              _
            $region60: #{block_forward.4} parent=57 // pred_check_branch
              %267 = sbr.rel (0) target = $region62
            $region61: #{block_forward.4} parent=57 // pred_region
              // Predicated region
              $region74: #{block_forward.4} parent=61 // pred_check
                _
              $region75: #{block_forward.4} parent=61 // pred_check_branch
                %289 = sbr.rel (0) target = $region77
              $region76: #{block_forward.4} parent=61 // pred_region
                loop: start=0, step=1, limit=1
                $region78: #{block_forward.4} parent=76 // loop_pre_header
                  _
                $region79: #{block_forward.4} parent=76 // loop_header
                  %s291 = sphi 0, %s295
                  %p292 = scmp.ge.s32.totalorder %s291, 1
                  %s296 = sphi %s263, %s263
                  %s297 = sphi [#allocation7], [#allocation7]
                $region80: #{block_forward.4} parent=76 // loop_header_branch
                  %294 = sbr.rel (%p292) target = $region84
                $region81: #{block_forward.4} parent=76 // loop_body
                  %v298 = vld [vmem:[%s296] sm:$0xff]
                  %299 = vst [vmem:[%s297] sm:$0xff] %v298
                  %v300 = vld [vmem:[%s296 + $0x18] sm:$0xff]
                  %301 = vst [vmem:[%s297 + $0x8] sm:$0xff] %v300
                  %v302 = vld [vmem:[%s296 + $0x30] sm:$0xff]
                  %303 = vst [vmem:[%s297 + $0x10] sm:$0xff] %v302
                  %v304 = vld [vmem:[%s296 + $0x48] sm:$0xff]
                  %305 = vst [vmem:[%s297 + $0x18] sm:$0xff] %v304
                $region82: #{block_forward.4} parent=76 // loop_footer
                  %s295 = sadd.s32 1, %s291
                $region83: #{block_forward.4} parent=76 // loop_footer_branch
                  %290 = sbr.rel target = $region79
                $region84: #{block_forward.4} parent=76 // loop_exit
                  _
              $region77: #{block_forward.4} parent=61 // pred_fallthru
                _
              // Predicated region
              $region85: #{block_forward.4} parent=61 // pred_check
                _
              $region86: #{block_forward.4} parent=61 // pred_check_branch
                %307 = sbr.rel target = $region88
              $region87: #{block_forward.4} parent=61 // pred_region
                _
              $region88: #{block_forward.4} parent=61 // pred_fallthru
                _
            $region62: #{block_forward.4} parent=57 // pred_fallthru
              _
            // Predicated region
            $region63: #{block_forward.4} parent=57 // pred_check
              _
            $region64: #{block_forward.4} parent=57 // pred_check_branch
              %269 = sbr.rel target = $region66
            $region65: #{block_forward.4} parent=57 // pred_region
              %s271 = ssub.s32 256, 1
              loop: start=0, step=1, limit=1
              $region67: #{block_forward.4} parent=65 // loop_pre_header
                _
              $region68: #{block_forward.4} parent=65 // loop_header
                %s273 = sphi 0, %s277
                %p274 = scmp.ge.s32.totalorder %s273, 1
                %s278 = sphi %s263, %s263
                %s279 = sphi [#allocation7], [#allocation7]
              $region69: #{block_forward.4} parent=65 // loop_header_branch
                %276 = sbr.rel (%p274) target = $region73
              $region70: #{block_forward.4} parent=65 // loop_body
                %v280 = vld [vmem:[%s278] sm:%s271]
                %281 = vst [vmem:[%s279] sm:%s271] %v280
                %v282 = vld [vmem:[%s278 + $0x18] sm:%s271]
                %283 = vst [vmem:[%s279 + $0x8] sm:%s271] %v282
                %v284 = vld [vmem:[%s278 + $0x30] sm:%s271]
                %285 = vst [vmem:[%s279 + $0x10] sm:%s271] %v284
                %v286 = vld [vmem:[%s278 + $0x48] sm:%s271]
                %287 = vst [vmem:[%s279 + $0x18] sm:%s271] %v286
              $region71: #{block_forward.4} parent=65 // loop_footer
                %s277 = sadd.s32 1, %s273
              $region72: #{block_forward.4} parent=65 // loop_footer_branch
                %272 = sbr.rel target = $region68
              $region73: #{block_forward.4} parent=65 // loop_exit
                _
            $region66: #{block_forward.4} parent=57 // pred_fallthru
              _
          $region58: #{block_forward.4} parent=53 // pred_fallthru
            _
          %308 = vnop
        $region54: #{block_forward.4} parent=11 // pred_fallthru
          _
        // Predicated region
        $region89: #{block_forward.4} parent=11 // pred_check
          %p309 = pneg %p135
        $region90: #{block_forward.4} parent=11 // pred_check_branch
          %311 = sbr.rel (%p309) target = $region92
        $region91: #{block_forward.4} parent=11 // pred_region
          _
        $region92: #{block_forward.4} parent=11 // pred_fallthru
          _
        // Predicated region
        $region93: #{block_forward.4} parent=11 // pred_check
          %p312 = pneg %p156
        $region94: #{block_forward.4} parent=11 // pred_check_branch
          %314 = sbr.rel (%p312) target = $region96
        $region95: #{block_forward.4} parent=11 // pred_region
          _
        $region96: #{block_forward.4} parent=11 // pred_fallthru
          _
      $region12: #{block_forward.4} parent=5 // pred_fallthru
        _
      %p315 = scmp.lt.s32.totalorder %s11, 2
      // Predicated region
      $region97: #{block_forward.4} parent=5 // pred_check
        %p316 = pneg %p315
      $region98: #{block_forward.4} parent=5 // pred_check_branch
        %318 = sbr.rel (%p316) target = $region100
      $region99: #{block_forward.4} parent=5 // pred_region
        // Predicated region
        $region101: #{block_forward.4} parent=99 // pred_check
          %p319 = pneg %p52
        $region102: #{block_forward.4} parent=99 // pred_check_branch
          %321 = sbr.rel (%p319) target = $region104
        $region103: #{block_forward.4} parent=99 // pred_region
          %s322 = sand.u32 %s42, 1
          %s323 = sand.u32 %s42, 1
          %s324 = smul.addr %s323, 32
          %s325 = scalar_lea.vmem [#allocation5], %s324
          %s326 = smul.u32 4, %s19
          %s327 = smul.addr %s326, 3
          %s328 = smul.addr %s18, 12
          %s329 = sadd.s32 %s327, %s328
          %s330 = smul.addr %s329, 8
          %s331 = scalar_lea.vmem %s0, %s330
          // Predicated region
          $region105: #{block_forward.4} parent=103 // pred_check
            _
          $region106: #{block_forward.4} parent=103 // pred_check_branch
            %333 = sbr.rel (0) target = $region108
          $region107: #{block_forward.4} parent=103 // pred_region
            // Predicated region
            $region109: #{block_forward.4} parent=107 // pred_check
              _
            $region110: #{block_forward.4} parent=107 // pred_check_branch
              %335 = sbr.rel (0) target = $region112
            $region111: #{block_forward.4} parent=107 // pred_region
              // Predicated region
              $region124: #{block_forward.4} parent=111 // pred_check
                _
              $region125: #{block_forward.4} parent=111 // pred_check_branch
                %357 = sbr.rel (0) target = $region127
              $region126: #{block_forward.4} parent=111 // pred_region
                loop: start=0, step=1, limit=1
                $region128: #{block_forward.4} parent=126 // loop_pre_header
                  _
                $region129: #{block_forward.4} parent=126 // loop_header
                  %s359 = sphi 0, %s363
                  %p360 = scmp.ge.s32.totalorder %s359, 1
                  %s364 = sphi %s331, %s331
                  %s365 = sphi %s325, %s325
                $region130: #{block_forward.4} parent=126 // loop_header_branch
                  %362 = sbr.rel (%p360) target = $region134
                $region131: #{block_forward.4} parent=126 // loop_body
                  %v366 = vld [vmem:[%s364] sm:$0xff]
                  %367 = vst [vmem:[%s365] sm:$0xff] %v366
                  %v368 = vld [vmem:[%s364 + $0x18] sm:$0xff]
                  %369 = vst [vmem:[%s365 + $0x8] sm:$0xff] %v368
                  %v370 = vld [vmem:[%s364 + $0x30] sm:$0xff]
                  %371 = vst [vmem:[%s365 + $0x10] sm:$0xff] %v370
                  %v372 = vld [vmem:[%s364 + $0x48] sm:$0xff]
                  %373 = vst [vmem:[%s365 + $0x18] sm:$0xff] %v372
                $region132: #{block_forward.4} parent=126 // loop_footer
                  %s363 = sadd.s32 1, %s359
                $region133: #{block_forward.4} parent=126 // loop_footer_branch
                  %358 = sbr.rel target = $region129
                $region134: #{block_forward.4} parent=126 // loop_exit
                  _
              $region127: #{block_forward.4} parent=111 // pred_fallthru
                _
              // Predicated region
              $region135: #{block_forward.4} parent=111 // pred_check
                _
              $region136: #{block_forward.4} parent=111 // pred_check_branch
                %375 = sbr.rel target = $region138
              $region137: #{block_forward.4} parent=111 // pred_region
                _
              $region138: #{block_forward.4} parent=111 // pred_fallthru
                _
            $region112: #{block_forward.4} parent=107 // pred_fallthru
              _
            // Predicated region
            $region113: #{block_forward.4} parent=107 // pred_check
              _
            $region114: #{block_forward.4} parent=107 // pred_check_branch
              %337 = sbr.rel target = $region116
            $region115: #{block_forward.4} parent=107 // pred_region
              %s339 = ssub.s32 256, 1
              loop: start=0, step=1, limit=1
              $region117: #{block_forward.4} parent=115 // loop_pre_header
                _
              $region118: #{block_forward.4} parent=115 // loop_header
                %s341 = sphi 0, %s345
                %p342 = scmp.ge.s32.totalorder %s341, 1
                %s346 = sphi %s331, %s331
                %s347 = sphi %s325, %s325
              $region119: #{block_forward.4} parent=115 // loop_header_branch
                %344 = sbr.rel (%p342) target = $region123
              $region120: #{block_forward.4} parent=115 // loop_body
                %v348 = vld [vmem:[%s346] sm:%s339]
                %349 = vst [vmem:[%s347] sm:%s339] %v348
                %v350 = vld [vmem:[%s346 + $0x18] sm:%s339]
                %351 = vst [vmem:[%s347 + $0x8] sm:%s339] %v350
                %v352 = vld [vmem:[%s346 + $0x30] sm:%s339]
                %353 = vst [vmem:[%s347 + $0x10] sm:%s339] %v352
                %v354 = vld [vmem:[%s346 + $0x48] sm:%s339]
                %355 = vst [vmem:[%s347 + $0x18] sm:%s339] %v354
              $region121: #{block_forward.4} parent=115 // loop_footer
                %s345 = sadd.s32 1, %s341
              $region122: #{block_forward.4} parent=115 // loop_footer_branch
                %340 = sbr.rel target = $region118
              $region123: #{block_forward.4} parent=115 // loop_exit
                _
            $region116: #{block_forward.4} parent=107 // pred_fallthru
              _
          $region108: #{block_forward.4} parent=103 // pred_fallthru
            _
          %376 = vnop
        $region104: #{block_forward.4} parent=99 // pred_fallthru
          _
      $region100: #{block_forward.4} parent=5 // pred_fallthru
        _
      %p377 = scmp.le.s32.totalorder 1, %s11
      %p378 = scmp.lt.s32.totalorder %s11, 3
      %p379 = pnand %p377, %p378
      %p380 = pneg %p379
      // Predicated region
      $region139: #{block_forward.4} parent=5 // pred_check
        _
      $region140: #{block_forward.4} parent=5 // pred_check_branch
        %382 = sbr.rel (%p379) target = $region142
      $region141: #{block_forward.4} parent=5 // pred_region
        %s383 = ssub.s32 %s11, 1
        %s384 = sand.u32 %s45, 1
        %s385 = sand.u32 %s45, 1
        %s386 = smul.addr %s385, 32
        %s387 = scalar_lea.vmem [#allocation5], %s386
        // Predicated region
        $region143: #{block_forward.4} parent=141 // pred_check
          %p388 = pneg %p58
        $region144: #{block_forward.4} parent=141 // pred_check_branch
          %390 = sbr.rel (%p388) target = $region146
        $region145: #{block_forward.4} parent=141 // pred_region
          _
        $region146: #{block_forward.4} parent=141 // pred_fallthru
          _
        // Predicated region
        $region147: #{block_forward.4} parent=141 // pred_check
          %p391 = pneg %p86
        $region148: #{block_forward.4} parent=141 // pred_check_branch
          %393 = sbr.rel (%p391) target = $region150
        $region149: #{block_forward.4} parent=141 // pred_region
          _
        $region150: #{block_forward.4} parent=141 // pred_fallthru
          _
        // Predicated region
        $region151: #{block_forward.4} parent=141 // pred_check
          %p394 = pneg %p114
        $region152: #{block_forward.4} parent=141 // pred_check_branch
          %396 = sbr.rel (%p394) target = $region154
        $region153: #{block_forward.4} parent=141 // pred_region
          _
        $region154: #{block_forward.4} parent=141 // pred_fallthru
          _
        %s397 = sand.u32 %s45, 1
        %s398 = sand.u32 %s45, 1
        %s399 = smul.addr %s398, 32
        %s400 = scalar_lea.vmem [#allocation5], %s399
        %p401 = pneg %p58
        %p402 = pneg %p55
        %p403 = pneg %p86
        %p404 = pneg %p83
        %p405 = pneg %p114
        %p406 = pneg %p111
        %p407 = pneg %p135
        %p408 = pneg %p132
        %p409 = pneg %p156
        %p410 = pneg %p153
        %p411 = pneg %p184
        %p412 = pneg %p181
        %s413 = smul.u32 4, %s22
        %p414 = scmp.lt.s32.totalorder %s21, 1
        %s415 = scalar_select %p414, %s21, 1
        %p416 = scmp.lt.s32.totalorder %s413, 3
        %s417 = scalar_select %p416, %s413, 3
        %s418 = smul.addr %s415, 4
        %s419 = sadd.s32 %s417, %s418
        %s420 = smul.addr %s419, 8
        %s421 = scalar_lea.vmem %s5, %s420
        %s422 = smul.u32 4, %s22
        %s423 = smul.u32 4, %s23
        %s424 = smul.u32 4, %s23
        %s425 = smul.u32 4, %s22
        %p426 = scmp.lt.s32.totalorder %s21, 1
        %s427 = scalar_select %p426, %s21, 1
        %p428 = scmp.lt.s32.totalorder %s425, 3
        %s429 = scalar_select %p428, %s425, 3
        %s430 = smul.addr %s427, 4
        %s431 = sadd.s32 %s429, %s430
        %s432 = smul.addr %s431, 8
        %s433 = scalar_lea.vmem %s5, %s432
        %s434 = smul.u32 4, %s22
        %p435 = scmp.eq.s32.totalorder %s23, 0
        // Predicated region
        $region155: #{block_forward.4} parent=141 // pred_check
          %p436 = pneg %p435
        $region156: #{block_forward.4} parent=141 // pred_check_branch
          %438 = sbr.rel (%p436) target = $region158
        $region157: #{block_forward.4} parent=141 // pred_region
          %vm439 = vcmask 7168
          %440 = vst.msk [vmem:[#allocation2] sm:$0xff] %vm439, -inf
          %441 = vst.msk [vmem:[#allocation2 + $0x8] sm:$0xff] %vm439, -inf
          %442 = vst.msk [vmem:[#allocation2 + $0x10] sm:$0xff] %vm439, -inf
          %443 = vst.msk [vmem:[#allocation2 + $0x18] sm:$0xff] %vm439, -inf
          %444 = vst.msk [vmem:[#allocation2 + $0x20] sm:$0xff] %vm439, -inf
          %445 = vst.msk [vmem:[#allocation2 + $0x28] sm:$0xff] %vm439, -inf
          %446 = vst.msk [vmem:[#allocation2 + $0x30] sm:$0xff] %vm439, -inf
          %447 = vst.msk [vmem:[#allocation2 + $0x38] sm:$0xff] %vm439, -inf
          %448 = vst.msk [vmem:[#allocation2 + $0x40] sm:$0xff] %vm439, -inf
          %449 = vst.msk [vmem:[#allocation2 + $0x48] sm:$0xff] %vm439, -inf
          %450 = vst.msk [vmem:[#allocation2 + $0x50] sm:$0xff] %vm439, -inf
          %451 = vst.msk [vmem:[#allocation2 + $0x58] sm:$0xff] %vm439, -inf
          %452 = vst.msk [vmem:[#allocation2 + $0x60] sm:$0xff] %vm439, -inf
          %453 = vst.msk [vmem:[#allocation2 + $0x68] sm:$0xff] %vm439, -inf
          %454 = vst.msk [vmem:[#allocation2 + $0x70] sm:$0xff] %vm439, -inf
          %455 = vst.msk [vmem:[#allocation2 + $0x78] sm:$0xff] %vm439, -inf
          %456 = vst.msk [vmem:[#allocation3] sm:$0xff] %vm439, 0.0
          %457 = vst.msk [vmem:[#allocation3 + $0x8] sm:$0xff] %vm439, 0.0
          %458 = vst.msk [vmem:[#allocation3 + $0x10] sm:$0xff] %vm439, 0.0
          %459 = vst.msk [vmem:[#allocation3 + $0x18] sm:$0xff] %vm439, 0.0
          %460 = vst.msk [vmem:[#allocation3 + $0x20] sm:$0xff] %vm439, 0.0
          %461 = vst.msk [vmem:[#allocation3 + $0x28] sm:$0xff] %vm439, 0.0
          %462 = vst.msk [vmem:[#allocation3 + $0x30] sm:$0xff] %vm439, 0.0
          %463 = vst.msk [vmem:[#allocation3 + $0x38] sm:$0xff] %vm439, 0.0
          %464 = vst.msk [vmem:[#allocation3 + $0x40] sm:$0xff] %vm439, 0.0
          %465 = vst.msk [vmem:[#allocation3 + $0x48] sm:$0xff] %vm439, 0.0
          %466 = vst.msk [vmem:[#allocation3 + $0x50] sm:$0xff] %vm439, 0.0
          %467 = vst.msk [vmem:[#allocation3 + $0x58] sm:$0xff] %vm439, 0.0
          %468 = vst.msk [vmem:[#allocation3 + $0x60] sm:$0xff] %vm439, 0.0
          %469 = vst.msk [vmem:[#allocation3 + $0x68] sm:$0xff] %vm439, 0.0
          %470 = vst.msk [vmem:[#allocation3 + $0x70] sm:$0xff] %vm439, 0.0
          %471 = vst.msk [vmem:[#allocation3 + $0x78] sm:$0xff] %vm439, 0.0
          %vm472 = vcmask 261120
          %473 = vst.msk [vmem:[#allocation4] sm:$0xff] %vm472, 0.0
          %474 = vst.msk [vmem:[#allocation4 + $0x8] sm:$0xff] %vm472, 0.0
          %475 = vst.msk [vmem:[#allocation4 + $0x10] sm:$0xff] %vm472, 0.0
          %476 = vst.msk [vmem:[#allocation4 + $0x18] sm:$0xff] %vm472, 0.0
          %477 = vst.msk [vmem:[#allocation4 + $0x20] sm:$0xff] %vm472, 0.0
          %478 = vst.msk [vmem:[#allocation4 + $0x28] sm:$0xff] %vm472, 0.0
          %479 = vst.msk [vmem:[#allocation4 + $0x30] sm:$0xff] %vm472, 0.0
          %480 = vst.msk [vmem:[#allocation4 + $0x38] sm:$0xff] %vm472, 0.0
          %481 = vst.msk [vmem:[#allocation4 + $0x40] sm:$0xff] %vm472, 0.0
          %482 = vst.msk [vmem:[#allocation4 + $0x48] sm:$0xff] %vm472, 0.0
          %483 = vst.msk [vmem:[#allocation4 + $0x50] sm:$0xff] %vm472, 0.0
          %484 = vst.msk [vmem:[#allocation4 + $0x58] sm:$0xff] %vm472, 0.0
          %485 = vst.msk [vmem:[#allocation4 + $0x60] sm:$0xff] %vm472, 0.0
          %486 = vst.msk [vmem:[#allocation4 + $0x68] sm:$0xff] %vm472, 0.0
          %487 = vst.msk [vmem:[#allocation4 + $0x70] sm:$0xff] %vm472, 0.0
          %488 = vst.msk [vmem:[#allocation4 + $0x78] sm:$0xff] %vm472, 0.0
        $region158: #{block_forward.4} parent=141 // pred_fallthru
          _
        %v489 = vld [vmem:[%s387] sm:$0xff]
        %v490 = vld [vmem:[%s387 + $0x8] sm:$0xff]
        %v491 = vld [vmem:[%s387 + $0x10] sm:$0xff]
        %v492 = vld [vmem:[%s387 + $0x18] sm:$0xff]
        %497 = vrot.lane.b32.xlu0 %v489, 96
        %v498 = vpop.permute.xlu0 %497
        %499 = vrot.lane.b32.xlu0 %v490, 96
        %v500 = vpop.permute.xlu0 %499
        %501 = vrot.lane.b32.xlu0 %v491, 96
        %v502 = vpop.permute.xlu0 %501
        %503 = vrot.lane.b32.xlu0 %v492, 96
        %v504 = vpop.permute.xlu0 %503
        %509 = vrot.lane.b32.xlu0 %v489, 64
        %v510 = vpop.permute.xlu0 %509
        %511 = vrot.lane.b32.xlu0 %v490, 64
        %v512 = vpop.permute.xlu0 %511
        %513 = vrot.lane.b32.xlu0 %v491, 64
        %v514 = vpop.permute.xlu0 %513
        %515 = vrot.lane.b32.xlu0 %v492, 64
        %v516 = vpop.permute.xlu0 %515
        %521 = vrot.lane.b32.xlu0 %v489, 32
        %v522 = vpop.permute.xlu0 %521
        %523 = vrot.lane.b32.xlu0 %v490, 32
        %v524 = vpop.permute.xlu0 %523
        %525 = vrot.lane.b32.xlu0 %v491, 32
        %v526 = vpop.permute.xlu0 %525
        %527 = vrot.lane.b32.xlu0 %v492, 32
        %v528 = vpop.permute.xlu0 %527
        %v533 = vrot.slane %v510, 4
        %vm534 = vcmask 1047556
        %v535 = vsel %vm534, %v533, %v489
        %v536 = vrot.slane %v489, 4
        %v537 = vsel %vm534, %v510, %v536
        %v539 = vunpack.c.l.s4 1983009808
        %v540 = vunpack.c.0.s8 %v539
        %v541 = vperm.slane %v535, %v540
        %v543 = vunpack.c.l.s4 1983009808
        %v544 = vunpack.c.0.s8 %v543
        %v545 = vperm.slane %v537, %v544
        %v546 = vrot.slane %v522, 4
        %v547 = vsel %vm534, %v546, %v498
        %v548 = vrot.slane %v498, 4
        %v549 = vsel %vm534, %v522, %v548
        %v551 = vunpack.c.l.s4 1983009808
        %v552 = vunpack.c.0.s8 %v551
        %v553 = vperm.slane %v547, %v552
        %v555 = vunpack.c.l.s4 1983009808
        %v556 = vunpack.c.0.s8 %v555
        %v557 = vperm.slane %v549, %v556
        %v558 = vrot.slane %v553, 4
        %v559 = vsel %vm534, %v558, %v541
        %v560 = vrot.slane %v541, 4
        %v561 = vsel %vm534, %v553, %v560
        %v563 = vunpack.c.l.s4 1934713408
        %v564 = vunpack.c.0.s8 %v563
        %v565 = vperm.slane %v559, %v564
        %v567 = vunpack.c.l.s4 1934713408
        %v568 = vunpack.c.0.s8 %v567
        %v569 = vperm.slane %v561, %v568
        %v570 = vrot.slane %v557, 4
        %v571 = vsel %vm534, %v570, %v545
        %v572 = vrot.slane %v545, 4
        %v573 = vsel %vm534, %v557, %v572
        %v575 = vunpack.c.l.s4 1934713408
        %v576 = vunpack.c.0.s8 %v575
        %v577 = vperm.slane %v571, %v576
        %v579 = vunpack.c.l.s4 1934713408
        %v580 = vunpack.c.0.s8 %v579
        %v581 = vperm.slane %v573, %v580
        %v582 = vrot.slane %v565, 4
        %v583 = vsel %vm534, 0.0, %v582
        %v584 = vrot.slane %v569, 4
        %v585 = vsel %vm534, 0.0, %v584
        %v586 = vrot.slane %v577, 4
        %v587 = vsel %vm534, 0.0, %v586
        %v588 = vrot.slane %v581, 4
        %v589 = vsel %vm534, 0.0, %v588
        %v590 = vrot.slane %v512, 4
        %v591 = vsel %vm534, %v590, %v490
        %v592 = vrot.slane %v490, 4
        %v593 = vsel %vm534, %v512, %v592
        %v595 = vunpack.c.l.s4 1983009808
        %v596 = vunpack.c.0.s8 %v595
        %v597 = vperm.slane %v591, %v596
        %v599 = vunpack.c.l.s4 1983009808
        %v600 = vunpack.c.0.s8 %v599
        %v601 = vperm.slane %v593, %v600
        %v602 = vrot.slane %v524, 4
        %v603 = vsel %vm534, %v602, %v500
        %v604 = vrot.slane %v500, 4
        %v605 = vsel %vm534, %v524, %v604
        %v607 = vunpack.c.l.s4 1983009808
        %v608 = vunpack.c.0.s8 %v607
        %v609 = vperm.slane %v603, %v608
        %v611 = vunpack.c.l.s4 1983009808
        %v612 = vunpack.c.0.s8 %v611
        %v613 = vperm.slane %v605, %v612
        %v614 = vrot.slane %v609, 4
        %v615 = vsel %vm534, %v614, %v597
        %v616 = vrot.slane %v597, 4
        %v617 = vsel %vm534, %v609, %v616
        %v619 = vunpack.c.l.s4 1934713408
        %v620 = vunpack.c.0.s8 %v619
        %v621 = vperm.slane %v615, %v620
        %v623 = vunpack.c.l.s4 1934713408
        %v624 = vunpack.c.0.s8 %v623
        %v625 = vperm.slane %v617, %v624
        %v626 = vrot.slane %v613, 4
        %v627 = vsel %vm534, %v626, %v601
        %v628 = vrot.slane %v601, 4
        %v629 = vsel %vm534, %v613, %v628
        %v631 = vunpack.c.l.s4 1934713408
        %v632 = vunpack.c.0.s8 %v631
        %v633 = vperm.slane %v627, %v632
        %v635 = vunpack.c.l.s4 1934713408
        %v636 = vunpack.c.0.s8 %v635
        %v637 = vperm.slane %v629, %v636
        %v638 = vrot.slane %v621, 4
        %v639 = vsel %vm534, 0.0, %v638
        %v640 = vrot.slane %v625, 4
        %v641 = vsel %vm534, 0.0, %v640
        %v642 = vrot.slane %v633, 4
        %v643 = vsel %vm534, 0.0, %v642
        %v644 = vrot.slane %v637, 4
        %v645 = vsel %vm534, 0.0, %v644
        %v646 = vrot.slane %v514, 4
        %v647 = vsel %vm534, %v646, %v491
        %v648 = vrot.slane %v491, 4
        %v649 = vsel %vm534, %v514, %v648
        %v651 = vunpack.c.l.s4 1983009808
        %v652 = vunpack.c.0.s8 %v651
        %v653 = vperm.slane %v647, %v652
        %v655 = vunpack.c.l.s4 1983009808
        %v656 = vunpack.c.0.s8 %v655
        %v657 = vperm.slane %v649, %v656
        %v658 = vrot.slane %v526, 4
        %v659 = vsel %vm534, %v658, %v502
        %v660 = vrot.slane %v502, 4
        %v661 = vsel %vm534, %v526, %v660
        %v663 = vunpack.c.l.s4 1983009808
        %v664 = vunpack.c.0.s8 %v663
        %v665 = vperm.slane %v659, %v664
        %v667 = vunpack.c.l.s4 1983009808
        %v668 = vunpack.c.0.s8 %v667
        %v669 = vperm.slane %v661, %v668
        %v670 = vrot.slane %v665, 4
        %v671 = vsel %vm534, %v670, %v653
        %v672 = vrot.slane %v653, 4
        %v673 = vsel %vm534, %v665, %v672
        %v675 = vunpack.c.l.s4 1934713408
        %v676 = vunpack.c.0.s8 %v675
        %v677 = vperm.slane %v671, %v676
        %v679 = vunpack.c.l.s4 1934713408
        %v680 = vunpack.c.0.s8 %v679
        %v681 = vperm.slane %v673, %v680
        %v682 = vrot.slane %v669, 4
        %v683 = vsel %vm534, %v682, %v657
        %v684 = vrot.slane %v657, 4
        %v685 = vsel %vm534, %v669, %v684
        %v687 = vunpack.c.l.s4 1934713408
        %v688 = vunpack.c.0.s8 %v687
        %v689 = vperm.slane %v683, %v688
        %v691 = vunpack.c.l.s4 1934713408
        %v692 = vunpack.c.0.s8 %v691
        %v693 = vperm.slane %v685, %v692
        %v694 = vrot.slane %v677, 4
        %v695 = vsel %vm534, 0.0, %v694
        %v696 = vrot.slane %v681, 4
        %v697 = vsel %vm534, 0.0, %v696
        %v698 = vrot.slane %v689, 4
        %v699 = vsel %vm534, 0.0, %v698
        %v700 = vrot.slane %v693, 4
        %v701 = vsel %vm534, 0.0, %v700
        %v702 = vrot.slane %v516, 4
        %v703 = vsel %vm534, %v702, %v492
        %v704 = vrot.slane %v492, 4
        %v705 = vsel %vm534, %v516, %v704
        %v707 = vunpack.c.l.s4 1983009808
        %v708 = vunpack.c.0.s8 %v707
        %v709 = vperm.slane %v703, %v708
        %v711 = vunpack.c.l.s4 1983009808
        %v712 = vunpack.c.0.s8 %v711
        %v713 = vperm.slane %v705, %v712
        %v714 = vrot.slane %v528, 4
        %v715 = vsel %vm534, %v714, %v504
        %v716 = vrot.slane %v504, 4
        %v717 = vsel %vm534, %v528, %v716
        %v719 = vunpack.c.l.s4 1983009808
        %v720 = vunpack.c.0.s8 %v719
        %v721 = vperm.slane %v715, %v720
        %v723 = vunpack.c.l.s4 1983009808
        %v724 = vunpack.c.0.s8 %v723
        %v725 = vperm.slane %v717, %v724
        %v726 = vrot.slane %v721, 4
        %v727 = vsel %vm534, %v726, %v709
        %v728 = vrot.slane %v709, 4
        %v729 = vsel %vm534, %v721, %v728
        %v731 = vunpack.c.l.s4 1934713408
        %v732 = vunpack.c.0.s8 %v731
        %v733 = vperm.slane %v727, %v732
        %v735 = vunpack.c.l.s4 1934713408
        %v736 = vunpack.c.0.s8 %v735
        %v737 = vperm.slane %v729, %v736
        %v738 = vrot.slane %v725, 4
        %v739 = vsel %vm534, %v738, %v713
        %v740 = vrot.slane %v713, 4
        %v741 = vsel %vm534, %v725, %v740
        %v743 = vunpack.c.l.s4 1934713408
        %v744 = vunpack.c.0.s8 %v743
        %v745 = vperm.slane %v739, %v744
        %v747 = vunpack.c.l.s4 1934713408
        %v748 = vunpack.c.0.s8 %v747
        %v749 = vperm.slane %v741, %v748
        %v750 = vrot.slane %v733, 4
        %v751 = vsel %vm534, 0.0, %v750
        %v752 = vrot.slane %v737, 4
        %v753 = vsel %vm534, 0.0, %v752
        %v754 = vrot.slane %v745, 4
        %v755 = vsel %vm534, 0.0, %v754
        %v756 = vrot.slane %v749, 4
        %v757 = vsel %vm534, 0.0, %v756
        %v758 = vsel %vm534, %v584, %v565
        %v760 = vunpack.c.l.s4 1983009808
        %v761 = vunpack.c.0.s8 %v760
        %v762 = vperm.slane %v758, %v761
        %v763 = vrot.slane %v585, 4
        %v764 = vsel %vm534, %v763, %v583
        %v766 = vunpack.c.l.s4 1983009808
        %v767 = vunpack.c.0.s8 %v766
        %v768 = vperm.slane %v764, %v767
        %v769 = vsel %vm534, %v588, %v577
        %v771 = vunpack.c.l.s4 1983009808
        %v772 = vunpack.c.0.s8 %v771
        %v773 = vperm.slane %v769, %v772
        %v774 = vrot.slane %v589, 4
        %v775 = vsel %vm534, %v774, %v587
        %v777 = vunpack.c.l.s4 1983009808
        %v778 = vunpack.c.0.s8 %v777
        %v779 = vperm.slane %v775, %v778
        %v780 = vrot.slane %v768, 4
        %v781 = vsel %vm534, %v780, %v762
        %v782 = vrot.slane %v762, 4
        %v783 = vsel %vm534, %v768, %v782
        %v785 = vunpack.c.l.s4 1934713408
        %v786 = vunpack.c.0.s8 %v785
        %v787 = vperm.slane %v781, %v786
        %v789 = vunpack.c.l.s4 1934713408
        %v790 = vunpack.c.0.s8 %v789
        %v791 = vperm.slane %v783, %v790
        %v792 = vrot.slane %v779, 4
        %v793 = vsel %vm534, %v792, %v773
        %v794 = vrot.slane %v773, 4
        %v795 = vsel %vm534, %v779, %v794
        %v797 = vunpack.c.l.s4 1934713408
        %v798 = vunpack.c.0.s8 %v797
        %v799 = vperm.slane %v793, %v798
        %v801 = vunpack.c.l.s4 1934713408
        %v802 = vunpack.c.0.s8 %v801
        %v803 = vperm.slane %v795, %v802
        %v804 = vrot.slane %v799, 4
        %v805 = vsel %vm534, %v804, %v787
        %v806 = vrot.slane %v787, 4
        %v807 = vsel %vm534, %v799, %v806
        %v808 = vrot.slane %v803, 4
        %v809 = vsel %vm534, %v808, %v791
        %v810 = vrot.slane %v791, 4
        %v811 = vsel %vm534, %v803, %v810
        %v812 = vsel %vm534, %v640, %v621
        %v814 = vunpack.c.l.s4 1983009808
        %v815 = vunpack.c.0.s8 %v814
        %v816 = vperm.slane %v812, %v815
        %v817 = vrot.slane %v641, 4
        %v818 = vsel %vm534, %v817, %v639
        %v820 = vunpack.c.l.s4 1983009808
        %v821 = vunpack.c.0.s8 %v820
        %v822 = vperm.slane %v818, %v821
        %v823 = vsel %vm534, %v644, %v633
        %v825 = vunpack.c.l.s4 1983009808
        %v826 = vunpack.c.0.s8 %v825
        %v827 = vperm.slane %v823, %v826
        %v828 = vrot.slane %v645, 4
        %v829 = vsel %vm534, %v828, %v643
        %v831 = vunpack.c.l.s4 1983009808
        %v832 = vunpack.c.0.s8 %v831
        %v833 = vperm.slane %v829, %v832
        %v834 = vrot.slane %v822, 4
        %v835 = vsel %vm534, %v834, %v816
        %v836 = vrot.slane %v816, 4
        %v837 = vsel %vm534, %v822, %v836
        %v839 = vunpack.c.l.s4 1934713408
        %v840 = vunpack.c.0.s8 %v839
        %v841 = vperm.slane %v835, %v840
        %v843 = vunpack.c.l.s4 1934713408
        %v844 = vunpack.c.0.s8 %v843
        %v845 = vperm.slane %v837, %v844
        %v846 = vrot.slane %v833, 4
        %v847 = vsel %vm534, %v846, %v827
        %v848 = vrot.slane %v827, 4
        %v849 = vsel %vm534, %v833, %v848
        %v851 = vunpack.c.l.s4 1934713408
        %v852 = vunpack.c.0.s8 %v851
        %v853 = vperm.slane %v847, %v852
        %v855 = vunpack.c.l.s4 1934713408
        %v856 = vunpack.c.0.s8 %v855
        %v857 = vperm.slane %v849, %v856
        %v858 = vrot.slane %v853, 4
        %v859 = vsel %vm534, %v858, %v841
        %v860 = vrot.slane %v841, 4
        %v861 = vsel %vm534, %v853, %v860
        %v862 = vrot.slane %v857, 4
        %v863 = vsel %vm534, %v862, %v845
        %v864 = vrot.slane %v845, 4
        %v865 = vsel %vm534, %v857, %v864
        %v866 = vsel %vm534, %v696, %v677
        %v868 = vunpack.c.l.s4 1983009808
        %v869 = vunpack.c.0.s8 %v868
        %v870 = vperm.slane %v866, %v869
        %v871 = vrot.slane %v697, 4
        %v872 = vsel %vm534, %v871, %v695
        %v874 = vunpack.c.l.s4 1983009808
        %v875 = vunpack.c.0.s8 %v874
        %v876 = vperm.slane %v872, %v875
        %v877 = vsel %vm534, %v700, %v689
        %v879 = vunpack.c.l.s4 1983009808
        %v880 = vunpack.c.0.s8 %v879
        %v881 = vperm.slane %v877, %v880
        %v882 = vrot.slane %v701, 4
        %v883 = vsel %vm534, %v882, %v699
        %v885 = vunpack.c.l.s4 1983009808
        %v886 = vunpack.c.0.s8 %v885
        %v887 = vperm.slane %v883, %v886
        %v888 = vrot.slane %v876, 4
        %v889 = vsel %vm534, %v888, %v870
        %v890 = vrot.slane %v870, 4
        %v891 = vsel %vm534, %v876, %v890
        %v893 = vunpack.c.l.s4 1934713408
        %v894 = vunpack.c.0.s8 %v893
        %v895 = vperm.slane %v889, %v894
        %v897 = vunpack.c.l.s4 1934713408
        %v898 = vunpack.c.0.s8 %v897
        %v899 = vperm.slane %v891, %v898
        %v900 = vrot.slane %v887, 4
        %v901 = vsel %vm534, %v900, %v881
        %v902 = vrot.slane %v881, 4
        %v903 = vsel %vm534, %v887, %v902
        %v905 = vunpack.c.l.s4 1934713408
        %v906 = vunpack.c.0.s8 %v905
        %v907 = vperm.slane %v901, %v906
        %v909 = vunpack.c.l.s4 1934713408
        %v910 = vunpack.c.0.s8 %v909
        %v911 = vperm.slane %v903, %v910
        %v912 = vrot.slane %v907, 4
        %v913 = vsel %vm534, %v912, %v895
        %v914 = vrot.slane %v895, 4
        %v915 = vsel %vm534, %v907, %v914
        %v916 = vrot.slane %v911, 4
        %v917 = vsel %vm534, %v916, %v899
        %v918 = vrot.slane %v899, 4
        %v919 = vsel %vm534, %v911, %v918
        %v920 = vsel %vm534, %v752, %v733
        %v922 = vunpack.c.l.s4 1983009808
        %v923 = vunpack.c.0.s8 %v922
        %v924 = vperm.slane %v920, %v923
        %v925 = vrot.slane %v753, 4
        %v926 = vsel %vm534, %v925, %v751
        %v928 = vunpack.c.l.s4 1983009808
        %v929 = vunpack.c.0.s8 %v928
        %v930 = vperm.slane %v926, %v929
        %v931 = vsel %vm534, %v756, %v745
        %v933 = vunpack.c.l.s4 1983009808
        %v934 = vunpack.c.0.s8 %v933
        %v935 = vperm.slane %v931, %v934
        %v936 = vrot.slane %v757, 4
        %v937 = vsel %vm534, %v936, %v755
        %v939 = vunpack.c.l.s4 1983009808
        %v940 = vunpack.c.0.s8 %v939
        %v941 = vperm.slane %v937, %v940
        %v942 = vrot.slane %v930, 4
        %v943 = vsel %vm534, %v942, %v924
        %v944 = vrot.slane %v924, 4
        %v945 = vsel %vm534, %v930, %v944
        %v947 = vunpack.c.l.s4 1934713408
        %v948 = vunpack.c.0.s8 %v947
        %v949 = vperm.slane %v943, %v948
        %v951 = vunpack.c.l.s4 1934713408
        %v952 = vunpack.c.0.s8 %v951
        %v953 = vperm.slane %v945, %v952
        %v954 = vrot.slane %v941, 4
        %v955 = vsel %vm534, %v954, %v935
        %v956 = vrot.slane %v935, 4
        %v957 = vsel %vm534, %v941, %v956
        %v959 = vunpack.c.l.s4 1934713408
        %v960 = vunpack.c.0.s8 %v959
        %v961 = vperm.slane %v955, %v960
        %v963 = vunpack.c.l.s4 1934713408
        %v964 = vunpack.c.0.s8 %v963
        %v965 = vperm.slane %v957, %v964
        %v966 = vrot.slane %v961, 4
        %v967 = vsel %vm534, %v966, %v949
        %v968 = vrot.slane %v949, 4
        %v969 = vsel %vm534, %v961, %v968
        %v970 = vrot.slane %v965, 4
        %v971 = vsel %vm534, %v970, %v953
        %v972 = vrot.slane %v953, 4
        %v973 = vsel %vm534, %v965, %v972
        %v974 = vld [vmem:[#allocation6] sm:$0xff]
        %v975 = vld [vmem:[#allocation6 + $0x8] sm:$0xff]
        %v976 = vld [vmem:[#allocation6 + $0x10] sm:$0xff]
        %v977 = vld [vmem:[#allocation6 + $0x18] sm:$0xff]
        %982 = vrot.lane.b32.xlu0 %v974, 96
        %v983 = vpop.permute.xlu0 %982
        %984 = vrot.lane.b32.xlu0 %v975, 96
        %v985 = vpop.permute.xlu0 %984
        %986 = vrot.lane.b32.xlu0 %v976, 96
        %v987 = vpop.permute.xlu0 %986
        %988 = vrot.lane.b32.xlu0 %v977, 96
        %v989 = vpop.permute.xlu0 %988
        %994 = vrot.lane.b32.xlu0 %v974, 64
        %v995 = vpop.permute.xlu0 %994
        %996 = vrot.lane.b32.xlu0 %v975, 64
        %v997 = vpop.permute.xlu0 %996
        %998 = vrot.lane.b32.xlu0 %v976, 64
        %v999 = vpop.permute.xlu0 %998
        %1000 = vrot.lane.b32.xlu0 %v977, 64
        %v1001 = vpop.permute.xlu0 %1000
        %1006 = vrot.lane.b32.xlu0 %v974, 32
        %v1007 = vpop.permute.xlu0 %1006
        %1008 = vrot.lane.b32.xlu0 %v975, 32
        %v1009 = vpop.permute.xlu0 %1008
        %1010 = vrot.lane.b32.xlu0 %v976, 32
        %v1011 = vpop.permute.xlu0 %1010
        %1012 = vrot.lane.b32.xlu0 %v977, 32
        %v1013 = vpop.permute.xlu0 %1012
        %v1018 = vrot.slane %v995, 4
        %v1019 = vsel %vm534, %v1018, %v974
        %v1020 = vrot.slane %v974, 4
        %v1021 = vsel %vm534, %v995, %v1020
        %v1023 = vunpack.c.l.s4 1983009808
        %v1024 = vunpack.c.0.s8 %v1023
        %v1025 = vperm.slane %v1019, %v1024
        %v1027 = vunpack.c.l.s4 1983009808
        %v1028 = vunpack.c.0.s8 %v1027
        %v1029 = vperm.slane %v1021, %v1028
        %v1030 = vrot.slane %v1007, 4
        %v1031 = vsel %vm534, %v1030, %v983
        %v1032 = vrot.slane %v983, 4
        %v1033 = vsel %vm534, %v1007, %v1032
        %v1035 = vunpack.c.l.s4 1983009808
        %v1036 = vunpack.c.0.s8 %v1035
        %v1037 = vperm.slane %v1031, %v1036
        %v1039 = vunpack.c.l.s4 1983009808
        %v1040 = vunpack.c.0.s8 %v1039
        %v1041 = vperm.slane %v1033, %v1040
        %v1042 = vrot.slane %v1037, 4
        %v1043 = vsel %vm534, %v1042, %v1025
        %v1044 = vrot.slane %v1025, 4
        %v1045 = vsel %vm534, %v1037, %v1044
        %v1047 = vunpack.c.l.s4 1934713408
        %v1048 = vunpack.c.0.s8 %v1047
        %v1049 = vperm.slane %v1043, %v1048
        %v1051 = vunpack.c.l.s4 1934713408
        %v1052 = vunpack.c.0.s8 %v1051
        %v1053 = vperm.slane %v1045, %v1052
        %v1054 = vrot.slane %v1041, 4
        %v1055 = vsel %vm534, %v1054, %v1029
        %v1056 = vrot.slane %v1029, 4
        %v1057 = vsel %vm534, %v1041, %v1056
        %v1059 = vunpack.c.l.s4 1934713408
        %v1060 = vunpack.c.0.s8 %v1059
        %v1061 = vperm.slane %v1055, %v1060
        %v1063 = vunpack.c.l.s4 1934713408
        %v1064 = vunpack.c.0.s8 %v1063
        %v1065 = vperm.slane %v1057, %v1064
        %v1066 = vrot.slane %v1049, 4
        %v1067 = vsel %vm534, 0.0, %v1066
        %v1068 = vrot.slane %v1053, 4
        %v1069 = vsel %vm534, 0.0, %v1068
        %v1070 = vrot.slane %v1061, 4
        %v1071 = vsel %vm534, 0.0, %v1070
        %v1072 = vrot.slane %v1065, 4
        %v1073 = vsel %vm534, 0.0, %v1072
        %v1074 = vrot.slane %v997, 4
        %v1075 = vsel %vm534, %v1074, %v975
        %v1076 = vrot.slane %v975, 4
        %v1077 = vsel %vm534, %v997, %v1076
        %v1079 = vunpack.c.l.s4 1983009808
        %v1080 = vunpack.c.0.s8 %v1079
        %v1081 = vperm.slane %v1075, %v1080
        %v1083 = vunpack.c.l.s4 1983009808
        %v1084 = vunpack.c.0.s8 %v1083
        %v1085 = vperm.slane %v1077, %v1084
        %v1086 = vrot.slane %v1009, 4
        %v1087 = vsel %vm534, %v1086, %v985
        %v1088 = vrot.slane %v985, 4
        %v1089 = vsel %vm534, %v1009, %v1088
        %v1091 = vunpack.c.l.s4 1983009808
        %v1092 = vunpack.c.0.s8 %v1091
        %v1093 = vperm.slane %v1087, %v1092
        %v1095 = vunpack.c.l.s4 1983009808
        %v1096 = vunpack.c.0.s8 %v1095
        %v1097 = vperm.slane %v1089, %v1096
        %v1098 = vrot.slane %v1093, 4
        %v1099 = vsel %vm534, %v1098, %v1081
        %v1100 = vrot.slane %v1081, 4
        %v1101 = vsel %vm534, %v1093, %v1100
        %v1103 = vunpack.c.l.s4 1934713408
        %v1104 = vunpack.c.0.s8 %v1103
        %v1105 = vperm.slane %v1099, %v1104
        %v1107 = vunpack.c.l.s4 1934713408
        %v1108 = vunpack.c.0.s8 %v1107
        %v1109 = vperm.slane %v1101, %v1108
        %v1110 = vrot.slane %v1097, 4
        %v1111 = vsel %vm534, %v1110, %v1085
        %v1112 = vrot.slane %v1085, 4
        %v1113 = vsel %vm534, %v1097, %v1112
        %v1115 = vunpack.c.l.s4 1934713408
        %v1116 = vunpack.c.0.s8 %v1115
        %v1117 = vperm.slane %v1111, %v1116
        %v1119 = vunpack.c.l.s4 1934713408
        %v1120 = vunpack.c.0.s8 %v1119
        %v1121 = vperm.slane %v1113, %v1120
        %v1122 = vrot.slane %v1105, 4
        %v1123 = vsel %vm534, 0.0, %v1122
        %v1124 = vrot.slane %v1109, 4
        %v1125 = vsel %vm534, 0.0, %v1124
        %v1126 = vrot.slane %v1117, 4
        %v1127 = vsel %vm534, 0.0, %v1126
        %v1128 = vrot.slane %v1121, 4
        %v1129 = vsel %vm534, 0.0, %v1128
        %v1130 = vrot.slane %v999, 4
        %v1131 = vsel %vm534, %v1130, %v976
        %v1132 = vrot.slane %v976, 4
        %v1133 = vsel %vm534, %v999, %v1132
        %v1135 = vunpack.c.l.s4 1983009808
        %v1136 = vunpack.c.0.s8 %v1135
        %v1137 = vperm.slane %v1131, %v1136
        %v1139 = vunpack.c.l.s4 1983009808
        %v1140 = vunpack.c.0.s8 %v1139
        %v1141 = vperm.slane %v1133, %v1140
        %v1142 = vrot.slane %v1011, 4
        %v1143 = vsel %vm534, %v1142, %v987
        %v1144 = vrot.slane %v987, 4
        %v1145 = vsel %vm534, %v1011, %v1144
        %v1147 = vunpack.c.l.s4 1983009808
        %v1148 = vunpack.c.0.s8 %v1147
        %v1149 = vperm.slane %v1143, %v1148
        %v1151 = vunpack.c.l.s4 1983009808
        %v1152 = vunpack.c.0.s8 %v1151
        %v1153 = vperm.slane %v1145, %v1152
        %v1154 = vrot.slane %v1149, 4
        %v1155 = vsel %vm534, %v1154, %v1137
        %v1156 = vrot.slane %v1137, 4
        %v1157 = vsel %vm534, %v1149, %v1156
        %v1159 = vunpack.c.l.s4 1934713408
        %v1160 = vunpack.c.0.s8 %v1159
        %v1161 = vperm.slane %v1155, %v1160
        %v1163 = vunpack.c.l.s4 1934713408
        %v1164 = vunpack.c.0.s8 %v1163
        %v1165 = vperm.slane %v1157, %v1164
        %v1166 = vrot.slane %v1153, 4
        %v1167 = vsel %vm534, %v1166, %v1141
        %v1168 = vrot.slane %v1141, 4
        %v1169 = vsel %vm534, %v1153, %v1168
        %v1171 = vunpack.c.l.s4 1934713408
        %v1172 = vunpack.c.0.s8 %v1171
        %v1173 = vperm.slane %v1167, %v1172
        %v1175 = vunpack.c.l.s4 1934713408
        %v1176 = vunpack.c.0.s8 %v1175
        %v1177 = vperm.slane %v1169, %v1176
        %v1178 = vrot.slane %v1161, 4
        %v1179 = vsel %vm534, 0.0, %v1178
        %v1180 = vrot.slane %v1165, 4
        %v1181 = vsel %vm534, 0.0, %v1180
        %v1182 = vrot.slane %v1173, 4
        %v1183 = vsel %vm534, 0.0, %v1182
        %v1184 = vrot.slane %v1177, 4
        %v1185 = vsel %vm534, 0.0, %v1184
        %v1186 = vrot.slane %v1001, 4
        %v1187 = vsel %vm534, %v1186, %v977
        %v1188 = vrot.slane %v977, 4
        %v1189 = vsel %vm534, %v1001, %v1188
        %v1191 = vunpack.c.l.s4 1983009808
        %v1192 = vunpack.c.0.s8 %v1191
        %v1193 = vperm.slane %v1187, %v1192
        %v1195 = vunpack.c.l.s4 1983009808
        %v1196 = vunpack.c.0.s8 %v1195
        %v1197 = vperm.slane %v1189, %v1196
        %v1198 = vrot.slane %v1013, 4
        %v1199 = vsel %vm534, %v1198, %v989
        %v1200 = vrot.slane %v989, 4
        %v1201 = vsel %vm534, %v1013, %v1200
        %v1203 = vunpack.c.l.s4 1983009808
        %v1204 = vunpack.c.0.s8 %v1203
        %v1205 = vperm.slane %v1199, %v1204
        %v1207 = vunpack.c.l.s4 1983009808
        %v1208 = vunpack.c.0.s8 %v1207
        %v1209 = vperm.slane %v1201, %v1208
        %v1210 = vrot.slane %v1205, 4
        %v1211 = vsel %vm534, %v1210, %v1193
        %v1212 = vrot.slane %v1193, 4
        %v1213 = vsel %vm534, %v1205, %v1212
        %v1215 = vunpack.c.l.s4 1934713408
        %v1216 = vunpack.c.0.s8 %v1215
        %v1217 = vperm.slane %v1211, %v1216
        %v1219 = vunpack.c.l.s4 1934713408
        %v1220 = vunpack.c.0.s8 %v1219
        %v1221 = vperm.slane %v1213, %v1220
        %v1222 = vrot.slane %v1209, 4
        %v1223 = vsel %vm534, %v1222, %v1197
        %v1224 = vrot.slane %v1197, 4
        %v1225 = vsel %vm534, %v1209, %v1224
        %v1227 = vunpack.c.l.s4 1934713408
        %v1228 = vunpack.c.0.s8 %v1227
        %v1229 = vperm.slane %v1223, %v1228
        %v1231 = vunpack.c.l.s4 1934713408
        %v1232 = vunpack.c.0.s8 %v1231
        %v1233 = vperm.slane %v1225, %v1232
        %v1234 = vrot.slane %v1217, 4
        %v1235 = vsel %vm534, 0.0, %v1234
        %v1236 = vrot.slane %v1221, 4
        %v1237 = vsel %vm534, 0.0, %v1236
        %v1238 = vrot.slane %v1229, 4
        %v1239 = vsel %vm534, 0.0, %v1238
        %v1240 = vrot.slane %v1233, 4
        %v1241 = vsel %vm534, 0.0, %v1240
        %v1242 = vsel %vm534, %v1068, %v1049
        %v1244 = vunpack.c.l.s4 1983009808
        %v1245 = vunpack.c.0.s8 %v1244
        %v1246 = vperm.slane %v1242, %v1245
        %v1247 = vrot.slane %v1069, 4
        %v1248 = vsel %vm534, %v1247, %v1067
        %v1250 = vunpack.c.l.s4 1983009808
        %v1251 = vunpack.c.0.s8 %v1250
        %v1252 = vperm.slane %v1248, %v1251
        %v1253 = vsel %vm534, %v1072, %v1061
        %v1255 = vunpack.c.l.s4 1983009808
        %v1256 = vunpack.c.0.s8 %v1255
        %v1257 = vperm.slane %v1253, %v1256
        %v1258 = vrot.slane %v1073, 4
        %v1259 = vsel %vm534, %v1258, %v1071
        %v1261 = vunpack.c.l.s4 1983009808
        %v1262 = vunpack.c.0.s8 %v1261
        %v1263 = vperm.slane %v1259, %v1262
        %v1264 = vrot.slane %v1252, 4
        %v1265 = vsel %vm534, %v1264, %v1246
        %v1266 = vrot.slane %v1246, 4
        %v1267 = vsel %vm534, %v1252, %v1266
        %v1269 = vunpack.c.l.s4 1934713408
        %v1270 = vunpack.c.0.s8 %v1269
        %v1271 = vperm.slane %v1265, %v1270
        %v1273 = vunpack.c.l.s4 1934713408
        %v1274 = vunpack.c.0.s8 %v1273
        %v1275 = vperm.slane %v1267, %v1274
        %v1276 = vrot.slane %v1263, 4
        %v1277 = vsel %vm534, %v1276, %v1257
        %v1278 = vrot.slane %v1257, 4
        %v1279 = vsel %vm534, %v1263, %v1278
        %v1281 = vunpack.c.l.s4 1934713408
        %v1282 = vunpack.c.0.s8 %v1281
        %v1283 = vperm.slane %v1277, %v1282
        %v1285 = vunpack.c.l.s4 1934713408
        %v1286 = vunpack.c.0.s8 %v1285
        %v1287 = vperm.slane %v1279, %v1286
        %v1288 = vrot.slane %v1283, 4
        %v1289 = vsel %vm534, %v1288, %v1271
        %v1290 = vrot.slane %v1271, 4
        %v1291 = vsel %vm534, %v1283, %v1290
        %v1292 = vrot.slane %v1287, 4
        %v1293 = vsel %vm534, %v1292, %v1275
        %v1294 = vrot.slane %v1275, 4
        %v1295 = vsel %vm534, %v1287, %v1294
        %v1296 = vsel %vm534, %v1124, %v1105
        %v1298 = vunpack.c.l.s4 1983009808
        %v1299 = vunpack.c.0.s8 %v1298
        %v1300 = vperm.slane %v1296, %v1299
        %v1301 = vrot.slane %v1125, 4
        %v1302 = vsel %vm534, %v1301, %v1123
        %v1304 = vunpack.c.l.s4 1983009808
        %v1305 = vunpack.c.0.s8 %v1304
        %v1306 = vperm.slane %v1302, %v1305
        %v1307 = vsel %vm534, %v1128, %v1117
        %v1309 = vunpack.c.l.s4 1983009808
        %v1310 = vunpack.c.0.s8 %v1309
        %v1311 = vperm.slane %v1307, %v1310
        %v1312 = vrot.slane %v1129, 4
        %v1313 = vsel %vm534, %v1312, %v1127
        %v1315 = vunpack.c.l.s4 1983009808
        %v1316 = vunpack.c.0.s8 %v1315
        %v1317 = vperm.slane %v1313, %v1316
        %v1318 = vrot.slane %v1306, 4
        %v1319 = vsel %vm534, %v1318, %v1300
        %v1320 = vrot.slane %v1300, 4
        %v1321 = vsel %vm534, %v1306, %v1320
        %v1323 = vunpack.c.l.s4 1934713408
        %v1324 = vunpack.c.0.s8 %v1323
        %v1325 = vperm.slane %v1319, %v1324
        %v1327 = vunpack.c.l.s4 1934713408
        %v1328 = vunpack.c.0.s8 %v1327
        %v1329 = vperm.slane %v1321, %v1328
        %v1330 = vrot.slane %v1317, 4
        %v1331 = vsel %vm534, %v1330, %v1311
        %v1332 = vrot.slane %v1311, 4
        %v1333 = vsel %vm534, %v1317, %v1332
        %v1335 = vunpack.c.l.s4 1934713408
        %v1336 = vunpack.c.0.s8 %v1335
        %v1337 = vperm.slane %v1331, %v1336
        %v1339 = vunpack.c.l.s4 1934713408
        %v1340 = vunpack.c.0.s8 %v1339
        %v1341 = vperm.slane %v1333, %v1340
        %v1342 = vrot.slane %v1337, 4
        %v1343 = vsel %vm534, %v1342, %v1325
        %v1344 = vrot.slane %v1325, 4
        %v1345 = vsel %vm534, %v1337, %v1344
        %v1346 = vrot.slane %v1341, 4
        %v1347 = vsel %vm534, %v1346, %v1329
        %v1348 = vrot.slane %v1329, 4
        %v1349 = vsel %vm534, %v1341, %v1348
        %v1350 = vsel %vm534, %v1180, %v1161
        %v1352 = vunpack.c.l.s4 1983009808
        %v1353 = vunpack.c.0.s8 %v1352
        %v1354 = vperm.slane %v1350, %v1353
        %v1355 = vrot.slane %v1181, 4
        %v1356 = vsel %vm534, %v1355, %v1179
        %v1358 = vunpack.c.l.s4 1983009808
        %v1359 = vunpack.c.0.s8 %v1358
        %v1360 = vperm.slane %v1356, %v1359
        %v1361 = vsel %vm534, %v1184, %v1173
        %v1363 = vunpack.c.l.s4 1983009808
        %v1364 = vunpack.c.0.s8 %v1363
        %v1365 = vperm.slane %v1361, %v1364
        %v1366 = vrot.slane %v1185, 4
        %v1367 = vsel %vm534, %v1366, %v1183
        %v1369 = vunpack.c.l.s4 1983009808
        %v1370 = vunpack.c.0.s8 %v1369
        %v1371 = vperm.slane %v1367, %v1370
        %v1372 = vrot.slane %v1360, 4
        %v1373 = vsel %vm534, %v1372, %v1354
        %v1374 = vrot.slane %v1354, 4
        %v1375 = vsel %vm534, %v1360, %v1374
        %v1377 = vunpack.c.l.s4 1934713408
        %v1378 = vunpack.c.0.s8 %v1377
        %v1379 = vperm.slane %v1373, %v1378
        %v1381 = vunpack.c.l.s4 1934713408
        %v1382 = vunpack.c.0.s8 %v1381
        %v1383 = vperm.slane %v1375, %v1382
        %v1384 = vrot.slane %v1371, 4
        %v1385 = vsel %vm534, %v1384, %v1365
        %v1386 = vrot.slane %v1365, 4
        %v1387 = vsel %vm534, %v1371, %v1386
        %v1389 = vunpack.c.l.s4 1934713408
        %v1390 = vunpack.c.0.s8 %v1389
        %v1391 = vperm.slane %v1385, %v1390
        %v1393 = vunpack.c.l.s4 1934713408
        %v1394 = vunpack.c.0.s8 %v1393
        %v1395 = vperm.slane %v1387, %v1394
        %v1396 = vrot.slane %v1391, 4
        %v1397 = vsel %vm534, %v1396, %v1379
        %v1398 = vrot.slane %v1379, 4
        %v1399 = vsel %vm534, %v1391, %v1398
        %v1400 = vrot.slane %v1395, 4
        %v1401 = vsel %vm534, %v1400, %v1383
        %v1402 = vrot.slane %v1383, 4
        %v1403 = vsel %vm534, %v1395, %v1402
        %v1404 = vsel %vm534, %v1236, %v1217
        %v1406 = vunpack.c.l.s4 1983009808
        %v1407 = vunpack.c.0.s8 %v1406
        %v1408 = vperm.slane %v1404, %v1407
        %v1409 = vrot.slane %v1237, 4
        %v1410 = vsel %vm534, %v1409, %v1235
        %v1412 = vunpack.c.l.s4 1983009808
        %v1413 = vunpack.c.0.s8 %v1412
        %v1414 = vperm.slane %v1410, %v1413
        %v1415 = vsel %vm534, %v1240, %v1229
        %v1417 = vunpack.c.l.s4 1983009808
        %v1418 = vunpack.c.0.s8 %v1417
        %v1419 = vperm.slane %v1415, %v1418
        %v1420 = vrot.slane %v1241, 4
        %v1421 = vsel %vm534, %v1420, %v1239
        %v1423 = vunpack.c.l.s4 1983009808
        %v1424 = vunpack.c.0.s8 %v1423
        %v1425 = vperm.slane %v1421, %v1424
        %v1426 = vrot.slane %v1414, 4
        %v1427 = vsel %vm534, %v1426, %v1408
        %v1428 = vrot.slane %v1408, 4
        %v1429 = vsel %vm534, %v1414, %v1428
        %v1431 = vunpack.c.l.s4 1934713408
        %v1432 = vunpack.c.0.s8 %v1431
        %v1433 = vperm.slane %v1427, %v1432
        %v1435 = vunpack.c.l.s4 1934713408
        %v1436 = vunpack.c.0.s8 %v1435
        %v1437 = vperm.slane %v1429, %v1436
        %v1438 = vrot.slane %v1425, 4
        %v1439 = vsel %vm534, %v1438, %v1419
        %v1440 = vrot.slane %v1419, 4
        %v1441 = vsel %vm534, %v1425, %v1440
        %v1443 = vunpack.c.l.s4 1934713408
        %v1444 = vunpack.c.0.s8 %v1443
        %v1445 = vperm.slane %v1439, %v1444
        %v1447 = vunpack.c.l.s4 1934713408
        %v1448 = vunpack.c.0.s8 %v1447
        %v1449 = vperm.slane %v1441, %v1448
        %v1450 = vrot.slane %v1445, 4
        %v1451 = vsel %vm534, %v1450, %v1433
        %v1452 = vrot.slane %v1433, 4
        %v1453 = vsel %vm534, %v1445, %v1452
        %v1454 = vrot.slane %v1449, 4
        %v1455 = vsel %vm534, %v1454, %v1437
        %v1456 = vrot.slane %v1437, 4
        %v1457 = vsel %vm534, %v1449, %v1456
        %v1458 = vld [vmem:[#allocation7] sm:$0xff]
        %v1459 = vld [vmem:[#allocation7 + $0x8] sm:$0xff]
        %v1460 = vld [vmem:[#allocation7 + $0x10] sm:$0xff]
        %v1461 = vld [vmem:[#allocation7 + $0x18] sm:$0xff]
        %1466 = vrot.lane.b32.xlu0 %v1458, 96
        %v1467 = vpop.permute.xlu0 %1466
        %1468 = vrot.lane.b32.xlu0 %v1459, 96
        %v1469 = vpop.permute.xlu0 %1468
        %1470 = vrot.lane.b32.xlu0 %v1460, 96
        %v1471 = vpop.permute.xlu0 %1470
        %1472 = vrot.lane.b32.xlu0 %v1461, 96
        %v1473 = vpop.permute.xlu0 %1472
        %1478 = vrot.lane.b32.xlu0 %v1458, 64
        %v1479 = vpop.permute.xlu0 %1478
        %1480 = vrot.lane.b32.xlu0 %v1459, 64
        %v1481 = vpop.permute.xlu0 %1480
        %1482 = vrot.lane.b32.xlu0 %v1460, 64
        %v1483 = vpop.permute.xlu0 %1482
        %1484 = vrot.lane.b32.xlu0 %v1461, 64
        %v1485 = vpop.permute.xlu0 %1484
        %1490 = vrot.lane.b32.xlu0 %v1458, 32
        %v1491 = vpop.permute.xlu0 %1490
        %1492 = vrot.lane.b32.xlu0 %v1459, 32
        %v1493 = vpop.permute.xlu0 %1492
        %1494 = vrot.lane.b32.xlu0 %v1460, 32
        %v1495 = vpop.permute.xlu0 %1494
        %1496 = vrot.lane.b32.xlu0 %v1461, 32
        %v1497 = vpop.permute.xlu0 %1496
        %v1502 = vrot.slane %v1479, 4
        %v1503 = vsel %vm534, %v1502, %v1458
        %v1504 = vrot.slane %v1458, 4
        %v1505 = vsel %vm534, %v1479, %v1504
        %v1507 = vunpack.c.l.s4 1983009808
        %v1508 = vunpack.c.0.s8 %v1507
        %v1509 = vperm.slane %v1503, %v1508
        %v1511 = vunpack.c.l.s4 1983009808
        %v1512 = vunpack.c.0.s8 %v1511
        %v1513 = vperm.slane %v1505, %v1512
        %v1514 = vrot.slane %v1491, 4
        %v1515 = vsel %vm534, %v1514, %v1467
        %v1516 = vrot.slane %v1467, 4
        %v1517 = vsel %vm534, %v1491, %v1516
        %v1519 = vunpack.c.l.s4 1983009808
        %v1520 = vunpack.c.0.s8 %v1519
        %v1521 = vperm.slane %v1515, %v1520
        %v1523 = vunpack.c.l.s4 1983009808
        %v1524 = vunpack.c.0.s8 %v1523
        %v1525 = vperm.slane %v1517, %v1524
        %v1526 = vrot.slane %v1521, 4
        %v1527 = vsel %vm534, %v1526, %v1509
        %v1528 = vrot.slane %v1509, 4
        %v1529 = vsel %vm534, %v1521, %v1528
        %v1531 = vunpack.c.l.s4 1934713408
        %v1532 = vunpack.c.0.s8 %v1531
        %v1533 = vperm.slane %v1527, %v1532
        %v1535 = vunpack.c.l.s4 1934713408
        %v1536 = vunpack.c.0.s8 %v1535
        %v1537 = vperm.slane %v1529, %v1536
        %v1538 = vrot.slane %v1525, 4
        %v1539 = vsel %vm534, %v1538, %v1513
        %v1540 = vrot.slane %v1513, 4
        %v1541 = vsel %vm534, %v1525, %v1540
        %v1543 = vunpack.c.l.s4 1934713408
        %v1544 = vunpack.c.0.s8 %v1543
        %v1545 = vperm.slane %v1539, %v1544
        %v1547 = vunpack.c.l.s4 1934713408
        %v1548 = vunpack.c.0.s8 %v1547
        %v1549 = vperm.slane %v1541, %v1548
        %v1550 = vrot.slane %v1533, 4
        %v1551 = vsel %vm534, 0.0, %v1550
        %v1552 = vrot.slane %v1537, 4
        %v1553 = vsel %vm534, 0.0, %v1552
        %v1554 = vrot.slane %v1545, 4
        %v1555 = vsel %vm534, 0.0, %v1554
        %v1556 = vrot.slane %v1549, 4
        %v1557 = vsel %vm534, 0.0, %v1556
        %v1558 = vrot.slane %v1481, 4
        %v1559 = vsel %vm534, %v1558, %v1459
        %v1560 = vrot.slane %v1459, 4
        %v1561 = vsel %vm534, %v1481, %v1560
        %v1563 = vunpack.c.l.s4 1983009808
        %v1564 = vunpack.c.0.s8 %v1563
        %v1565 = vperm.slane %v1559, %v1564
        %v1567 = vunpack.c.l.s4 1983009808
        %v1568 = vunpack.c.0.s8 %v1567
        %v1569 = vperm.slane %v1561, %v1568
        %v1570 = vrot.slane %v1493, 4
        %v1571 = vsel %vm534, %v1570, %v1469
        %v1572 = vrot.slane %v1469, 4
        %v1573 = vsel %vm534, %v1493, %v1572
        %v1575 = vunpack.c.l.s4 1983009808
        %v1576 = vunpack.c.0.s8 %v1575
        %v1577 = vperm.slane %v1571, %v1576
        %v1579 = vunpack.c.l.s4 1983009808
        %v1580 = vunpack.c.0.s8 %v1579
        %v1581 = vperm.slane %v1573, %v1580
        %v1582 = vrot.slane %v1577, 4
        %v1583 = vsel %vm534, %v1582, %v1565
        %v1584 = vrot.slane %v1565, 4
        %v1585 = vsel %vm534, %v1577, %v1584
        %v1587 = vunpack.c.l.s4 1934713408
        %v1588 = vunpack.c.0.s8 %v1587
        %v1589 = vperm.slane %v1583, %v1588
        %v1591 = vunpack.c.l.s4 1934713408
        %v1592 = vunpack.c.0.s8 %v1591
        %v1593 = vperm.slane %v1585, %v1592
        %v1594 = vrot.slane %v1581, 4
        %v1595 = vsel %vm534, %v1594, %v1569
        %v1596 = vrot.slane %v1569, 4
        %v1597 = vsel %vm534, %v1581, %v1596
        %v1599 = vunpack.c.l.s4 1934713408
        %v1600 = vunpack.c.0.s8 %v1599
        %v1601 = vperm.slane %v1595, %v1600
        %v1603 = vunpack.c.l.s4 1934713408
        %v1604 = vunpack.c.0.s8 %v1603
        %v1605 = vperm.slane %v1597, %v1604
        %v1606 = vrot.slane %v1589, 4
        %v1607 = vsel %vm534, 0.0, %v1606
        %v1608 = vrot.slane %v1593, 4
        %v1609 = vsel %vm534, 0.0, %v1608
        %v1610 = vrot.slane %v1601, 4
        %v1611 = vsel %vm534, 0.0, %v1610
        %v1612 = vrot.slane %v1605, 4
        %v1613 = vsel %vm534, 0.0, %v1612
        %v1614 = vrot.slane %v1483, 4
        %v1615 = vsel %vm534, %v1614, %v1460
        %v1616 = vrot.slane %v1460, 4
        %v1617 = vsel %vm534, %v1483, %v1616
        %v1619 = vunpack.c.l.s4 1983009808
        %v1620 = vunpack.c.0.s8 %v1619
        %v1621 = vperm.slane %v1615, %v1620
        %v1623 = vunpack.c.l.s4 1983009808
        %v1624 = vunpack.c.0.s8 %v1623
        %v1625 = vperm.slane %v1617, %v1624
        %v1626 = vrot.slane %v1495, 4
        %v1627 = vsel %vm534, %v1626, %v1471
        %v1628 = vrot.slane %v1471, 4
        %v1629 = vsel %vm534, %v1495, %v1628
        %v1631 = vunpack.c.l.s4 1983009808
        %v1632 = vunpack.c.0.s8 %v1631
        %v1633 = vperm.slane %v1627, %v1632
        %v1635 = vunpack.c.l.s4 1983009808
        %v1636 = vunpack.c.0.s8 %v1635
        %v1637 = vperm.slane %v1629, %v1636
        %v1638 = vrot.slane %v1633, 4
        %v1639 = vsel %vm534, %v1638, %v1621
        %v1640 = vrot.slane %v1621, 4
        %v1641 = vsel %vm534, %v1633, %v1640
        %v1643 = vunpack.c.l.s4 1934713408
        %v1644 = vunpack.c.0.s8 %v1643
        %v1645 = vperm.slane %v1639, %v1644
        %v1647 = vunpack.c.l.s4 1934713408
        %v1648 = vunpack.c.0.s8 %v1647
        %v1649 = vperm.slane %v1641, %v1648
        %v1650 = vrot.slane %v1637, 4
        %v1651 = vsel %vm534, %v1650, %v1625
        %v1652 = vrot.slane %v1625, 4
        %v1653 = vsel %vm534, %v1637, %v1652
        %v1655 = vunpack.c.l.s4 1934713408
        %v1656 = vunpack.c.0.s8 %v1655
        %v1657 = vperm.slane %v1651, %v1656
        %v1659 = vunpack.c.l.s4 1934713408
        %v1660 = vunpack.c.0.s8 %v1659
        %v1661 = vperm.slane %v1653, %v1660
        %v1662 = vrot.slane %v1645, 4
        %v1663 = vsel %vm534, 0.0, %v1662
        %v1664 = vrot.slane %v1649, 4
        %v1665 = vsel %vm534, 0.0, %v1664
        %v1666 = vrot.slane %v1657, 4
        %v1667 = vsel %vm534, 0.0, %v1666
        %v1668 = vrot.slane %v1661, 4
        %v1669 = vsel %vm534, 0.0, %v1668
        %v1670 = vrot.slane %v1485, 4
        %v1671 = vsel %vm534, %v1670, %v1461
        %v1672 = vrot.slane %v1461, 4
        %v1673 = vsel %vm534, %v1485, %v1672
        %v1675 = vunpack.c.l.s4 1983009808
        %v1676 = vunpack.c.0.s8 %v1675
        %v1677 = vperm.slane %v1671, %v1676
        %v1679 = vunpack.c.l.s4 1983009808
        %v1680 = vunpack.c.0.s8 %v1679
        %v1681 = vperm.slane %v1673, %v1680
        %v1682 = vrot.slane %v1497, 4
        %v1683 = vsel %vm534, %v1682, %v1473
        %v1684 = vrot.slane %v1473, 4
        %v1685 = vsel %vm534, %v1497, %v1684
        %v1687 = vunpack.c.l.s4 1983009808
        %v1688 = vunpack.c.0.s8 %v1687
        %v1689 = vperm.slane %v1683, %v1688
        %v1691 = vunpack.c.l.s4 1983009808
        %v1692 = vunpack.c.0.s8 %v1691
        %v1693 = vperm.slane %v1685, %v1692
        %v1694 = vrot.slane %v1689, 4
        %v1695 = vsel %vm534, %v1694, %v1677
        %v1696 = vrot.slane %v1677, 4
        %v1697 = vsel %vm534, %v1689, %v1696
        %v1699 = vunpack.c.l.s4 1934713408
        %v1700 = vunpack.c.0.s8 %v1699
        %v1701 = vperm.slane %v1695, %v1700
        %v1703 = vunpack.c.l.s4 1934713408
        %v1704 = vunpack.c.0.s8 %v1703
        %v1705 = vperm.slane %v1697, %v1704
        %v1706 = vrot.slane %v1693, 4
        %v1707 = vsel %vm534, %v1706, %v1681
        %v1708 = vrot.slane %v1681, 4
        %v1709 = vsel %vm534, %v1693, %v1708
        %v1711 = vunpack.c.l.s4 1934713408
        %v1712 = vunpack.c.0.s8 %v1711
        %v1713 = vperm.slane %v1707, %v1712
        %v1715 = vunpack.c.l.s4 1934713408
        %v1716 = vunpack.c.0.s8 %v1715
        %v1717 = vperm.slane %v1709, %v1716
        %v1718 = vrot.slane %v1701, 4
        %v1719 = vsel %vm534, 0.0, %v1718
        %v1720 = vrot.slane %v1705, 4
        %v1721 = vsel %vm534, 0.0, %v1720
        %v1722 = vrot.slane %v1713, 4
        %v1723 = vsel %vm534, 0.0, %v1722
        %v1724 = vrot.slane %v1717, 4
        %v1725 = vsel %vm534, 0.0, %v1724
        %v1726 = vsel %vm534, %v1552, %v1533
        %v1728 = vunpack.c.l.s4 1983009808
        %v1729 = vunpack.c.0.s8 %v1728
        %v1730 = vperm.slane %v1726, %v1729
        %v1731 = vrot.slane %v1553, 4
        %v1732 = vsel %vm534, %v1731, %v1551
        %v1734 = vunpack.c.l.s4 1983009808
        %v1735 = vunpack.c.0.s8 %v1734
        %v1736 = vperm.slane %v1732, %v1735
        %v1737 = vsel %vm534, %v1556, %v1545
        %v1739 = vunpack.c.l.s4 1983009808
        %v1740 = vunpack.c.0.s8 %v1739
        %v1741 = vperm.slane %v1737, %v1740
        %v1742 = vrot.slane %v1557, 4
        %v1743 = vsel %vm534, %v1742, %v1555
        %v1745 = vunpack.c.l.s4 1983009808
        %v1746 = vunpack.c.0.s8 %v1745
        %v1747 = vperm.slane %v1743, %v1746
        %v1748 = vrot.slane %v1736, 4
        %v1749 = vsel %vm534, %v1748, %v1730
        %v1750 = vrot.slane %v1730, 4
        %v1751 = vsel %vm534, %v1736, %v1750
        %v1753 = vunpack.c.l.s4 1934713408
        %v1754 = vunpack.c.0.s8 %v1753
        %v1755 = vperm.slane %v1749, %v1754
        %v1757 = vunpack.c.l.s4 1934713408
        %v1758 = vunpack.c.0.s8 %v1757
        %v1759 = vperm.slane %v1751, %v1758
        %v1760 = vrot.slane %v1747, 4
        %v1761 = vsel %vm534, %v1760, %v1741
        %v1762 = vrot.slane %v1741, 4
        %v1763 = vsel %vm534, %v1747, %v1762
        %v1765 = vunpack.c.l.s4 1934713408
        %v1766 = vunpack.c.0.s8 %v1765
        %v1767 = vperm.slane %v1761, %v1766
        %v1769 = vunpack.c.l.s4 1934713408
        %v1770 = vunpack.c.0.s8 %v1769
        %v1771 = vperm.slane %v1763, %v1770
        %v1772 = vrot.slane %v1767, 4
        %v1773 = vsel %vm534, %v1772, %v1755
        %v1774 = vrot.slane %v1755, 4
        %v1775 = vsel %vm534, %v1767, %v1774
        %v1776 = vrot.slane %v1771, 4
        %v1777 = vsel %vm534, %v1776, %v1759
        %v1778 = vrot.slane %v1759, 4
        %v1779 = vsel %vm534, %v1771, %v1778
        %v1780 = vsel %vm534, %v1608, %v1589
        %v1782 = vunpack.c.l.s4 1983009808
        %v1783 = vunpack.c.0.s8 %v1782
        %v1784 = vperm.slane %v1780, %v1783
        %v1785 = vrot.slane %v1609, 4
        %v1786 = vsel %vm534, %v1785, %v1607
        %v1788 = vunpack.c.l.s4 1983009808
        %v1789 = vunpack.c.0.s8 %v1788
        %v1790 = vperm.slane %v1786, %v1789
        %v1791 = vsel %vm534, %v1612, %v1601
        %v1793 = vunpack.c.l.s4 1983009808
        %v1794 = vunpack.c.0.s8 %v1793
        %v1795 = vperm.slane %v1791, %v1794
        %v1796 = vrot.slane %v1613, 4
        %v1797 = vsel %vm534, %v1796, %v1611
        %v1799 = vunpack.c.l.s4 1983009808
        %v1800 = vunpack.c.0.s8 %v1799
        %v1801 = vperm.slane %v1797, %v1800
        %v1802 = vrot.slane %v1790, 4
        %v1803 = vsel %vm534, %v1802, %v1784
        %v1804 = vrot.slane %v1784, 4
        %v1805 = vsel %vm534, %v1790, %v1804
        %v1807 = vunpack.c.l.s4 1934713408
        %v1808 = vunpack.c.0.s8 %v1807
        %v1809 = vperm.slane %v1803, %v1808
        %v1811 = vunpack.c.l.s4 1934713408
        %v1812 = vunpack.c.0.s8 %v1811
        %v1813 = vperm.slane %v1805, %v1812
        %v1814 = vrot.slane %v1801, 4
        %v1815 = vsel %vm534, %v1814, %v1795
        %v1816 = vrot.slane %v1795, 4
        %v1817 = vsel %vm534, %v1801, %v1816
        %v1819 = vunpack.c.l.s4 1934713408
        %v1820 = vunpack.c.0.s8 %v1819
        %v1821 = vperm.slane %v1815, %v1820
        %v1823 = vunpack.c.l.s4 1934713408
        %v1824 = vunpack.c.0.s8 %v1823
        %v1825 = vperm.slane %v1817, %v1824
        %v1826 = vrot.slane %v1821, 4
        %v1827 = vsel %vm534, %v1826, %v1809
        %v1828 = vrot.slane %v1809, 4
        %v1829 = vsel %vm534, %v1821, %v1828
        %v1830 = vrot.slane %v1825, 4
        %v1831 = vsel %vm534, %v1830, %v1813
        %v1832 = vrot.slane %v1813, 4
        %v1833 = vsel %vm534, %v1825, %v1832
        %v1834 = vsel %vm534, %v1664, %v1645
        %v1836 = vunpack.c.l.s4 1983009808
        %v1837 = vunpack.c.0.s8 %v1836
        %v1838 = vperm.slane %v1834, %v1837
        %v1839 = vrot.slane %v1665, 4
        %v1840 = vsel %vm534, %v1839, %v1663
        %v1842 = vunpack.c.l.s4 1983009808
        %v1843 = vunpack.c.0.s8 %v1842
        %v1844 = vperm.slane %v1840, %v1843
        %v1845 = vsel %vm534, %v1668, %v1657
        %v1847 = vunpack.c.l.s4 1983009808
        %v1848 = vunpack.c.0.s8 %v1847
        %v1849 = vperm.slane %v1845, %v1848
        %v1850 = vrot.slane %v1669, 4
        %v1851 = vsel %vm534, %v1850, %v1667
        %v1853 = vunpack.c.l.s4 1983009808
        %v1854 = vunpack.c.0.s8 %v1853
        %v1855 = vperm.slane %v1851, %v1854
        %v1856 = vrot.slane %v1844, 4
        %v1857 = vsel %vm534, %v1856, %v1838
        %v1858 = vrot.slane %v1838, 4
        %v1859 = vsel %vm534, %v1844, %v1858
        %v1861 = vunpack.c.l.s4 1934713408
        %v1862 = vunpack.c.0.s8 %v1861
        %v1863 = vperm.slane %v1857, %v1862
        %v1865 = vunpack.c.l.s4 1934713408
        %v1866 = vunpack.c.0.s8 %v1865
        %v1867 = vperm.slane %v1859, %v1866
        %v1868 = vrot.slane %v1855, 4
        %v1869 = vsel %vm534, %v1868, %v1849
        %v1870 = vrot.slane %v1849, 4
        %v1871 = vsel %vm534, %v1855, %v1870
        %v1873 = vunpack.c.l.s4 1934713408
        %v1874 = vunpack.c.0.s8 %v1873
        %v1875 = vperm.slane %v1869, %v1874
        %v1877 = vunpack.c.l.s4 1934713408
        %v1878 = vunpack.c.0.s8 %v1877
        %v1879 = vperm.slane %v1871, %v1878
        %v1880 = vrot.slane %v1875, 4
        %v1881 = vsel %vm534, %v1880, %v1863
        %v1882 = vrot.slane %v1863, 4
        %v1883 = vsel %vm534, %v1875, %v1882
        %v1884 = vrot.slane %v1879, 4
        %v1885 = vsel %vm534, %v1884, %v1867
        %v1886 = vrot.slane %v1867, 4
        %v1887 = vsel %vm534, %v1879, %v1886
        %v1888 = vsel %vm534, %v1720, %v1701
        %v1890 = vunpack.c.l.s4 1983009808
        %v1891 = vunpack.c.0.s8 %v1890
        %v1892 = vperm.slane %v1888, %v1891
        %v1893 = vrot.slane %v1721, 4
        %v1894 = vsel %vm534, %v1893, %v1719
        %v1896 = vunpack.c.l.s4 1983009808
        %v1897 = vunpack.c.0.s8 %v1896
        %v1898 = vperm.slane %v1894, %v1897
        %v1899 = vsel %vm534, %v1724, %v1713
        %v1901 = vunpack.c.l.s4 1983009808
        %v1902 = vunpack.c.0.s8 %v1901
        %v1903 = vperm.slane %v1899, %v1902
        %v1904 = vrot.slane %v1725, 4
        %v1905 = vsel %vm534, %v1904, %v1723
        %v1907 = vunpack.c.l.s4 1983009808
        %v1908 = vunpack.c.0.s8 %v1907
        %v1909 = vperm.slane %v1905, %v1908
        %v1910 = vrot.slane %v1898, 4
        %v1911 = vsel %vm534, %v1910, %v1892
        %v1912 = vrot.slane %v1892, 4
        %v1913 = vsel %vm534, %v1898, %v1912
        %v1915 = vunpack.c.l.s4 1934713408
        %v1916 = vunpack.c.0.s8 %v1915
        %v1917 = vperm.slane %v1911, %v1916
        %v1919 = vunpack.c.l.s4 1934713408
        %v1920 = vunpack.c.0.s8 %v1919
        %v1921 = vperm.slane %v1913, %v1920
        %v1922 = vrot.slane %v1909, 4
        %v1923 = vsel %vm534, %v1922, %v1903
        %v1924 = vrot.slane %v1903, 4
        %v1925 = vsel %vm534, %v1909, %v1924
        %v1927 = vunpack.c.l.s4 1934713408
        %v1928 = vunpack.c.0.s8 %v1927
        %v1929 = vperm.slane %v1923, %v1928
        %v1931 = vunpack.c.l.s4 1934713408
        %v1932 = vunpack.c.0.s8 %v1931
        %v1933 = vperm.slane %v1925, %v1932
        %v1934 = vrot.slane %v1929, 4
        %v1935 = vsel %vm534, %v1934, %v1917
        %v1936 = vrot.slane %v1917, 4
        %v1937 = vsel %vm534, %v1929, %v1936
        %v1938 = vrot.slane %v1933, 4
        %v1939 = vsel %vm534, %v1938, %v1921
        %v1940 = vrot.slane %v1921, 4
        %v1941 = vsel %vm534, %v1933, %v1940
        %vm1942 = vcmask 261120
        %v1944 = vsel %vm1942, %v805, 0
        %v1947 = vsel %vm1942, %v859, 0
        %v1950 = vsel %vm1942, %v913, 0
        %v1953 = vsel %vm1942, %v967, 0
        %v1956 = vsel %vm1942, %v1289, 0
        %v1959 = vsel %vm1942, %v1343, 0
        %v1962 = vsel %vm1942, %v1397, 0
        %v1965 = vsel %vm1942, %v1451, 0
        %1967 = vmatpush.xpose.msra.mxu0 0.0
        %1968 = vmatpush.xpose.msra.mxu0 0.0
        %1969 = vmatpush.xpose.msra.mxu0 0.0
        %1970 = vmatpush.xpose.msra.mxu0 0.0
        %1971 = vmatpush.xpose.msra.mxu0 0.0
        %1972 = vmatpush.xpose.msra.mxu0 0.0
        %1973 = vmatpush.xpose.msra.mxu0 0.0
        %1974 = vmatpush.xpose.msra.mxu0 0.0
        %1975 = vmatpush.xpose.msra.mxu0 0.0
        %1976 = vmatpush.xpose.msra.mxu0 0.0
        %1977 = vmatpush.xpose.msra.mxu0 0.0
        %1978 = vmatpush.xpose.msra.mxu0 0.0
        %1979 = vmatpush.xpose.msra.mxu0 %v1965
        %1980 = vmatpush.xpose.msra.mxu0 %v1962
        %1981 = vmatpush.xpose.msra.mxu0 %v1959
        %1982 = vmatpush.xpose.msra.mxu0 %v1956
        %1983 = vmatmul.f32.gmra.mxu0 %v1944
        %v1984 = vpop.f32.mrf.mxu0
        %v1985 = vadd.f32 0.0, %v1984
        %1986 = vmatmul.f32.gmra.mxu0 %v1947
        %v1987 = vpop.f32.mrf.mxu0
        %v1988 = vadd.f32 0.0, %v1987
        %1989 = vmatmul.f32.gmra.mxu0 %v1950
        %v1990 = vpop.f32.mrf.mxu0
        %v1991 = vadd.f32 0.0, %v1990
        %1992 = vmatmul.f32.gmra.mxu0 %v1953
        %v1993 = vpop.f32.mrf.mxu0
        %v1994 = vadd.f32 0.0, %v1993
        %1995 = vdwg.mxu0
        %v1997 = vsel %vm1942, %v807, 0
        %v2000 = vsel %vm1942, %v861, 0
        %v2003 = vsel %vm1942, %v915, 0
        %v2006 = vsel %vm1942, %v969, 0
        %v2009 = vsel %vm1942, %v1291, 0
        %v2012 = vsel %vm1942, %v1345, 0
        %v2015 = vsel %vm1942, %v1399, 0
        %v2018 = vsel %vm1942, %v1453, 0
        %2020 = vmatpush.xpose.msra.mxu0 0.0
        %2021 = vmatpush.xpose.msra.mxu0 0.0
        %2022 = vmatpush.xpose.msra.mxu0 0.0
        %2023 = vmatpush.xpose.msra.mxu0 0.0
        %2024 = vmatpush.xpose.msra.mxu0 0.0
        %2025 = vmatpush.xpose.msra.mxu0 0.0
        %2026 = vmatpush.xpose.msra.mxu0 0.0
        %2027 = vmatpush.xpose.msra.mxu0 0.0
        %2028 = vmatpush.xpose.msra.mxu0 0.0
        %2029 = vmatpush.xpose.msra.mxu0 0.0
        %2030 = vmatpush.xpose.msra.mxu0 0.0
        %2031 = vmatpush.xpose.msra.mxu0 0.0
        %2032 = vmatpush.xpose.msra.mxu0 %v2018
        %2033 = vmatpush.xpose.msra.mxu0 %v2015
        %2034 = vmatpush.xpose.msra.mxu0 %v2012
        %2035 = vmatpush.xpose.msra.mxu0 %v2009
        %2036 = vmatmul.f32.gmra.mxu0 %v1997
        %v2037 = vpop.f32.mrf.mxu0
        %v2038 = vadd.f32 0.0, %v2037
        %2039 = vmatmul.f32.gmra.mxu0 %v2000
        %v2040 = vpop.f32.mrf.mxu0
        %v2041 = vadd.f32 0.0, %v2040
        %2042 = vmatmul.f32.gmra.mxu0 %v2003
        %v2043 = vpop.f32.mrf.mxu0
        %v2044 = vadd.f32 0.0, %v2043
        %2045 = vmatmul.f32.gmra.mxu0 %v2006
        %v2046 = vpop.f32.mrf.mxu0
        %v2047 = vadd.f32 0.0, %v2046
        %2048 = vdwg.mxu0
        %v2050 = vsel %vm1942, %v809, 0
        %v2053 = vsel %vm1942, %v863, 0
        %v2056 = vsel %vm1942, %v917, 0
        %v2059 = vsel %vm1942, %v971, 0
        %v2062 = vsel %vm1942, %v1293, 0
        %v2065 = vsel %vm1942, %v1347, 0
        %v2068 = vsel %vm1942, %v1401, 0
        %v2071 = vsel %vm1942, %v1455, 0
        %2073 = vmatpush.xpose.msra.mxu0 0.0
        %2074 = vmatpush.xpose.msra.mxu0 0.0
        %2075 = vmatpush.xpose.msra.mxu0 0.0
        %2076 = vmatpush.xpose.msra.mxu0 0.0
        %2077 = vmatpush.xpose.msra.mxu0 0.0
        %2078 = vmatpush.xpose.msra.mxu0 0.0
        %2079 = vmatpush.xpose.msra.mxu0 0.0
        %2080 = vmatpush.xpose.msra.mxu0 0.0
        %2081 = vmatpush.xpose.msra.mxu0 0.0
        %2082 = vmatpush.xpose.msra.mxu0 0.0
        %2083 = vmatpush.xpose.msra.mxu0 0.0
        %2084 = vmatpush.xpose.msra.mxu0 0.0
        %2085 = vmatpush.xpose.msra.mxu0 %v2071
        %2086 = vmatpush.xpose.msra.mxu0 %v2068
        %2087 = vmatpush.xpose.msra.mxu0 %v2065
        %2088 = vmatpush.xpose.msra.mxu0 %v2062
        %2089 = vmatmul.f32.gmra.mxu0 %v2050
        %v2090 = vpop.f32.mrf.mxu0
        %v2091 = vadd.f32 0.0, %v2090
        %2092 = vmatmul.f32.gmra.mxu0 %v2053
        %v2093 = vpop.f32.mrf.mxu0
        %v2094 = vadd.f32 0.0, %v2093
        %2095 = vmatmul.f32.gmra.mxu0 %v2056
        %v2096 = vpop.f32.mrf.mxu0
        %v2097 = vadd.f32 0.0, %v2096
        %2098 = vmatmul.f32.gmra.mxu0 %v2059
        %v2099 = vpop.f32.mrf.mxu0
        %v2100 = vadd.f32 0.0, %v2099
        %2101 = vdwg.mxu0
        %v2103 = vsel %vm1942, %v811, 0
        %v2106 = vsel %vm1942, %v865, 0
        %v2109 = vsel %vm1942, %v919, 0
        %v2112 = vsel %vm1942, %v973, 0
        %v2115 = vsel %vm1942, %v1295, 0
        %v2118 = vsel %vm1942, %v1349, 0
        %v2121 = vsel %vm1942, %v1403, 0
        %v2124 = vsel %vm1942, %v1457, 0
        %2126 = vmatpush.xpose.msra.mxu0 0.0
        %2127 = vmatpush.xpose.msra.mxu0 0.0
        %2128 = vmatpush.xpose.msra.mxu0 0.0
        %2129 = vmatpush.xpose.msra.mxu0 0.0
        %2130 = vmatpush.xpose.msra.mxu0 0.0
        %2131 = vmatpush.xpose.msra.mxu0 0.0
        %2132 = vmatpush.xpose.msra.mxu0 0.0
        %2133 = vmatpush.xpose.msra.mxu0 0.0
        %2134 = vmatpush.xpose.msra.mxu0 0.0
        %2135 = vmatpush.xpose.msra.mxu0 0.0
        %2136 = vmatpush.xpose.msra.mxu0 0.0
        %2137 = vmatpush.xpose.msra.mxu0 0.0
        %2138 = vmatpush.xpose.msra.mxu0 %v2124
        %2139 = vmatpush.xpose.msra.mxu0 %v2121
        %2140 = vmatpush.xpose.msra.mxu0 %v2118
        %2141 = vmatpush.xpose.msra.mxu0 %v2115
        %2142 = vmatmul.f32.gmra.mxu0 %v2103
        %v2143 = vpop.f32.mrf.mxu0
        %v2144 = vadd.f32 0.0, %v2143
        %2145 = vmatmul.f32.gmra.mxu0 %v2106
        %v2146 = vpop.f32.mrf.mxu0
        %v2147 = vadd.f32 0.0, %v2146
        %2148 = vmatmul.f32.gmra.mxu0 %v2109
        %v2149 = vpop.f32.mrf.mxu0
        %v2150 = vadd.f32 0.0, %v2149
        %2151 = vmatmul.f32.gmra.mxu0 %v2112
        %v2152 = vpop.f32.mrf.mxu0
        %v2153 = vadd.f32 0.0, %v2152
        %2154 = vdwg.mxu0
        %v2155 = vld [vmem:[#allocation2] sm:$0xff]
        %v2156 = vld [vmem:[#allocation2 + $0x8] sm:$0xff]
        %v2157 = vld [vmem:[#allocation2 + $0x10] sm:$0xff]
        %v2158 = vld [vmem:[#allocation2 + $0x18] sm:$0xff]
        %v2159 = vld [vmem:[#allocation2 + $0x20] sm:$0xff]
        %v2160 = vld [vmem:[#allocation2 + $0x28] sm:$0xff]
        %v2161 = vld [vmem:[#allocation2 + $0x30] sm:$0xff]
        %v2162 = vld [vmem:[#allocation2 + $0x38] sm:$0xff]
        %v2163 = vld [vmem:[#allocation2 + $0x40] sm:$0xff]
        %v2164 = vld [vmem:[#allocation2 + $0x48] sm:$0xff]
        %v2165 = vld [vmem:[#allocation2 + $0x50] sm:$0xff]
        %v2166 = vld [vmem:[#allocation2 + $0x58] sm:$0xff]
        %v2167 = vld [vmem:[#allocation2 + $0x60] sm:$0xff]
        %v2168 = vld [vmem:[#allocation2 + $0x68] sm:$0xff]
        %v2169 = vld [vmem:[#allocation2 + $0x70] sm:$0xff]
        %v2170 = vld [vmem:[#allocation2 + $0x78] sm:$0xff]
        %v2171 = vsel %vm1942, %v1985, -inf
        %2172 = vmax.xlane.f32.xlu0 %v2171
        %v2173 = vpop.xlane.xlu0 %2172
        %v2174 = vsel %vm1942, %v1988, -inf
        %2175 = vmax.xlane.f32.xlu0 %v2174
        %v2176 = vpop.xlane.xlu0 %2175
        %v2177 = vsel %vm1942, %v1991, -inf
        %2178 = vmax.xlane.f32.xlu0 %v2177
        %v2179 = vpop.xlane.xlu0 %2178
        %v2180 = vsel %vm1942, %v1994, -inf
        %2181 = vmax.xlane.f32.xlu0 %v2180
        %v2182 = vpop.xlane.xlu0 %2181
        %v2183 = vsel %vm1942, %v2038, -inf
        %2184 = vmax.xlane.f32.xlu0 %v2183
        %v2185 = vpop.xlane.xlu0 %2184
        %v2186 = vsel %vm1942, %v2041, -inf
        %2187 = vmax.xlane.f32.xlu0 %v2186
        %v2188 = vpop.xlane.xlu0 %2187
        %v2189 = vsel %vm1942, %v2044, -inf
        %2190 = vmax.xlane.f32.xlu0 %v2189
        %v2191 = vpop.xlane.xlu0 %2190
        %v2192 = vsel %vm1942, %v2047, -inf
        %2193 = vmax.xlane.f32.xlu0 %v2192
        %v2194 = vpop.xlane.xlu0 %2193
        %v2195 = vsel %vm1942, %v2091, -inf
        %2196 = vmax.xlane.f32.xlu0 %v2195
        %v2197 = vpop.xlane.xlu0 %2196
        %v2198 = vsel %vm1942, %v2094, -inf
        %2199 = vmax.xlane.f32.xlu0 %v2198
        %v2200 = vpop.xlane.xlu0 %2199
        %v2201 = vsel %vm1942, %v2097, -inf
        %2202 = vmax.xlane.f32.xlu0 %v2201
        %v2203 = vpop.xlane.xlu0 %2202
        %v2204 = vsel %vm1942, %v2100, -inf
        %2205 = vmax.xlane.f32.xlu0 %v2204
        %v2206 = vpop.xlane.xlu0 %2205
        %v2207 = vsel %vm1942, %v2144, -inf
        %2208 = vmax.xlane.f32.xlu0 %v2207
        %v2209 = vpop.xlane.xlu0 %2208
        %v2210 = vsel %vm1942, %v2147, -inf
        %2211 = vmax.xlane.f32.xlu0 %v2210
        %v2212 = vpop.xlane.xlu0 %2211
        %v2213 = vsel %vm1942, %v2150, -inf
        %2214 = vmax.xlane.f32.xlu0 %v2213
        %v2215 = vpop.xlane.xlu0 %2214
        %v2216 = vsel %vm1942, %v2153, -inf
        %2217 = vmax.xlane.f32.xlu0 %v2216
        %v2218 = vpop.xlane.xlu0 %2217
        %v2219 = vmax.f32 %v2155, %v2173
        %v2220 = vmax.f32 %v2156, %v2176
        %v2221 = vmax.f32 %v2157, %v2179
        %v2222 = vmax.f32 %v2158, %v2182
        %v2223 = vmax.f32 %v2159, %v2185
        %v2224 = vmax.f32 %v2160, %v2188
        %v2225 = vmax.f32 %v2161, %v2191
        %v2226 = vmax.f32 %v2162, %v2194
        %v2227 = vmax.f32 %v2163, %v2197
        %v2228 = vmax.f32 %v2164, %v2200
        %v2229 = vmax.f32 %v2165, %v2203
        %v2230 = vmax.f32 %v2166, %v2206
        %v2231 = vmax.f32 %v2167, %v2209
        %v2232 = vmax.f32 %v2168, %v2212
        %v2233 = vmax.f32 %v2169, %v2215
        %v2234 = vmax.f32 %v2170, %v2218
        %v2235 = vsub.f32 %v2155, %v2219
        %v2236 = vsub.f32 %v2156, %v2220
        %v2237 = vsub.f32 %v2157, %v2221
        %v2238 = vsub.f32 %v2158, %v2222
        %v2239 = vsub.f32 %v2159, %v2223
        %v2240 = vsub.f32 %v2160, %v2224
        %v2241 = vsub.f32 %v2161, %v2225
        %v2242 = vsub.f32 %v2162, %v2226
        %v2243 = vsub.f32 %v2163, %v2227
        %v2244 = vsub.f32 %v2164, %v2228
        %v2245 = vsub.f32 %v2165, %v2229
        %v2246 = vsub.f32 %v2166, %v2230
        %v2247 = vsub.f32 %v2167, %v2231
        %v2248 = vsub.f32 %v2168, %v2232
        %v2249 = vsub.f32 %v2169, %v2233
        %v2250 = vsub.f32 %v2170, %v2234
        %v2251 = vmul.f32 %v2235, 1.442695
        %v2252 = vpow.pop %v2251
        %v2253 = vmul.f32 %v2236, 1.442695
        %v2254 = vpow.pop %v2253
        %v2255 = vmul.f32 %v2237, 1.442695
        %v2256 = vpow.pop %v2255
        %v2257 = vmul.f32 %v2238, 1.442695
        %v2258 = vpow.pop %v2257
        %v2259 = vmul.f32 %v2239, 1.442695
        %v2260 = vpow.pop %v2259
        %v2261 = vmul.f32 %v2240, 1.442695
        %v2262 = vpow.pop %v2261
        %v2263 = vmul.f32 %v2241, 1.442695
        %v2264 = vpow.pop %v2263
        %v2265 = vmul.f32 %v2242, 1.442695
        %v2266 = vpow.pop %v2265
        %v2267 = vmul.f32 %v2243, 1.442695
        %v2268 = vpow.pop %v2267
        %v2269 = vmul.f32 %v2244, 1.442695
        %v2270 = vpow.pop %v2269
        %v2271 = vmul.f32 %v2245, 1.442695
        %v2272 = vpow.pop %v2271
        %v2273 = vmul.f32 %v2246, 1.442695
        %v2274 = vpow.pop %v2273
        %v2275 = vmul.f32 %v2247, 1.442695
        %v2276 = vpow.pop %v2275
        %v2277 = vmul.f32 %v2248, 1.442695
        %v2278 = vpow.pop %v2277
        %v2279 = vmul.f32 %v2249, 1.442695
        %v2280 = vpow.pop %v2279
        %v2281 = vmul.f32 %v2250, 1.442695
        %v2282 = vpow.pop %v2281
        %2284 = vset.pattern.permute.xlu0 0
        %2285 = vperm.xlu0 %2284, %v2219
        %v2286 = vpop.permute.xlu0 %2285
        %2289 = vset.pattern.permute.xlu0 0
        %2290 = vperm.xlu0 %2289, %v2220
        %v2291 = vpop.permute.xlu0 %2290
        %2294 = vset.pattern.permute.xlu0 0
        %2295 = vperm.xlu0 %2294, %v2221
        %v2296 = vpop.permute.xlu0 %2295
        %2299 = vset.pattern.permute.xlu0 0
        %2300 = vperm.xlu0 %2299, %v2222
        %v2301 = vpop.permute.xlu0 %2300
        %2304 = vset.pattern.permute.xlu0 0
        %2305 = vperm.xlu0 %2304, %v2223
        %v2306 = vpop.permute.xlu0 %2305
        %2309 = vset.pattern.permute.xlu0 0
        %2310 = vperm.xlu0 %2309, %v2224
        %v2311 = vpop.permute.xlu0 %2310
        %2314 = vset.pattern.permute.xlu0 0
        %2315 = vperm.xlu0 %2314, %v2225
        %v2316 = vpop.permute.xlu0 %2315
        %2319 = vset.pattern.permute.xlu0 0
        %2320 = vperm.xlu0 %2319, %v2226
        %v2321 = vpop.permute.xlu0 %2320
        %2324 = vset.pattern.permute.xlu0 0
        %2325 = vperm.xlu0 %2324, %v2227
        %v2326 = vpop.permute.xlu0 %2325
        %2329 = vset.pattern.permute.xlu0 0
        %2330 = vperm.xlu0 %2329, %v2228
        %v2331 = vpop.permute.xlu0 %2330
        %2334 = vset.pattern.permute.xlu0 0
        %2335 = vperm.xlu0 %2334, %v2229
        %v2336 = vpop.permute.xlu0 %2335
        %2339 = vset.pattern.permute.xlu0 0
        %2340 = vperm.xlu0 %2339, %v2230
        %v2341 = vpop.permute.xlu0 %2340
        %2344 = vset.pattern.permute.xlu0 0
        %2345 = vperm.xlu0 %2344, %v2231
        %v2346 = vpop.permute.xlu0 %2345
        %2349 = vset.pattern.permute.xlu0 0
        %2350 = vperm.xlu0 %2349, %v2232
        %v2351 = vpop.permute.xlu0 %2350
        %2354 = vset.pattern.permute.xlu0 0
        %2355 = vperm.xlu0 %2354, %v2233
        %v2356 = vpop.permute.xlu0 %2355
        %2359 = vset.pattern.permute.xlu0 0
        %2360 = vperm.xlu0 %2359, %v2234
        %v2361 = vpop.permute.xlu0 %2360
        %v2363 = vsub.f32 %v1985, %v2286
        %v2364 = vsub.f32 %v1988, %v2291
        %v2365 = vsub.f32 %v1991, %v2296
        %v2366 = vsub.f32 %v1994, %v2301
        %v2367 = vsub.f32 %v2038, %v2306
        %v2368 = vsub.f32 %v2041, %v2311
        %v2369 = vsub.f32 %v2044, %v2316
        %v2370 = vsub.f32 %v2047, %v2321
        %v2371 = vsub.f32 %v2091, %v2326
        %v2372 = vsub.f32 %v2094, %v2331
        %v2373 = vsub.f32 %v2097, %v2336
        %v2374 = vsub.f32 %v2100, %v2341
        %v2375 = vsub.f32 %v2144, %v2346
        %v2376 = vsub.f32 %v2147, %v2351
        %v2377 = vsub.f32 %v2150, %v2356
        %v2378 = vsub.f32 %v2153, %v2361
        %v2379 = vmul.f32 %v2363, 1.442695
        %v2380 = vpow.pop %v2379
        %v2381 = vmul.f32 %v2364, 1.442695
        %v2382 = vpow.pop %v2381
        %v2383 = vmul.f32 %v2365, 1.442695
        %v2384 = vpow.pop %v2383
        %v2385 = vmul.f32 %v2366, 1.442695
        %v2386 = vpow.pop %v2385
        %v2387 = vmul.f32 %v2367, 1.442695
        %v2388 = vpow.pop %v2387
        %v2389 = vmul.f32 %v2368, 1.442695
        %v2390 = vpow.pop %v2389
        %v2391 = vmul.f32 %v2369, 1.442695
        %v2392 = vpow.pop %v2391
        %v2393 = vmul.f32 %v2370, 1.442695
        %v2394 = vpow.pop %v2393
        %v2395 = vmul.f32 %v2371, 1.442695
        %v2396 = vpow.pop %v2395
        %v2397 = vmul.f32 %v2372, 1.442695
        %v2398 = vpow.pop %v2397
        %v2399 = vmul.f32 %v2373, 1.442695
        %v2400 = vpow.pop %v2399
        %v2401 = vmul.f32 %v2374, 1.442695
        %v2402 = vpow.pop %v2401
        %v2403 = vmul.f32 %v2375, 1.442695
        %v2404 = vpow.pop %v2403
        %v2405 = vmul.f32 %v2376, 1.442695
        %v2406 = vpow.pop %v2405
        %v2407 = vmul.f32 %v2377, 1.442695
        %v2408 = vpow.pop %v2407
        %v2409 = vmul.f32 %v2378, 1.442695
        %v2410 = vpow.pop %v2409
        %v2411 = vld [vmem:[#allocation3] sm:$0xff]
        %v2412 = vld [vmem:[#allocation3 + $0x8] sm:$0xff]
        %v2413 = vld [vmem:[#allocation3 + $0x10] sm:$0xff]
        %v2414 = vld [vmem:[#allocation3 + $0x18] sm:$0xff]
        %v2415 = vld [vmem:[#allocation3 + $0x20] sm:$0xff]
        %v2416 = vld [vmem:[#allocation3 + $0x28] sm:$0xff]
        %v2417 = vld [vmem:[#allocation3 + $0x30] sm:$0xff]
        %v2418 = vld [vmem:[#allocation3 + $0x38] sm:$0xff]
        %v2419 = vld [vmem:[#allocation3 + $0x40] sm:$0xff]
        %v2420 = vld [vmem:[#allocation3 + $0x48] sm:$0xff]
        %v2421 = vld [vmem:[#allocation3 + $0x50] sm:$0xff]
        %v2422 = vld [vmem:[#allocation3 + $0x58] sm:$0xff]
        %v2423 = vld [vmem:[#allocation3 + $0x60] sm:$0xff]
        %v2424 = vld [vmem:[#allocation3 + $0x68] sm:$0xff]
        %v2425 = vld [vmem:[#allocation3 + $0x70] sm:$0xff]
        %v2426 = vld [vmem:[#allocation3 + $0x78] sm:$0xff]
        %v2427 = vmul.f32 %v2252, %v2411
        %v2428 = vmul.f32 %v2254, %v2412
        %v2429 = vmul.f32 %v2256, %v2413
        %v2430 = vmul.f32 %v2258, %v2414
        %v2431 = vmul.f32 %v2260, %v2415
        %v2432 = vmul.f32 %v2262, %v2416
        %v2433 = vmul.f32 %v2264, %v2417
        %v2434 = vmul.f32 %v2266, %v2418
        %v2435 = vmul.f32 %v2268, %v2419
        %v2436 = vmul.f32 %v2270, %v2420
        %v2437 = vmul.f32 %v2272, %v2421
        %v2438 = vmul.f32 %v2274, %v2422
        %v2439 = vmul.f32 %v2276, %v2423
        %v2440 = vmul.f32 %v2278, %v2424
        %v2441 = vmul.f32 %v2280, %v2425
        %v2442 = vmul.f32 %v2282, %v2426
        %v2443 = vsel %vm1942, %v2380, 0.0
        %2444 = vadd.xlane.f32.xlu0 %v2443
        %v2445 = vpop.xlane.xlu0 %2444
        %v2446 = vsel %vm1942, %v2382, 0.0
        %2447 = vadd.xlane.f32.xlu0 %v2446
        %v2448 = vpop.xlane.xlu0 %2447
        %v2449 = vsel %vm1942, %v2384, 0.0
        %2450 = vadd.xlane.f32.xlu0 %v2449
        %v2451 = vpop.xlane.xlu0 %2450
        %v2452 = vsel %vm1942, %v2386, 0.0
        %2453 = vadd.xlane.f32.xlu0 %v2452
        %v2454 = vpop.xlane.xlu0 %2453
        %v2455 = vsel %vm1942, %v2388, 0.0
        %2456 = vadd.xlane.f32.xlu0 %v2455
        %v2457 = vpop.xlane.xlu0 %2456
        %v2458 = vsel %vm1942, %v2390, 0.0
        %2459 = vadd.xlane.f32.xlu0 %v2458
        %v2460 = vpop.xlane.xlu0 %2459
        %v2461 = vsel %vm1942, %v2392, 0.0
        %2462 = vadd.xlane.f32.xlu0 %v2461
        %v2463 = vpop.xlane.xlu0 %2462
        %v2464 = vsel %vm1942, %v2394, 0.0
        %2465 = vadd.xlane.f32.xlu0 %v2464
        %v2466 = vpop.xlane.xlu0 %2465
        %v2467 = vsel %vm1942, %v2396, 0.0
        %2468 = vadd.xlane.f32.xlu0 %v2467
        %v2469 = vpop.xlane.xlu0 %2468
        %v2470 = vsel %vm1942, %v2398, 0.0
        %2471 = vadd.xlane.f32.xlu0 %v2470
        %v2472 = vpop.xlane.xlu0 %2471
        %v2473 = vsel %vm1942, %v2400, 0.0
        %2474 = vadd.xlane.f32.xlu0 %v2473
        %v2475 = vpop.xlane.xlu0 %2474
        %v2476 = vsel %vm1942, %v2402, 0.0
        %2477 = vadd.xlane.f32.xlu0 %v2476
        %v2478 = vpop.xlane.xlu0 %2477
        %v2479 = vsel %vm1942, %v2404, 0.0
        %2480 = vadd.xlane.f32.xlu0 %v2479
        %v2481 = vpop.xlane.xlu0 %2480
        %v2482 = vsel %vm1942, %v2406, 0.0
        %2483 = vadd.xlane.f32.xlu0 %v2482
        %v2484 = vpop.xlane.xlu0 %2483
        %v2485 = vsel %vm1942, %v2408, 0.0
        %2486 = vadd.xlane.f32.xlu0 %v2485
        %v2487 = vpop.xlane.xlu0 %2486
        %v2488 = vsel %vm1942, %v2410, 0.0
        %2489 = vadd.xlane.f32.xlu0 %v2488
        %v2490 = vpop.xlane.xlu0 %2489
        %v2491 = vadd.f32 %v2427, %v2445
        %v2492 = vadd.f32 %v2428, %v2448
        %v2493 = vadd.f32 %v2429, %v2451
        %v2494 = vadd.f32 %v2430, %v2454
        %v2495 = vadd.f32 %v2431, %v2457
        %v2496 = vadd.f32 %v2432, %v2460
        %v2497 = vadd.f32 %v2433, %v2463
        %v2498 = vadd.f32 %v2434, %v2466
        %v2499 = vadd.f32 %v2435, %v2469
        %v2500 = vadd.f32 %v2436, %v2472
        %v2501 = vadd.f32 %v2437, %v2475
        %v2502 = vadd.f32 %v2438, %v2478
        %v2503 = vadd.f32 %v2439, %v2481
        %v2504 = vadd.f32 %v2440, %v2484
        %v2505 = vadd.f32 %v2441, %v2487
        %v2506 = vadd.f32 %v2442, %v2490
        %vm2507 = vcmask 7168
        %2508 = vst.msk [vmem:[#allocation3] sm:$0xff] %vm2507, %v2491
        %2509 = vst.msk [vmem:[#allocation3 + $0x8] sm:$0xff] %vm2507, %v2492
        %2510 = vst.msk [vmem:[#allocation3 + $0x10] sm:$0xff] %vm2507, %v2493
        %2511 = vst.msk [vmem:[#allocation3 + $0x18] sm:$0xff] %vm2507, %v2494
        %2512 = vst.msk [vmem:[#allocation3 + $0x20] sm:$0xff] %vm2507, %v2495
        %2513 = vst.msk [vmem:[#allocation3 + $0x28] sm:$0xff] %vm2507, %v2496
        %2514 = vst.msk [vmem:[#allocation3 + $0x30] sm:$0xff] %vm2507, %v2497
        %2515 = vst.msk [vmem:[#allocation3 + $0x38] sm:$0xff] %vm2507, %v2498
        %2516 = vst.msk [vmem:[#allocation3 + $0x40] sm:$0xff] %vm2507, %v2499
        %2517 = vst.msk [vmem:[#allocation3 + $0x48] sm:$0xff] %vm2507, %v2500
        %2518 = vst.msk [vmem:[#allocation3 + $0x50] sm:$0xff] %vm2507, %v2501
        %2519 = vst.msk [vmem:[#allocation3 + $0x58] sm:$0xff] %vm2507, %v2502
        %2520 = vst.msk [vmem:[#allocation3 + $0x60] sm:$0xff] %vm2507, %v2503
        %2521 = vst.msk [vmem:[#allocation3 + $0x68] sm:$0xff] %vm2507, %v2504
        %2522 = vst.msk [vmem:[#allocation3 + $0x70] sm:$0xff] %vm2507, %v2505
        %2523 = vst.msk [vmem:[#allocation3 + $0x78] sm:$0xff] %vm2507, %v2506
        %v2524 = vld [vmem:[#allocation4] sm:$0xff]
        %v2525 = vld [vmem:[#allocation4 + $0x8] sm:$0xff]
        %v2526 = vld [vmem:[#allocation4 + $0x10] sm:$0xff]
        %v2527 = vld [vmem:[#allocation4 + $0x18] sm:$0xff]
        %v2528 = vld [vmem:[#allocation4 + $0x20] sm:$0xff]
        %v2529 = vld [vmem:[#allocation4 + $0x28] sm:$0xff]
        %v2530 = vld [vmem:[#allocation4 + $0x30] sm:$0xff]
        %v2531 = vld [vmem:[#allocation4 + $0x38] sm:$0xff]
        %v2532 = vld [vmem:[#allocation4 + $0x40] sm:$0xff]
        %v2533 = vld [vmem:[#allocation4 + $0x48] sm:$0xff]
        %v2534 = vld [vmem:[#allocation4 + $0x50] sm:$0xff]
        %v2535 = vld [vmem:[#allocation4 + $0x58] sm:$0xff]
        %v2536 = vld [vmem:[#allocation4 + $0x60] sm:$0xff]
        %v2537 = vld [vmem:[#allocation4 + $0x68] sm:$0xff]
        %v2538 = vld [vmem:[#allocation4 + $0x70] sm:$0xff]
        %v2539 = vld [vmem:[#allocation4 + $0x78] sm:$0xff]
        %2541 = vset.pattern.permute.xlu0 0
        %2542 = vperm.xlu0 %2541, %v2252
        %v2543 = vpop.permute.xlu0 %2542
        %2546 = vset.pattern.permute.xlu0 0
        %2547 = vperm.xlu0 %2546, %v2254
        %v2548 = vpop.permute.xlu0 %2547
        %2551 = vset.pattern.permute.xlu0 0
        %2552 = vperm.xlu0 %2551, %v2256
        %v2553 = vpop.permute.xlu0 %2552
        %2556 = vset.pattern.permute.xlu0 0
        %2557 = vperm.xlu0 %2556, %v2258
        %v2558 = vpop.permute.xlu0 %2557
        %2561 = vset.pattern.permute.xlu0 0
        %2562 = vperm.xlu0 %2561, %v2260
        %v2563 = vpop.permute.xlu0 %2562
        %2566 = vset.pattern.permute.xlu0 0
        %2567 = vperm.xlu0 %2566, %v2262
        %v2568 = vpop.permute.xlu0 %2567
        %2571 = vset.pattern.permute.xlu0 0
        %2572 = vperm.xlu0 %2571, %v2264
        %v2573 = vpop.permute.xlu0 %2572
        %2576 = vset.pattern.permute.xlu0 0
        %2577 = vperm.xlu0 %2576, %v2266
        %v2578 = vpop.permute.xlu0 %2577
        %2581 = vset.pattern.permute.xlu0 0
        %2582 = vperm.xlu0 %2581, %v2268
        %v2583 = vpop.permute.xlu0 %2582
        %2586 = vset.pattern.permute.xlu0 0
        %2587 = vperm.xlu0 %2586, %v2270
        %v2588 = vpop.permute.xlu0 %2587
        %2591 = vset.pattern.permute.xlu0 0
        %2592 = vperm.xlu0 %2591, %v2272
        %v2593 = vpop.permute.xlu0 %2592
        %2596 = vset.pattern.permute.xlu0 0
        %2597 = vperm.xlu0 %2596, %v2274
        %v2598 = vpop.permute.xlu0 %2597
        %2601 = vset.pattern.permute.xlu0 0
        %2602 = vperm.xlu0 %2601, %v2276
        %v2603 = vpop.permute.xlu0 %2602
        %2606 = vset.pattern.permute.xlu0 0
        %2607 = vperm.xlu0 %2606, %v2278
        %v2608 = vpop.permute.xlu0 %2607
        %2611 = vset.pattern.permute.xlu0 0
        %2612 = vperm.xlu0 %2611, %v2280
        %v2613 = vpop.permute.xlu0 %2612
        %2616 = vset.pattern.permute.xlu0 0
        %2617 = vperm.xlu0 %2616, %v2282
        %v2618 = vpop.permute.xlu0 %2617
        %v2620 = vmul.f32 %v2543, %v2524
        %v2621 = vmul.f32 %v2548, %v2525
        %v2622 = vmul.f32 %v2553, %v2526
        %v2623 = vmul.f32 %v2558, %v2527
        %v2624 = vmul.f32 %v2563, %v2528
        %v2625 = vmul.f32 %v2568, %v2529
        %v2626 = vmul.f32 %v2573, %v2530
        %v2627 = vmul.f32 %v2578, %v2531
        %v2628 = vmul.f32 %v2583, %v2532
        %v2629 = vmul.f32 %v2588, %v2533
        %v2630 = vmul.f32 %v2593, %v2534
        %v2631 = vmul.f32 %v2598, %v2535
        %v2632 = vmul.f32 %v2603, %v2536
        %v2633 = vmul.f32 %v2608, %v2537
        %v2634 = vmul.f32 %v2613, %v2538
        %v2635 = vmul.f32 %v2618, %v2539
        %v2637 = vsel %vm1942, %v2380, 0
        %v2640 = vsel %vm1942, %v2382, 0
        %v2643 = vsel %vm1942, %v2384, 0
        %v2646 = vsel %vm1942, %v2386, 0
        %2648 = vmatpush.msra.mxu0 0.0
        %2649 = vmatpush.msra.mxu0 0.0
        %2650 = vmatpush.msra.mxu0 0.0
        %2651 = vmatpush.msra.mxu0 0.0
        %2652 = vmatpush.msra.mxu0 0.0
        %2653 = vmatpush.msra.mxu0 0.0
        %2654 = vmatpush.msra.mxu0 0.0
        %2655 = vmatpush.msra.mxu0 0.0
        %2656 = vmatpush.msra.mxu0 0.0
        %2657 = vmatpush.msra.mxu0 0.0
        %2658 = vmatpush.msra.mxu0 0.0
        %2659 = vmatpush.msra.mxu0 0.0
        %2660 = vmatpush.msra.mxu0 %v1935
        %2661 = vmatpush.msra.mxu0 %v1881
        %2662 = vmatpush.msra.mxu0 %v1827
        %2663 = vmatpush.msra.mxu0 %v1773
        %2664 = vmatmul.f32.gmra.mxu0 %v2637
        %v2665 = vpop.f32.mrf.mxu0
        %v2666 = vadd.f32 0.0, %v2665
        %2667 = vmatmul.f32.gmra.mxu0 %v2640
        %v2668 = vpop.f32.mrf.mxu0
        %v2669 = vadd.f32 0.0, %v2668
        %2670 = vmatmul.f32.gmra.mxu0 %v2643
        %v2671 = vpop.f32.mrf.mxu0
        %v2672 = vadd.f32 0.0, %v2671
        %2673 = vmatmul.f32.gmra.mxu0 %v2646
        %v2674 = vpop.f32.mrf.mxu0
        %v2675 = vadd.f32 0.0, %v2674
        %2676 = vdwg.mxu0
        %v2678 = vsel %vm1942, %v2388, 0
        %v2681 = vsel %vm1942, %v2390, 0
        %v2684 = vsel %vm1942, %v2392, 0
        %v2687 = vsel %vm1942, %v2394, 0
        %2689 = vmatpush.msra.mxu0 0.0
        %2690 = vmatpush.msra.mxu0 0.0
        %2691 = vmatpush.msra.mxu0 0.0
        %2692 = vmatpush.msra.mxu0 0.0
        %2693 = vmatpush.msra.mxu0 0.0
        %2694 = vmatpush.msra.mxu0 0.0
        %2695 = vmatpush.msra.mxu0 0.0
        %2696 = vmatpush.msra.mxu0 0.0
        %2697 = vmatpush.msra.mxu0 0.0
        %2698 = vmatpush.msra.mxu0 0.0
        %2699 = vmatpush.msra.mxu0 0.0
        %2700 = vmatpush.msra.mxu0 0.0
        %2701 = vmatpush.msra.mxu0 %v1937
        %2702 = vmatpush.msra.mxu0 %v1883
        %2703 = vmatpush.msra.mxu0 %v1829
        %2704 = vmatpush.msra.mxu0 %v1775
        %2705 = vmatmul.f32.gmra.mxu0 %v2678
        %v2706 = vpop.f32.mrf.mxu0
        %v2707 = vadd.f32 0.0, %v2706
        %2708 = vmatmul.f32.gmra.mxu0 %v2681
        %v2709 = vpop.f32.mrf.mxu0
        %v2710 = vadd.f32 0.0, %v2709
        %2711 = vmatmul.f32.gmra.mxu0 %v2684
        %v2712 = vpop.f32.mrf.mxu0
        %v2713 = vadd.f32 0.0, %v2712
        %2714 = vmatmul.f32.gmra.mxu0 %v2687
        %v2715 = vpop.f32.mrf.mxu0
        %v2716 = vadd.f32 0.0, %v2715
        %2717 = vdwg.mxu0
        %v2719 = vsel %vm1942, %v2396, 0
        %v2722 = vsel %vm1942, %v2398, 0
        %v2725 = vsel %vm1942, %v2400, 0
        %v2728 = vsel %vm1942, %v2402, 0
        %2730 = vmatpush.msra.mxu0 0.0
        %2731 = vmatpush.msra.mxu0 0.0
        %2732 = vmatpush.msra.mxu0 0.0
        %2733 = vmatpush.msra.mxu0 0.0
        %2734 = vmatpush.msra.mxu0 0.0
        %2735 = vmatpush.msra.mxu0 0.0
        %2736 = vmatpush.msra.mxu0 0.0
        %2737 = vmatpush.msra.mxu0 0.0
        %2738 = vmatpush.msra.mxu0 0.0
        %2739 = vmatpush.msra.mxu0 0.0
        %2740 = vmatpush.msra.mxu0 0.0
        %2741 = vmatpush.msra.mxu0 0.0
        %2742 = vmatpush.msra.mxu0 %v1939
        %2743 = vmatpush.msra.mxu0 %v1885
        %2744 = vmatpush.msra.mxu0 %v1831
        %2745 = vmatpush.msra.mxu0 %v1777
        %2746 = vmatmul.f32.gmra.mxu0 %v2719
        %v2747 = vpop.f32.mrf.mxu0
        %v2748 = vadd.f32 0.0, %v2747
        %2749 = vmatmul.f32.gmra.mxu0 %v2722
        %v2750 = vpop.f32.mrf.mxu0
        %v2751 = vadd.f32 0.0, %v2750
        %2752 = vmatmul.f32.gmra.mxu0 %v2725
        %v2753 = vpop.f32.mrf.mxu0
        %v2754 = vadd.f32 0.0, %v2753
        %2755 = vmatmul.f32.gmra.mxu0 %v2728
        %v2756 = vpop.f32.mrf.mxu0
        %v2757 = vadd.f32 0.0, %v2756
        %2758 = vdwg.mxu0
        %v2760 = vsel %vm1942, %v2404, 0
        %v2763 = vsel %vm1942, %v2406, 0
        %v2766 = vsel %vm1942, %v2408, 0
        %v2769 = vsel %vm1942, %v2410, 0
        %2771 = vmatpush.msra.mxu0 0.0
        %2772 = vmatpush.msra.mxu0 0.0
        %2773 = vmatpush.msra.mxu0 0.0
        %2774 = vmatpush.msra.mxu0 0.0
        %2775 = vmatpush.msra.mxu0 0.0
        %2776 = vmatpush.msra.mxu0 0.0
        %2777 = vmatpush.msra.mxu0 0.0
        %2778 = vmatpush.msra.mxu0 0.0
        %2779 = vmatpush.msra.mxu0 0.0
        %2780 = vmatpush.msra.mxu0 0.0
        %2781 = vmatpush.msra.mxu0 0.0
        %2782 = vmatpush.msra.mxu0 0.0
        %2783 = vmatpush.msra.mxu0 %v1941
        %2784 = vmatpush.msra.mxu0 %v1887
        %2785 = vmatpush.msra.mxu0 %v1833
        %2786 = vmatpush.msra.mxu0 %v1779
        %2787 = vmatmul.f32.gmra.mxu0 %v2760
        %v2788 = vpop.f32.mrf.mxu0
        %v2789 = vadd.f32 0.0, %v2788
        %2790 = vmatmul.f32.gmra.mxu0 %v2763
        %v2791 = vpop.f32.mrf.mxu0
        %v2792 = vadd.f32 0.0, %v2791
        %2793 = vmatmul.f32.gmra.mxu0 %v2766
        %v2794 = vpop.f32.mrf.mxu0
        %v2795 = vadd.f32 0.0, %v2794
        %2796 = vmatmul.f32.gmra.mxu0 %v2769
        %v2797 = vpop.f32.mrf.mxu0
        %v2798 = vadd.f32 0.0, %v2797
        %2799 = vdwg.mxu0
        %v2800 = vadd.f32 %v2620, %v2666
        %v2801 = vadd.f32 %v2621, %v2669
        %v2802 = vadd.f32 %v2622, %v2672
        %v2803 = vadd.f32 %v2623, %v2675
        %v2804 = vadd.f32 %v2624, %v2707
        %v2805 = vadd.f32 %v2625, %v2710
        %v2806 = vadd.f32 %v2626, %v2713
        %v2807 = vadd.f32 %v2627, %v2716
        %v2808 = vadd.f32 %v2628, %v2748
        %v2809 = vadd.f32 %v2629, %v2751
        %v2810 = vadd.f32 %v2630, %v2754
        %v2811 = vadd.f32 %v2631, %v2757
        %v2812 = vadd.f32 %v2632, %v2789
        %v2813 = vadd.f32 %v2633, %v2792
        %v2814 = vadd.f32 %v2634, %v2795
        %v2815 = vadd.f32 %v2635, %v2798
        %2816 = vst.msk [vmem:[#allocation4] sm:$0xff] %vm1942, %v2800
        %2817 = vst.msk [vmem:[#allocation4 + $0x8] sm:$0xff] %vm1942, %v2801
        %2818 = vst.msk [vmem:[#allocation4 + $0x10] sm:$0xff] %vm1942, %v2802
        %2819 = vst.msk [vmem:[#allocation4 + $0x18] sm:$0xff] %vm1942, %v2803
        %2820 = vst.msk [vmem:[#allocation4 + $0x20] sm:$0xff] %vm1942, %v2804
        %2821 = vst.msk [vmem:[#allocation4 + $0x28] sm:$0xff] %vm1942, %v2805
        %2822 = vst.msk [vmem:[#allocation4 + $0x30] sm:$0xff] %vm1942, %v2806
        %2823 = vst.msk [vmem:[#allocation4 + $0x38] sm:$0xff] %vm1942, %v2807
        %2824 = vst.msk [vmem:[#allocation4 + $0x40] sm:$0xff] %vm1942, %v2808
        %2825 = vst.msk [vmem:[#allocation4 + $0x48] sm:$0xff] %vm1942, %v2809
        %2826 = vst.msk [vmem:[#allocation4 + $0x50] sm:$0xff] %vm1942, %v2810
        %2827 = vst.msk [vmem:[#allocation4 + $0x58] sm:$0xff] %vm1942, %v2811
        %2828 = vst.msk [vmem:[#allocation4 + $0x60] sm:$0xff] %vm1942, %v2812
        %2829 = vst.msk [vmem:[#allocation4 + $0x68] sm:$0xff] %vm1942, %v2813
        %2830 = vst.msk [vmem:[#allocation4 + $0x70] sm:$0xff] %vm1942, %v2814
        %2831 = vst.msk [vmem:[#allocation4 + $0x78] sm:$0xff] %vm1942, %v2815
        %2832 = vst.msk [vmem:[#allocation2] sm:$0xff] %vm2507, %v2219
        %2833 = vst.msk [vmem:[#allocation2 + $0x8] sm:$0xff] %vm2507, %v2220
        %2834 = vst.msk [vmem:[#allocation2 + $0x10] sm:$0xff] %vm2507, %v2221
        %2835 = vst.msk [vmem:[#allocation2 + $0x18] sm:$0xff] %vm2507, %v2222
        %2836 = vst.msk [vmem:[#allocation2 + $0x20] sm:$0xff] %vm2507, %v2223
        %2837 = vst.msk [vmem:[#allocation2 + $0x28] sm:$0xff] %vm2507, %v2224
        %2838 = vst.msk [vmem:[#allocation2 + $0x30] sm:$0xff] %vm2507, %v2225
        %2839 = vst.msk [vmem:[#allocation2 + $0x38] sm:$0xff] %vm2507, %v2226
        %2840 = vst.msk [vmem:[#allocation2 + $0x40] sm:$0xff] %vm2507, %v2227
        %2841 = vst.msk [vmem:[#allocation2 + $0x48] sm:$0xff] %vm2507, %v2228
        %2842 = vst.msk [vmem:[#allocation2 + $0x50] sm:$0xff] %vm2507, %v2229
        %2843 = vst.msk [vmem:[#allocation2 + $0x58] sm:$0xff] %vm2507, %v2230
        %2844 = vst.msk [vmem:[#allocation2 + $0x60] sm:$0xff] %vm2507, %v2231
        %2845 = vst.msk [vmem:[#allocation2 + $0x68] sm:$0xff] %vm2507, %v2232
        %2846 = vst.msk [vmem:[#allocation2 + $0x70] sm:$0xff] %vm2507, %v2233
        %2847 = vst.msk [vmem:[#allocation2 + $0x78] sm:$0xff] %vm2507, %v2234
        // Predicated region
        $region159: #{block_forward.4} parent=141 // pred_check
          %p2848 = pneg %p435
        $region160: #{block_forward.4} parent=141 // pred_check_branch
          %2850 = sbr.rel (%p2848) target = $region162
        $region161: #{block_forward.4} parent=141 // pred_region
          %v2851 = vld [vmem:[#allocation4] sm:$0xff]
          %v2852 = vld [vmem:[#allocation4 + $0x8] sm:$0xff]
          %v2853 = vld [vmem:[#allocation4 + $0x10] sm:$0xff]
          %v2854 = vld [vmem:[#allocation4 + $0x18] sm:$0xff]
          %v2855 = vld [vmem:[#allocation4 + $0x20] sm:$0xff]
          %v2856 = vld [vmem:[#allocation4 + $0x28] sm:$0xff]
          %v2857 = vld [vmem:[#allocation4 + $0x30] sm:$0xff]
          %v2858 = vld [vmem:[#allocation4 + $0x38] sm:$0xff]
          %v2859 = vld [vmem:[#allocation4 + $0x40] sm:$0xff]
          %v2860 = vld [vmem:[#allocation4 + $0x48] sm:$0xff]
          %v2861 = vld [vmem:[#allocation4 + $0x50] sm:$0xff]
          %v2862 = vld [vmem:[#allocation4 + $0x58] sm:$0xff]
          %v2863 = vld [vmem:[#allocation4 + $0x60] sm:$0xff]
          %v2864 = vld [vmem:[#allocation4 + $0x68] sm:$0xff]
          %v2865 = vld [vmem:[#allocation4 + $0x70] sm:$0xff]
          %v2866 = vld [vmem:[#allocation4 + $0x78] sm:$0xff]
          %v2867 = vld [vmem:[#allocation3] sm:$0xff]
          %v2868 = vld [vmem:[#allocation3 + $0x8] sm:$0xff]
          %v2869 = vld [vmem:[#allocation3 + $0x10] sm:$0xff]
          %v2870 = vld [vmem:[#allocation3 + $0x18] sm:$0xff]
          %v2871 = vld [vmem:[#allocation3 + $0x20] sm:$0xff]
          %v2872 = vld [vmem:[#allocation3 + $0x28] sm:$0xff]
          %v2873 = vld [vmem:[#allocation3 + $0x30] sm:$0xff]
          %v2874 = vld [vmem:[#allocation3 + $0x38] sm:$0xff]
          %v2875 = vld [vmem:[#allocation3 + $0x40] sm:$0xff]
          %v2876 = vld [vmem:[#allocation3 + $0x48] sm:$0xff]
          %v2877 = vld [vmem:[#allocation3 + $0x50] sm:$0xff]
          %v2878 = vld [vmem:[#allocation3 + $0x58] sm:$0xff]
          %v2879 = vld [vmem:[#allocation3 + $0x60] sm:$0xff]
          %v2880 = vld [vmem:[#allocation3 + $0x68] sm:$0xff]
          %v2881 = vld [vmem:[#allocation3 + $0x70] sm:$0xff]
          %v2882 = vld [vmem:[#allocation3 + $0x78] sm:$0xff]
          %v2883 = vrcp.pop %v2867
          %v2884 = vrcp.pop %v2868
          %v2885 = vrcp.pop %v2869
          %v2886 = vrcp.pop %v2870
          %v2887 = vrcp.pop %v2871
          %v2888 = vrcp.pop %v2872
          %v2889 = vrcp.pop %v2873
          %v2890 = vrcp.pop %v2874
          %v2891 = vrcp.pop %v2875
          %v2892 = vrcp.pop %v2876
          %v2893 = vrcp.pop %v2877
          %v2894 = vrcp.pop %v2878
          %v2895 = vrcp.pop %v2879
          %v2896 = vrcp.pop %v2880
          %v2897 = vrcp.pop %v2881
          %v2898 = vrcp.pop %v2882
          %2900 = vset.pattern.permute.xlu0 0
          %2901 = vperm.xlu0 %2900, %v2883
          %v2902 = vpop.permute.xlu0 %2901
          %2905 = vset.pattern.permute.xlu0 0
          %2906 = vperm.xlu0 %2905, %v2884
          %v2907 = vpop.permute.xlu0 %2906
          %2910 = vset.pattern.permute.xlu0 0
          %2911 = vperm.xlu0 %2910, %v2885
          %v2912 = vpop.permute.xlu0 %2911
          %2915 = vset.pattern.permute.xlu0 0
          %2916 = vperm.xlu0 %2915, %v2886
          %v2917 = vpop.permute.xlu0 %2916
          %2920 = vset.pattern.permute.xlu0 0
          %2921 = vperm.xlu0 %2920, %v2887
          %v2922 = vpop.permute.xlu0 %2921
          %2925 = vset.pattern.permute.xlu0 0
          %2926 = vperm.xlu0 %2925, %v2888
          %v2927 = vpop.permute.xlu0 %2926
          %2930 = vset.pattern.permute.xlu0 0
          %2931 = vperm.xlu0 %2930, %v2889
          %v2932 = vpop.permute.xlu0 %2931
          %2935 = vset.pattern.permute.xlu0 0
          %2936 = vperm.xlu0 %2935, %v2890
          %v2937 = vpop.permute.xlu0 %2936
          %2940 = vset.pattern.permute.xlu0 0
          %2941 = vperm.xlu0 %2940, %v2891
          %v2942 = vpop.permute.xlu0 %2941
          %2945 = vset.pattern.permute.xlu0 0
          %2946 = vperm.xlu0 %2945, %v2892
          %v2947 = vpop.permute.xlu0 %2946
          %2950 = vset.pattern.permute.xlu0 0
          %2951 = vperm.xlu0 %2950, %v2893
          %v2952 = vpop.permute.xlu0 %2951
          %2955 = vset.pattern.permute.xlu0 0
          %2956 = vperm.xlu0 %2955, %v2894
          %v2957 = vpop.permute.xlu0 %2956
          %2960 = vset.pattern.permute.xlu0 0
          %2961 = vperm.xlu0 %2960, %v2895
          %v2962 = vpop.permute.xlu0 %2961
          %2965 = vset.pattern.permute.xlu0 0
          %2966 = vperm.xlu0 %2965, %v2896
          %v2967 = vpop.permute.xlu0 %2966
          %2970 = vset.pattern.permute.xlu0 0
          %2971 = vperm.xlu0 %2970, %v2897
          %v2972 = vpop.permute.xlu0 %2971
          %2975 = vset.pattern.permute.xlu0 0
          %2976 = vperm.xlu0 %2975, %v2898
          %v2977 = vpop.permute.xlu0 %2976
          %v2979 = vmul.f32 %v2851, %v2902
          %v2980 = vmul.f32 %v2852, %v2907
          %v2981 = vmul.f32 %v2853, %v2912
          %v2982 = vmul.f32 %v2854, %v2917
          %v2983 = vmul.f32 %v2855, %v2922
          %v2984 = vmul.f32 %v2856, %v2927
          %v2985 = vmul.f32 %v2857, %v2932
          %v2986 = vmul.f32 %v2858, %v2937
          %v2987 = vmul.f32 %v2859, %v2942
          %v2988 = vmul.f32 %v2860, %v2947
          %v2989 = vmul.f32 %v2861, %v2952
          %v2990 = vmul.f32 %v2862, %v2957
          %v2991 = vmul.f32 %v2863, %v2962
          %v2992 = vmul.f32 %v2864, %v2967
          %v2993 = vmul.f32 %v2865, %v2972
          %v2994 = vmul.f32 %v2866, %v2977
          %v2995 = vrot.slane %v2987, 4
          %v2996 = vsel %vm534, %v2995, %v2979
          %v2997 = vrot.slane %v2979, 4
          %v2998 = vsel %vm534, %v2987, %v2997
          %v3000 = vunpack.c.l.s4 1983009808
          %v3001 = vunpack.c.0.s8 %v3000
          %v3002 = vperm.slane %v2996, %v3001
          %v3004 = vunpack.c.l.s4 1983009808
          %v3005 = vunpack.c.0.s8 %v3004
          %v3006 = vperm.slane %v2998, %v3005
          %v3007 = vrot.slane %v2991, 4
          %v3008 = vsel %vm534, %v3007, %v2983
          %v3009 = vrot.slane %v2983, 4
          %v3010 = vsel %vm534, %v2991, %v3009
          %v3012 = vunpack.c.l.s4 1983009808
          %v3013 = vunpack.c.0.s8 %v3012
          %v3014 = vperm.slane %v3008, %v3013
          %v3016 = vunpack.c.l.s4 1983009808
          %v3017 = vunpack.c.0.s8 %v3016
          %v3018 = vperm.slane %v3010, %v3017
          %v3019 = vrot.slane %v3014, 4
          %v3020 = vsel %vm534, %v3019, %v3002
          %v3021 = vrot.slane %v3002, 4
          %v3022 = vsel %vm534, %v3014, %v3021
          %v3024 = vunpack.c.l.s4 1934713408
          %v3025 = vunpack.c.0.s8 %v3024
          %v3026 = vperm.slane %v3020, %v3025
          %v3028 = vunpack.c.l.s4 1934713408
          %v3029 = vunpack.c.0.s8 %v3028
          %v3030 = vperm.slane %v3022, %v3029
          %v3031 = vrot.slane %v3018, 4
          %v3032 = vsel %vm534, %v3031, %v3006
          %v3033 = vrot.slane %v3006, 4
          %v3034 = vsel %vm534, %v3018, %v3033
          %v3036 = vunpack.c.l.s4 1934713408
          %v3037 = vunpack.c.0.s8 %v3036
          %v3038 = vperm.slane %v3032, %v3037
          %v3040 = vunpack.c.l.s4 1934713408
          %v3041 = vunpack.c.0.s8 %v3040
          %v3042 = vperm.slane %v3034, %v3041
          %v3043 = vrot.slane %v3026, 4
          %v3044 = vsel %vm534, 0.0, %v3043
          %v3045 = vrot.slane %v3030, 4
          %v3046 = vsel %vm534, 0.0, %v3045
          %v3047 = vrot.slane %v3038, 4
          %v3048 = vsel %vm534, 0.0, %v3047
          %v3049 = vrot.slane %v3042, 4
          %v3050 = vsel %vm534, 0.0, %v3049
          %v3051 = vrot.slane %v2988, 4
          %v3052 = vsel %vm534, %v3051, %v2980
          %v3053 = vrot.slane %v2980, 4
          %v3054 = vsel %vm534, %v2988, %v3053
          %v3056 = vunpack.c.l.s4 1983009808
          %v3057 = vunpack.c.0.s8 %v3056
          %v3058 = vperm.slane %v3052, %v3057
          %v3060 = vunpack.c.l.s4 1983009808
          %v3061 = vunpack.c.0.s8 %v3060
          %v3062 = vperm.slane %v3054, %v3061
          %v3063 = vrot.slane %v2992, 4
          %v3064 = vsel %vm534, %v3063, %v2984
          %v3065 = vrot.slane %v2984, 4
          %v3066 = vsel %vm534, %v2992, %v3065
          %v3068 = vunpack.c.l.s4 1983009808
          %v3069 = vunpack.c.0.s8 %v3068
          %v3070 = vperm.slane %v3064, %v3069
          %v3072 = vunpack.c.l.s4 1983009808
          %v3073 = vunpack.c.0.s8 %v3072
          %v3074 = vperm.slane %v3066, %v3073
          %v3075 = vrot.slane %v3070, 4
          %v3076 = vsel %vm534, %v3075, %v3058
          %v3077 = vrot.slane %v3058, 4
          %v3078 = vsel %vm534, %v3070, %v3077
          %v3080 = vunpack.c.l.s4 1934713408
          %v3081 = vunpack.c.0.s8 %v3080
          %v3082 = vperm.slane %v3076, %v3081
          %v3084 = vunpack.c.l.s4 1934713408
          %v3085 = vunpack.c.0.s8 %v3084
          %v3086 = vperm.slane %v3078, %v3085
          %v3087 = vrot.slane %v3074, 4
          %v3088 = vsel %vm534, %v3087, %v3062
          %v3089 = vrot.slane %v3062, 4
          %v3090 = vsel %vm534, %v3074, %v3089
          %v3092 = vunpack.c.l.s4 1934713408
          %v3093 = vunpack.c.0.s8 %v3092
          %v3094 = vperm.slane %v3088, %v3093
          %v3096 = vunpack.c.l.s4 1934713408
          %v3097 = vunpack.c.0.s8 %v3096
          %v3098 = vperm.slane %v3090, %v3097
          %v3099 = vrot.slane %v3082, 4
          %v3100 = vsel %vm534, 0.0, %v3099
          %v3101 = vrot.slane %v3086, 4
          %v3102 = vsel %vm534, 0.0, %v3101
          %v3103 = vrot.slane %v3094, 4
          %v3104 = vsel %vm534, 0.0, %v3103
          %v3105 = vrot.slane %v3098, 4
          %v3106 = vsel %vm534, 0.0, %v3105
          %v3107 = vrot.slane %v2989, 4
          %v3108 = vsel %vm534, %v3107, %v2981
          %v3109 = vrot.slane %v2981, 4
          %v3110 = vsel %vm534, %v2989, %v3109
          %v3112 = vunpack.c.l.s4 1983009808
          %v3113 = vunpack.c.0.s8 %v3112
          %v3114 = vperm.slane %v3108, %v3113
          %v3116 = vunpack.c.l.s4 1983009808
          %v3117 = vunpack.c.0.s8 %v3116
          %v3118 = vperm.slane %v3110, %v3117
          %v3119 = vrot.slane %v2993, 4
          %v3120 = vsel %vm534, %v3119, %v2985
          %v3121 = vrot.slane %v2985, 4
          %v3122 = vsel %vm534, %v2993, %v3121
          %v3124 = vunpack.c.l.s4 1983009808
          %v3125 = vunpack.c.0.s8 %v3124
          %v3126 = vperm.slane %v3120, %v3125
          %v3128 = vunpack.c.l.s4 1983009808
          %v3129 = vunpack.c.0.s8 %v3128
          %v3130 = vperm.slane %v3122, %v3129
          %v3131 = vrot.slane %v3126, 4
          %v3132 = vsel %vm534, %v3131, %v3114
          %v3133 = vrot.slane %v3114, 4
          %v3134 = vsel %vm534, %v3126, %v3133
          %v3136 = vunpack.c.l.s4 1934713408
          %v3137 = vunpack.c.0.s8 %v3136
          %v3138 = vperm.slane %v3132, %v3137
          %v3140 = vunpack.c.l.s4 1934713408
          %v3141 = vunpack.c.0.s8 %v3140
          %v3142 = vperm.slane %v3134, %v3141
          %v3143 = vrot.slane %v3130, 4
          %v3144 = vsel %vm534, %v3143, %v3118
          %v3145 = vrot.slane %v3118, 4
          %v3146 = vsel %vm534, %v3130, %v3145
          %v3148 = vunpack.c.l.s4 1934713408
          %v3149 = vunpack.c.0.s8 %v3148
          %v3150 = vperm.slane %v3144, %v3149
          %v3152 = vunpack.c.l.s4 1934713408
          %v3153 = vunpack.c.0.s8 %v3152
          %v3154 = vperm.slane %v3146, %v3153
          %v3155 = vrot.slane %v3138, 4
          %v3156 = vsel %vm534, 0.0, %v3155
          %v3157 = vrot.slane %v3142, 4
          %v3158 = vsel %vm534, 0.0, %v3157
          %v3159 = vrot.slane %v3150, 4
          %v3160 = vsel %vm534, 0.0, %v3159
          %v3161 = vrot.slane %v3154, 4
          %v3162 = vsel %vm534, 0.0, %v3161
          %v3163 = vrot.slane %v2990, 4
          %v3164 = vsel %vm534, %v3163, %v2982
          %v3165 = vrot.slane %v2982, 4
          %v3166 = vsel %vm534, %v2990, %v3165
          %v3168 = vunpack.c.l.s4 1983009808
          %v3169 = vunpack.c.0.s8 %v3168
          %v3170 = vperm.slane %v3164, %v3169
          %v3172 = vunpack.c.l.s4 1983009808
          %v3173 = vunpack.c.0.s8 %v3172
          %v3174 = vperm.slane %v3166, %v3173
          %v3175 = vrot.slane %v2994, 4
          %v3176 = vsel %vm534, %v3175, %v2986
          %v3177 = vrot.slane %v2986, 4
          %v3178 = vsel %vm534, %v2994, %v3177
          %v3180 = vunpack.c.l.s4 1983009808
          %v3181 = vunpack.c.0.s8 %v3180
          %v3182 = vperm.slane %v3176, %v3181
          %v3184 = vunpack.c.l.s4 1983009808
          %v3185 = vunpack.c.0.s8 %v3184
          %v3186 = vperm.slane %v3178, %v3185
          %v3187 = vrot.slane %v3182, 4
          %v3188 = vsel %vm534, %v3187, %v3170
          %v3189 = vrot.slane %v3170, 4
          %v3190 = vsel %vm534, %v3182, %v3189
          %v3192 = vunpack.c.l.s4 1934713408
          %v3193 = vunpack.c.0.s8 %v3192
          %v3194 = vperm.slane %v3188, %v3193
          %v3196 = vunpack.c.l.s4 1934713408
          %v3197 = vunpack.c.0.s8 %v3196
          %v3198 = vperm.slane %v3190, %v3197
          %v3199 = vrot.slane %v3186, 4
          %v3200 = vsel %vm534, %v3199, %v3174
          %v3201 = vrot.slane %v3174, 4
          %v3202 = vsel %vm534, %v3186, %v3201
          %v3204 = vunpack.c.l.s4 1934713408
          %v3205 = vunpack.c.0.s8 %v3204
          %v3206 = vperm.slane %v3200, %v3205
          %v3208 = vunpack.c.l.s4 1934713408
          %v3209 = vunpack.c.0.s8 %v3208
          %v3210 = vperm.slane %v3202, %v3209
          %v3211 = vrot.slane %v3194, 4
          %v3212 = vsel %vm534, 0.0, %v3211
          %v3213 = vrot.slane %v3198, 4
          %v3214 = vsel %vm534, 0.0, %v3213
          %v3215 = vrot.slane %v3206, 4
          %v3216 = vsel %vm534, 0.0, %v3215
          %v3217 = vrot.slane %v3210, 4
          %v3218 = vsel %vm534, 0.0, %v3217
          %v3219 = vsel %vm534, %v3045, %v3026
          %v3221 = vunpack.c.l.s4 1983009808
          %v3222 = vunpack.c.0.s8 %v3221
          %v3223 = vperm.slane %v3219, %v3222
          %v3224 = vrot.slane %v3046, 4
          %v3225 = vsel %vm534, %v3224, %v3044
          %v3227 = vunpack.c.l.s4 1983009808
          %v3228 = vunpack.c.0.s8 %v3227
          %v3229 = vperm.slane %v3225, %v3228
          %v3230 = vsel %vm534, %v3049, %v3038
          %v3232 = vunpack.c.l.s4 1983009808
          %v3233 = vunpack.c.0.s8 %v3232
          %v3234 = vperm.slane %v3230, %v3233
          %v3235 = vrot.slane %v3050, 4
          %v3236 = vsel %vm534, %v3235, %v3048
          %v3238 = vunpack.c.l.s4 1983009808
          %v3239 = vunpack.c.0.s8 %v3238
          %v3240 = vperm.slane %v3236, %v3239
          %v3241 = vrot.slane %v3229, 4
          %v3242 = vsel %vm534, %v3241, %v3223
          %v3243 = vrot.slane %v3223, 4
          %v3244 = vsel %vm534, %v3229, %v3243
          %v3246 = vunpack.c.l.s4 1934713408
          %v3247 = vunpack.c.0.s8 %v3246
          %v3248 = vperm.slane %v3242, %v3247
          %v3250 = vunpack.c.l.s4 1934713408
          %v3251 = vunpack.c.0.s8 %v3250
          %v3252 = vperm.slane %v3244, %v3251
          %v3253 = vrot.slane %v3240, 4
          %v3254 = vsel %vm534, %v3253, %v3234
          %v3255 = vrot.slane %v3234, 4
          %v3256 = vsel %vm534, %v3240, %v3255
          %v3258 = vunpack.c.l.s4 1934713408
          %v3259 = vunpack.c.0.s8 %v3258
          %v3260 = vperm.slane %v3254, %v3259
          %v3262 = vunpack.c.l.s4 1934713408
          %v3263 = vunpack.c.0.s8 %v3262
          %v3264 = vperm.slane %v3256, %v3263
          %v3265 = vrot.slane %v3260, 4
          %v3266 = vsel %vm534, %v3265, %v3248
          %v3267 = vrot.slane %v3248, 4
          %v3268 = vsel %vm534, %v3260, %v3267
          %v3269 = vrot.slane %v3264, 4
          %v3270 = vsel %vm534, %v3269, %v3252
          %v3271 = vrot.slane %v3252, 4
          %v3272 = vsel %vm534, %v3264, %v3271
          %v3273 = vsel %vm534, %v3101, %v3082
          %v3275 = vunpack.c.l.s4 1983009808
          %v3276 = vunpack.c.0.s8 %v3275
          %v3277 = vperm.slane %v3273, %v3276
          %v3278 = vrot.slane %v3102, 4
          %v3279 = vsel %vm534, %v3278, %v3100
          %v3281 = vunpack.c.l.s4 1983009808
          %v3282 = vunpack.c.0.s8 %v3281
          %v3283 = vperm.slane %v3279, %v3282
          %v3284 = vsel %vm534, %v3105, %v3094
          %v3286 = vunpack.c.l.s4 1983009808
          %v3287 = vunpack.c.0.s8 %v3286
          %v3288 = vperm.slane %v3284, %v3287
          %v3289 = vrot.slane %v3106, 4
          %v3290 = vsel %vm534, %v3289, %v3104
          %v3292 = vunpack.c.l.s4 1983009808
          %v3293 = vunpack.c.0.s8 %v3292
          %v3294 = vperm.slane %v3290, %v3293
          %v3295 = vrot.slane %v3283, 4
          %v3296 = vsel %vm534, %v3295, %v3277
          %v3297 = vrot.slane %v3277, 4
          %v3298 = vsel %vm534, %v3283, %v3297
          %v3300 = vunpack.c.l.s4 1934713408
          %v3301 = vunpack.c.0.s8 %v3300
          %v3302 = vperm.slane %v3296, %v3301
          %v3304 = vunpack.c.l.s4 1934713408
          %v3305 = vunpack.c.0.s8 %v3304
          %v3306 = vperm.slane %v3298, %v3305
          %v3307 = vrot.slane %v3294, 4
          %v3308 = vsel %vm534, %v3307, %v3288
          %v3309 = vrot.slane %v3288, 4
          %v3310 = vsel %vm534, %v3294, %v3309
          %v3312 = vunpack.c.l.s4 1934713408
          %v3313 = vunpack.c.0.s8 %v3312
          %v3314 = vperm.slane %v3308, %v3313
          %v3316 = vunpack.c.l.s4 1934713408
          %v3317 = vunpack.c.0.s8 %v3316
          %v3318 = vperm.slane %v3310, %v3317
          %v3319 = vrot.slane %v3314, 4
          %v3320 = vsel %vm534, %v3319, %v3302
          %v3321 = vrot.slane %v3302, 4
          %v3322 = vsel %vm534, %v3314, %v3321
          %v3323 = vrot.slane %v3318, 4
          %v3324 = vsel %vm534, %v3323, %v3306
          %v3325 = vrot.slane %v3306, 4
          %v3326 = vsel %vm534, %v3318, %v3325
          %v3327 = vsel %vm534, %v3157, %v3138
          %v3329 = vunpack.c.l.s4 1983009808
          %v3330 = vunpack.c.0.s8 %v3329
          %v3331 = vperm.slane %v3327, %v3330
          %v3332 = vrot.slane %v3158, 4
          %v3333 = vsel %vm534, %v3332, %v3156
          %v3335 = vunpack.c.l.s4 1983009808
          %v3336 = vunpack.c.0.s8 %v3335
          %v3337 = vperm.slane %v3333, %v3336
          %v3338 = vsel %vm534, %v3161, %v3150
          %v3340 = vunpack.c.l.s4 1983009808
          %v3341 = vunpack.c.0.s8 %v3340
          %v3342 = vperm.slane %v3338, %v3341
          %v3343 = vrot.slane %v3162, 4
          %v3344 = vsel %vm534, %v3343, %v3160
          %v3346 = vunpack.c.l.s4 1983009808
          %v3347 = vunpack.c.0.s8 %v3346
          %v3348 = vperm.slane %v3344, %v3347
          %v3349 = vrot.slane %v3337, 4
          %v3350 = vsel %vm534, %v3349, %v3331
          %v3351 = vrot.slane %v3331, 4
          %v3352 = vsel %vm534, %v3337, %v3351
          %v3354 = vunpack.c.l.s4 1934713408
          %v3355 = vunpack.c.0.s8 %v3354
          %v3356 = vperm.slane %v3350, %v3355
          %v3358 = vunpack.c.l.s4 1934713408
          %v3359 = vunpack.c.0.s8 %v3358
          %v3360 = vperm.slane %v3352, %v3359
          %v3361 = vrot.slane %v3348, 4
          %v3362 = vsel %vm534, %v3361, %v3342
          %v3363 = vrot.slane %v3342, 4
          %v3364 = vsel %vm534, %v3348, %v3363
          %v3366 = vunpack.c.l.s4 1934713408
          %v3367 = vunpack.c.0.s8 %v3366
          %v3368 = vperm.slane %v3362, %v3367
          %v3370 = vunpack.c.l.s4 1934713408
          %v3371 = vunpack.c.0.s8 %v3370
          %v3372 = vperm.slane %v3364, %v3371
          %v3373 = vrot.slane %v3368, 4
          %v3374 = vsel %vm534, %v3373, %v3356
          %v3375 = vrot.slane %v3356, 4
          %v3376 = vsel %vm534, %v3368, %v3375
          %v3377 = vrot.slane %v3372, 4
          %v3378 = vsel %vm534, %v3377, %v3360
          %v3379 = vrot.slane %v3360, 4
          %v3380 = vsel %vm534, %v3372, %v3379
          %v3381 = vsel %vm534, %v3213, %v3194
          %v3383 = vunpack.c.l.s4 1983009808
          %v3384 = vunpack.c.0.s8 %v3383
          %v3385 = vperm.slane %v3381, %v3384
          %v3386 = vrot.slane %v3214, 4
          %v3387 = vsel %vm534, %v3386, %v3212
          %v3389 = vunpack.c.l.s4 1983009808
          %v3390 = vunpack.c.0.s8 %v3389
          %v3391 = vperm.slane %v3387, %v3390
          %v3392 = vsel %vm534, %v3217, %v3206
          %v3394 = vunpack.c.l.s4 1983009808
          %v3395 = vunpack.c.0.s8 %v3394
          %v3396 = vperm.slane %v3392, %v3395
          %v3397 = vrot.slane %v3218, 4
          %v3398 = vsel %vm534, %v3397, %v3216
          %v3400 = vunpack.c.l.s4 1983009808
          %v3401 = vunpack.c.0.s8 %v3400
          %v3402 = vperm.slane %v3398, %v3401
          %v3403 = vrot.slane %v3391, 4
          %v3404 = vsel %vm534, %v3403, %v3385
          %v3405 = vrot.slane %v3385, 4
          %v3406 = vsel %vm534, %v3391, %v3405
          %v3408 = vunpack.c.l.s4 1934713408
          %v3409 = vunpack.c.0.s8 %v3408
          %v3410 = vperm.slane %v3404, %v3409
          %v3412 = vunpack.c.l.s4 1934713408
          %v3413 = vunpack.c.0.s8 %v3412
          %v3414 = vperm.slane %v3406, %v3413
          %v3415 = vrot.slane %v3402, 4
          %v3416 = vsel %vm534, %v3415, %v3396
          %v3417 = vrot.slane %v3396, 4
          %v3418 = vsel %vm534, %v3402, %v3417
          %v3420 = vunpack.c.l.s4 1934713408
          %v3421 = vunpack.c.0.s8 %v3420
          %v3422 = vperm.slane %v3416, %v3421
          %v3424 = vunpack.c.l.s4 1934713408
          %v3425 = vunpack.c.0.s8 %v3424
          %v3426 = vperm.slane %v3418, %v3425
          %v3427 = vrot.slane %v3422, 4
          %v3428 = vsel %vm534, %v3427, %v3410
          %v3429 = vrot.slane %v3410, 4
          %v3430 = vsel %vm534, %v3422, %v3429
          %v3431 = vrot.slane %v3426, 4
          %v3432 = vsel %vm534, %v3431, %v3414
          %v3433 = vrot.slane %v3414, 4
          %v3434 = vsel %vm534, %v3426, %v3433
          %3439 = vrot.lane.b32.xlu0 %v3268, 32
          %v3440 = vpop.permute.xlu0 %3439
          %3441 = vrot.lane.b32.xlu0 %v3322, 32
          %v3442 = vpop.permute.xlu0 %3441
          %3443 = vrot.lane.b32.xlu0 %v3376, 32
          %v3444 = vpop.permute.xlu0 %3443
          %3445 = vrot.lane.b32.xlu0 %v3430, 32
          %v3446 = vpop.permute.xlu0 %3445
          %3455 = vrot.lane.b32.xlu0 %v3270, 64
          %v3456 = vpop.permute.xlu0 %3455
          %3457 = vrot.lane.b32.xlu0 %v3324, 64
          %v3458 = vpop.permute.xlu0 %3457
          %3459 = vrot.lane.b32.xlu0 %v3378, 64
          %v3460 = vpop.permute.xlu0 %3459
          %3461 = vrot.lane.b32.xlu0 %v3432, 64
          %v3462 = vpop.permute.xlu0 %3461
          %3471 = vrot.lane.b32.xlu0 %v3272, 96
          %v3472 = vpop.permute.xlu0 %3471
          %3473 = vrot.lane.b32.xlu0 %v3326, 96
          %v3474 = vpop.permute.xlu0 %3473
          %3475 = vrot.lane.b32.xlu0 %v3380, 96
          %v3476 = vpop.permute.xlu0 %3475
          %3477 = vrot.lane.b32.xlu0 %v3434, 96
          %v3478 = vpop.permute.xlu0 %3477
          %v3483 = vsel %vm1942, %v3266, %v3440
          %v3484 = vsel %vm1942, %v3320, %v3442
          %v3485 = vsel %vm1942, %v3374, %v3444
          %v3486 = vsel %vm1942, %v3428, %v3446
          %vm3487 = vcmask 523264
          %v3488 = vsel %vm3487, %v3483, %v3456
          %v3489 = vsel %vm3487, %v3484, %v3458
          %v3490 = vsel %vm3487, %v3485, %v3460
          %v3491 = vsel %vm3487, %v3486, %v3462
          %vm3492 = vcmask 785408
          %v3493 = vsel %vm3492, %v3488, %v3472
          %v3494 = vsel %vm3492, %v3489, %v3474
          %v3495 = vsel %vm3492, %v3490, %v3476
          %v3496 = vsel %vm3492, %v3491, %v3478
          %v3497 = vld [vmem:[%s3] sm:$0xff]
          %v3498 = vld [vmem:[%s3 + $0x8] sm:$0xff]
          %v3499 = vld [vmem:[%s3 + $0x10] sm:$0xff]
          %v3500 = vld [vmem:[%s3 + $0x18] sm:$0xff]
          %v3501 = vld [vmem:[%s3 + $0x20] sm:$0xff]
          %v3502 = vld [vmem:[%s3 + $0x28] sm:$0xff]
          %v3503 = vld [vmem:[%s3 + $0x30] sm:$0xff]
          %v3504 = vld [vmem:[%s3 + $0x38] sm:$0xff]
          %v3505 = vld [vmem:[%s3 + $0x40] sm:$0xff]
          %v3506 = vld [vmem:[%s3 + $0x48] sm:$0xff]
          %v3507 = vld [vmem:[%s3 + $0x50] sm:$0xff]
          %v3508 = vld [vmem:[%s3 + $0x58] sm:$0xff]
          %v3509 = vld [vmem:[%s3 + $0x60] sm:$0xff]
          %v3510 = vld [vmem:[%s3 + $0x68] sm:$0xff]
          %v3511 = vld [vmem:[%s3 + $0x70] sm:$0xff]
          %v3512 = vld [vmem:[%s3 + $0x78] sm:$0xff]
          %v3513 = vld [vmem:[%s4] sm:$0x1]
          %v3515 = vperm.slane %v3513, 0
          %3517 = vmatpush.msra.mxu0 %v3512
          %3518 = vmatpush.msra.mxu0 %v3511
          %3519 = vmatpush.msra.mxu0 %v3510
          %3520 = vmatpush.msra.mxu0 %v3509
          %3521 = vmatpush.msra.mxu0 %v3508
          %3522 = vmatpush.msra.mxu0 %v3507
          %3523 = vmatpush.msra.mxu0 %v3506
          %3524 = vmatpush.msra.mxu0 %v3505
          %3525 = vmatpush.msra.mxu0 %v3504
          %3526 = vmatpush.msra.mxu0 %v3503
          %3527 = vmatpush.msra.mxu0 %v3502
          %3528 = vmatpush.msra.mxu0 %v3501
          %3529 = vmatpush.msra.mxu0 %v3500
          %3530 = vmatpush.msra.mxu0 %v3499
          %3531 = vmatpush.msra.mxu0 %v3498
          %3532 = vmatpush.msra.mxu0 %v3497
          %3533 = vmatmul.f32.gmra.mxu0 %v3493
          %v3534 = vpop.f32.mrf.mxu0
          %v3535 = vadd.f32 %v3515, %v3534
          %3536 = vmatmul.f32.gmra.mxu0 %v3494
          %v3537 = vpop.f32.mrf.mxu0
          %v3538 = vadd.f32 %v3515, %v3537
          %3539 = vmatmul.f32.gmra.mxu0 %v3495
          %v3540 = vpop.f32.mrf.mxu0
          %v3541 = vadd.f32 %v3515, %v3540
          %3542 = vmatmul.f32.gmra.mxu0 %v3496
          %v3543 = vpop.f32.mrf.mxu0
          %v3544 = vadd.f32 %v3515, %v3543
          %3545 = vdwg.mxu0
          %3546 = vst [vmem:[%s433] sm:$0xff] %v3535
          %3547 = vst [vmem:[%s433 + $0x8] sm:$0xff] %v3538
          %3548 = vst [vmem:[%s433 + $0x10] sm:$0xff] %v3541
          %3549 = vst [vmem:[%s433 + $0x18] sm:$0xff] %v3544
        $region162: #{block_forward.4} parent=141 // pred_fallthru
          _
        %s3550 = smul.u32 4, %s22
        %p3551 = scmp.lt.s32.totalorder %s21, 1
        %s3552 = scalar_select %p3551, %s21, 1
        %p3553 = scmp.lt.s32.totalorder %s3550, 3
        %s3554 = scalar_select %p3553, %s3550, 3
        %s3555 = smul.addr %s3552, 4
        %s3556 = sadd.s32 %s3554, %s3555
        %s3557 = smul.addr %s3556, 8
        %s3558 = scalar_lea.vmem %s5, %s3557
        // Predicated region
        $region163: #{block_forward.4} parent=141 // pred_check
          %p3559 = pneg %p181
        $region164: #{block_forward.4} parent=141 // pred_check_branch
          %3561 = sbr.rel (%p3559) target = $region166
        $region165: #{block_forward.4} parent=141 // pred_region
          %s3562 = smul.u32 4, %s22
        $region166: #{block_forward.4} parent=141 // pred_fallthru
          _
      $region142: #{block_forward.4} parent=5 // pred_fallthru
        _
      %p3563 = scmp.le.s32.totalorder 2, %s11
      // Predicated region
      $region167: #{block_forward.4} parent=5 // pred_check
        %p3564 = pneg %p3563
      $region168: #{block_forward.4} parent=5 // pred_check_branch
        %3566 = sbr.rel (%p3564) target = $region170
      $region169: #{block_forward.4} parent=5 // pred_region
        %s3567 = ssub.s32 %s11, 2
        // Predicated region
        $region171: #{block_forward.4} parent=169 // pred_check
          %p3568 = pneg %p187
        $region172: #{block_forward.4} parent=169 // pred_check_branch
          %3570 = sbr.rel (%p3568) target = $region174
        $region173: #{block_forward.4} parent=169 // pred_region
          %s3571 = smul.u32 4, %s25
          %p3572 = scmp.lt.s32.totalorder %s24, 1
          %s3573 = scalar_select %p3572, %s24, 1
          %p3574 = scmp.lt.s32.totalorder %s3571, 3
          %s3575 = scalar_select %p3574, %s3571, 3
          %s3576 = smul.addr %s3573, 4
          %s3577 = sadd.s32 %s3575, %s3576
          %s3578 = smul.addr %s3577, 8
          %s3579 = scalar_lea.vmem %s5, %s3578
        $region174: #{block_forward.4} parent=169 // pred_fallthru
          _
      $region170: #{block_forward.4} parent=5 // pred_fallthru
        _
    $region6: #{block_forward.4} parent=1 // loop_footer
      %s15 = sadd.s32 1, %s11
    $region7: #{block_forward.4} parent=1 // loop_footer_branch
      %10 = sbr.rel target = $region3
    $region8: #{block_forward.4} parent=1 // loop_exit
      _

</llo_original>
